<compile_context>
chip_gen: v6e
topology: v6e:2x2x1
jax: 0.10.0
libtpu: 0.0.40
codegen_flags: <defaults>
</compile_context>

<pallas_src>
import functools

import numpy as np

import jax
import jax.numpy as jnp
from jax.experimental import pallas as pl
from jax.experimental.pallas import tpu as pltpu

EPS = 1e-5

# ConvTranspose2d(k=4, s=2, p=1): output parity -> ((kernel tap index, input shift), ...)
_TAPS = {0: ((1, 0), (3, -1)), 1: ((0, 1), (2, 0))}


# --------------------------------------------------------------------------------------
# Kernels
# --------------------------------------------------------------------------------------
def _conv1_stats_kernel(x_ref, w1_ref, t1_ref, st1_ref):
    """K1: 1x1 conv on a row tile + per-sample sum / sum-of-squares accumulation."""
    # x_ref: (1, TR, Cin) bf16, w1_ref: (Cin, mid) bf16
    t = jnp.dot(x_ref[0], w1_ref[...], preferred_element_type=jnp.float32)  # (TR, mid)
    t1_ref[...] = t[None].astype(t1_ref.dtype)

    @pl.when(pl.program_id(1) == 0)
    def _():
        st1_ref[...] = jnp.zeros_like(st1_ref)

    s = jnp.sum(t, axis=0, keepdims=True)
    q = jnp.sum(t * t, axis=0, keepdims=True)
    st1_ref[...] += jnp.concatenate([s, q], axis=0)[None]


def _ibn_deconv_kernel(H, W, mid, half, n_batch,
                       t1_ref, st1_ref, gib_ref, bib_ref, wt_ref,
                       y_ref, st2_ref, pad_ref):
    """K2: IBN apply + ReLU + ConvTranspose(k4,s2,p1) + per-sample BN2 stats (one sample)."""
    HW = H * W
    n = pl.program_id(0)

    # Per-sample instance stats (first `half` channels) and batch stats (rest), both
    # derived from the single-pass sums produced by K1.
    row = st1_ref[n]                                            # (2, mid)
    mean_in = row[0:1] * (1.0 / HW)
    var_in = jnp.maximum(row[1:2] * (1.0 / HW) - mean_in * mean_in, 0.0)
    tot = jnp.sum(st1_ref[...], axis=0)                         # (2, mid)
    mean_bn = tot[0:1] * (1.0 / (n_batch * HW))
    var_bn = jnp.maximum(tot[1:2] * (1.0 / (n_batch * HW)) - mean_bn * mean_bn, 0.0)

    is_in = jax.lax.broadcasted_iota(jnp.int32, (1, mid), 1) < half
    mean_c = jnp.where(is_in, mean_in, mean_bn)
    var_c = jnp.where(is_in, var_in, var_bn)
    scale = gib_ref[...] * jax.lax.rsqrt(var_c + EPS)           # folded IBN affine
    shift = bib_ref[...] - mean_c * scale

    t2 = jnp.maximum(t1_ref[0].astype(jnp.float32) * scale + shift, 0.0)  # (HW, mid)

    # Zero-padded (H+2, W+2, mid) bf16 scratch: interior written once + 4 thin halos.
    pad_ref[0:1, :, :] = jnp.zeros((1, W + 2, mid), pad_ref.dtype)
    pad_ref[H + 1:H + 2, :, :] = jnp.zeros((1, W + 2, mid), pad_ref.dtype)
    pad_ref[1:H + 1, 0:1, :] = jnp.zeros((H, 1, mid), pad_ref.dtype)
    pad_ref[1:H + 1, W + 1:W + 2, :] = jnp.zeros((H, 1, mid), pad_ref.dtype)
    pad_ref[1:H + 1, 1:W + 1, :] = t2.reshape(H, W, mid).astype(pad_ref.dtype)

    s2 = jnp.zeros((1, mid), jnp.float32)
    q2 = jnp.zeros((1, mid), jnp.float32)
    for po in (0, 1):
        halves = []
        for qo in (0, 1):
            # 4 accumulating per-tap dots; one shifted slab live at a time.
            acc = jnp.zeros((HW, mid), jnp.float32)
            for kh, dh in _TAPS[po]:
                for kw, dw in _TAPS[qo]:
                    slab = pad_ref[1 + dh:1 + dh + H, 1 + dw:1 + dw + W, :]
                    acc = acc + jnp.dot(slab.reshape(HW, mid), wt_ref[kh, kw],
                                        preferred_element_type=jnp.float32)
            s2 = s2 + jnp.sum(acc, axis=0, keepdims=True)
            q2 = q2 + jnp.sum(acc * acc, axis=0, keepdims=True)
            halves.append(acc.astype(y_ref.dtype))
        # Lane-dense store: both W-parities written as one 2*mid-wide channel stripe.
        y_po = jnp.concatenate(halves, axis=1).reshape(1, H, 1, W, 2 * mid)
        y_ref[0:1, :, po:po + 1, :, :] = y_po
    st2_ref[...] = jnp.concatenate([s2, q2], axis=0)[None]


def _bn2_conv2_kernel(count, y_ref, st2_ref, g2_ref, b2_ref, w2b_ref, w_ref, st3_ref):
    """K3: BN2 apply + ReLU + 1x1 conv (block-diag over the W parity) + partial BN3 stats."""
    tot = jnp.sum(st2_ref[...], axis=0)                         # (2, mid)
    mean2 = tot[0:1] * (1.0 / count)
    var2 = jnp.maximum(tot[1:2] * (1.0 / count) - mean2 * mean2, 0.0)
    scale = g2_ref[...] * jax.lax.rsqrt(var2 + EPS)             # folded BN2 affine
    shift = b2_ref[...] - mean2 * scale
    scale2 = jnp.concatenate([scale, scale], axis=1)            # channels repeat per W parity
    shift2 = jnp.concatenate([shift, shift], axis=1)

    blk = y_ref[0]                                              # (TH, 2, W, 2*mid)
    th, _, w_dim, c2 = blk.shape
    z = jnp.maximum(blk.reshape(th * 2 * w_dim, c2).astype(jnp.float32) * scale2 + shift2,
                    0.0)
    w = jnp.dot(z.astype(jnp.bfloat16), w2b_ref[...], preferred_element_type=jnp.float32)
    w_ref[...] = w.reshape(1, th, 2, w_dim, -1).astype(w_ref.dtype)

    cout = w.shape[1] // 2
    s3 = jnp.sum(w, axis=0, keepdims=True)
    q3 = jnp.sum(w * w, axis=0, keepdims=True)
    st3_ref[...] = jnp.concatenate([s3[:, :cout] + s3[:, cout:],
                                    q3[:, :cout] + q3[:, cout:]], axis=0)[None]


def _bn3_kernel(count, w_ref, st3_ref, g3_ref, b3_ref, o_ref):
    """K4: BN3 apply + ReLU -> final (N, H, 2, W, 2*Cout) f32 output."""
    tot = jnp.sum(st3_ref[...], axis=0)                         # (2, Cout)
    mean3 = tot[0:1] * (1.0 / count)
    var3 = jnp.maximum(tot[1:2] * (1.0 / count) - mean3 * mean3, 0.0)
    scale = g3_ref[...] * jax.lax.rsqrt(var3 + EPS)             # folded BN3 affine
    shift = b3_ref[...] - mean3 * scale
    scale2 = jnp.concatenate([scale, scale], axis=1)
    shift2 = jnp.concatenate([shift, shift], axis=1)

    blk = w_ref[0]                                              # (TH, 2, W, 2*Cout)
    th, _, w_dim, c2 = blk.shape
    out = jnp.maximum(blk.reshape(th * 2 * w_dim, c2).astype(jnp.float32) * scale2 + shift2,
                      0.0)
    o_ref[...] = out.reshape(1, th, 2, w_dim, c2)


# --------------------------------------------------------------------------------------
# Wrapper helpers
# --------------------------------------------------------------------------------------
def _row_tile(total, target):
    """Largest multiple-of-8 divisor of `total` that is <= target (falls back to total)."""
    best = None
    cand = 8
    limit = min(total, max(8, int(target)))
    while cand <= limit:
        if total % cand == 0:
            best = cand
        cand += 8
    return best if best is not None else total


def _div_tile(total, target):
    """Largest divisor of `total` that is <= target."""
    target = max(1, min(int(target), total))
    for cand in range(target, 0, -1):
        if total % cand == 0:
            return cand
    return 1


def _padded_bytes(shape, dtype):
    """Bytes after TPU (sublane, lane) tile padding of the last two dims."""
    item = np.dtype(dtype).itemsize
    s = list(shape) if len(shape) >= 2 else [1, *shape]
    sub = {4: 8, 2: 16, 1: 32}.get(item, 8)
    s[-1] = -(-s[-1] // 128) * 128
    s[-2] = -(-s[-2] // sub) * sub
    n = 1
    for d in s:
        n *= int(d)
    return n * item


def _vmem_cap_bytes():
    try:
        cap = getattr(pltpu.get_tpu_info(), "vmem_capacity_bytes", None)
        if cap:
            return int(cap)
    except Exception:
        pass
    return 128 * 1024 * 1024


def _cparams(dimension_semantics, est_bytes):
    # Per-generation scoped-VMEM limit: grow with the footprint but always leave
    # >= 16 MiB of physical headroom (so v7x's 64 MiB is never fully requested).
    cap = _vmem_cap_bytes()
    limit = int(min(max(2 * est_bytes, 32 * 1024 * 1024), cap - 16 * 1024 * 1024))
    return pltpu.CompilerParams(dimension_semantics=dimension_semantics,
                                vmem_limit_bytes=limit)


# --------------------------------------------------------------------------------------
# Forward pass
# --------------------------------------------------------------------------------------
def improved_ibn_a_decoder_block(x_nchw, params):
    """Forward pass; x_nchw: (N, C_in, H, W) f32 -> (N, C_out, 2H, 2W) f32."""
    N, Cin, H, W = map(int, x_nchw.shape)
    mid = Cin // 4
    half = mid // 2
    Cout = int(params["w2"].shape[0])
    HW = H * W

    # TODO(synk): accept channels-last activations end-to-end to remove this transpose
    # and the final NHWC->NCHW transpose (each is a full HBM pass).
    x3 = x_nchw.transpose(0, 2, 3, 1).reshape(N, HW, Cin).astype(jnp.bfloat16)

    # Weights: activations/weights feeding the MXU in bf16; norm params/stats in f32.
    w1 = params["w1"].reshape(mid, Cin).T.astype(jnp.bfloat16)             # (Cin, mid)
    gib = jnp.concatenate([params["g_in"], params["g_bn1"]]).reshape(1, mid).astype(jnp.float32)
    bib = jnp.concatenate([params["b_in"], params["b_bn1"]]).reshape(1, mid).astype(jnp.float32)
    wt = params["wt"].transpose(2, 3, 0, 1).astype(jnp.bfloat16)           # (kh, kw, ci, co)
    g2 = params["g2"].reshape(1, mid).astype(jnp.float32)
    b2 = params["be2"].reshape(1, mid).astype(jnp.float32)
    w2 = params["w2"].reshape(Cout, mid).T.astype(jnp.bfloat16)            # (mid, Cout)
    zpad = jnp.zeros((mid, Cout), jnp.bfloat16)
    w2b = jnp.concatenate([jnp.concatenate([w2, zpad], axis=1),
                           jnp.concatenate([zpad, w2], axis=1)], axis=0)   # (2*mid, 2*Cout)
    g3 = params["g3"].reshape(1, Cout).astype(jnp.float32)
    b3 = params["be3"].reshape(1, Cout).astype(jnp.float32)
    # Conv biases b1 / bt / b2 are intentionally dropped: each is followed by a
    # training-mode norm that subtracts its own mean, so they cancel exactly.

    # ---------------- K1: conv1 + per-sample t1 stats ----------------
    tr = _row_tile(HW, max(8, min(1024, HW // 2)))
    est1 = (2 * (_padded_bytes((1, tr, Cin), jnp.bfloat16)
                 + _padded_bytes((1, tr, mid), jnp.bfloat16)
                 + _padded_bytes((1, 2, mid), jnp.float32))
            + _padded_bytes((Cin, mid), jnp.bfloat16))
    t1, st1 = pl.pallas_call(
        _conv1_stats_kernel,
        grid=(N, HW // tr),
        in_specs=[pl.BlockSpec((1, tr, Cin), lambda n, t: (n, t, 0)),
                  pl.BlockSpec((Cin, mid), lambda n, t: (0, 0))],
        out_specs=(pl.BlockSpec((1, tr, mid), lambda n, t: (n, t, 0)),
                   pl.BlockSpec((1, 2, mid), lambda n, t: (n, 0, 0))),
        out_shape=(jax.ShapeDtypeStruct((N, HW, mid), jnp.bfloat16),
                   jax.ShapeDtypeStruct((N, 2, mid), jnp.float32)),
        compiler_params=_cparams(("parallel", "arbitrary"), est1),
    )(x3, w1)

    # ---------------- K2: IBN apply + ConvTranspose + per-sample y stats ----------------
    est2 = (2 * (_padded_bytes((1, HW, mid), jnp.bfloat16)
                 + _padded_bytes((1, H, 2, W, 2 * mid), jnp.bfloat16)
                 + _padded_bytes((1, 2, mid), jnp.float32))
            + _padded_bytes((N, 2, mid), jnp.float32)
            + _padded_bytes((4, 4, mid, mid), jnp.bfloat16)
            + _padded_bytes((H + 2, W + 2, mid), jnp.bfloat16)
            + 6 * _padded_bytes((HW, mid), jnp.float32))
    y5, st2 = pl.pallas_call(
        functools.partial(_ibn_deconv_kernel, H, W, mid, half, N),
        grid=(N,),
        in_specs=[pl.BlockSpec((1, HW, mid), lambda n: (n, 0, 0)),
                  pl.BlockSpec((N, 2, mid), lambda n: (0, 0, 0)),
                  pl.BlockSpec((1, mid), lambda n: (0, 0)),
                  pl.BlockSpec((1, mid), lambda n: (0, 0)),
                  pl.BlockSpec((4, 4, mid, mid), lambda n: (0, 0, 0, 0))],
        out_specs=(pl.BlockSpec((1, H, 2, W, 2 * mid), lambda n: (n, 0, 0, 0, 0)),
                   pl.BlockSpec((1, 2, mid), lambda n: (n, 0, 0))),
        out_shape=(jax.ShapeDtypeStruct((N, H, 2, W, 2 * mid), jnp.bfloat16),
                   jax.ShapeDtypeStruct((N, 2, mid), jnp.float32)),
        scratch_shapes=[pltpu.VMEM((H + 2, W + 2, mid), jnp.bfloat16)],
        compiler_params=_cparams(("parallel",), est2),
    )(t1, st1, gib, bib, wt)

    # ---------------- K3: BN2 apply + conv2 + per-tile w stats ----------------
    th_budget = max(1, (1 << 20) // max(1, 2 * W * 2 * mid * 2))  # ~1 MiB bf16 blocks
    th = _div_tile(H, min(th_budget, max(1, H // 2)))
    t3 = H // th
    count_up = float(N * 4 * H * W)
    est3 = (2 * (_padded_bytes((1, th, 2, W, 2 * mid), jnp.bfloat16)
                 + _padded_bytes((1, th, 2, W, 2 * Cout), jnp.bfloat16)
                 + _padded_bytes((1, 2, Cout), jnp.float32))
            + _padded_bytes((N, 2, mid), jnp.float32)
            + _padded_bytes((2 * mid, 2 * Cout), jnp.bfloat16)
            + 4 * _padded_bytes((th * 2 * W, 2 * mid), jnp.float32))
    wbuf, st3 = pl.pallas_call(
        functools.partial(_bn2_conv2_kernel, count_up),
        grid=(N, t3),
        in_specs=[pl.BlockSpec((1, th, 2, W, 2 * mid), lambda n, t: (n, t, 0, 0, 0)),
                  pl.BlockSpec((N, 2, mid), lambda n, t: (0, 0, 0)),
                  pl.BlockSpec((1, mid), lambda n, t: (0, 0)),
                  pl.BlockSpec((1, mid), lambda n, t: (0, 0)),
                  pl.BlockSpec((2 * mid, 2 * Cout), lambda n, t: (0, 0))],
        out_specs=(pl.BlockSpec((1, th, 2, W, 2 * Cout), lambda n, t: (n, t, 0, 0, 0)),
                   pl.BlockSpec((1, 2, Cout), lambda n, t: (n * t3 + t, 0, 0))),
        out_shape=(jax.ShapeDtypeStruct((N, H, 2, W, 2 * Cout), jnp.bfloat16),
                   jax.ShapeDtypeStruct((N * t3, 2, Cout), jnp.float32)),
        compiler_params=_cparams(("parallel", "parallel"), est3),
    )(y5, st2, g2, b2, w2b)

    # ---------------- K4: BN3 apply + ReLU -> output ----------------
    est4 = (2 * (_padded_bytes((1, th, 2, W, 2 * Cout), jnp.bfloat16)
                 + _padded_bytes((1, th, 2, W, 2 * Cout), jnp.float32))
            + _padded_bytes((N * t3, 2, Cout), jnp.float32))
    out5 = pl.pallas_call(
        functools.partial(_bn3_kernel, count_up),
        grid=(N, t3),
        in_specs=[pl.BlockSpec((1, th, 2, W, 2 * Cout), lambda n, t: (n, t, 0, 0, 0)),
                  pl.BlockSpec((N * t3, 2, Cout), lambda n, t: (0, 0, 0)),
                  pl.BlockSpec((1, Cout), lambda n, t: (0, 0)),
                  pl.BlockSpec((1, Cout), lambda n, t: (0, 0))],
        out_specs=pl.BlockSpec((1, th, 2, W, 2 * Cout), lambda n, t: (n, t, 0, 0, 0)),
        out_shape=jax.ShapeDtypeStruct((N, H, 2, W, 2 * Cout), jnp.float32),
        compiler_params=_cparams(("parallel", "parallel"), est4),
    )(wbuf, st3, g3, b3)

    # (N, H, 2, W, 2*Cout) flattens exactly to NHWC of the 2x-upsampled image.
    nhwc = out5.reshape(N, 2 * H, 2 * W, Cout)
    return nhwc.transpose(0, 3, 1, 2)


# --------------------------------------------------------------------------------------
# Parameters and pure-JAX reference
# --------------------------------------------------------------------------------------
def init_params(key, in_channels, out_channels):
    mid = in_channels // 4
    half = mid // 2
    ks = jax.random.split(key, 14)
    rnd = lambda k, shape, s=0.5: (s * jax.random.normal(k, shape)).astype(jnp.float32)
    return {
        "w1": rnd(ks[0], (mid, in_channels, 1, 1)),
        "b1": rnd(ks[1], (mid,)),
        "g_in": 1.0 + rnd(ks[2], (half,), 0.1),
        "b_in": rnd(ks[3], (half,), 0.1),
        "g_bn1": 1.0 + rnd(ks[4], (mid - half,), 0.1),
        "b_bn1": rnd(ks[5], (mid - half,), 0.1),
        "wt": rnd(ks[6], (mid, mid, 4, 4)),     # ConvTranspose2d weight (in, out, kh, kw)
        "bt": rnd(ks[7], (mid,)),
        "g2": 1.0 + rnd(ks[8], (mid,), 0.1),
        "be2": rnd(ks[9], (mid,), 0.1),
        "w2": rnd(ks[10], (out_channels, mid, 1, 1)),
        "b2": rnd(ks[11], (out_channels,)),
        "g3": 1.0 + rnd(ks[12], (out_channels,), 0.1),
        "be3": rnd(ks[13], (out_channels,), 0.1),
    }


def reference_forward(x, p):
    """Pure-JAX mirror of the PyTorch module (training-mode norms)."""
    N, Cin, H, W = x.shape
    mid = Cin // 4
    half = mid // 2
    Cout = p["w2"].shape[0]

    t = jnp.einsum("nchw,mc->nmhw", x, p["w1"].reshape(mid, Cin)) \
        + p["b1"][None, :, None, None]
    # IBN (InstanceNorm+ReLU on first half, BatchNorm+ReLU on second half)
    a, b = t[:, :half], t[:, half:]
    m = a.mean(axis=(2, 3), keepdims=True)
    v = ((a - m) ** 2).mean(axis=(2, 3), keepdims=True)
    a = (a - m) * jax.lax.rsqrt(v + EPS) * p["g_in"][None, :, None, None] \
        + p["b_in"][None, :, None, None]
    a = jnp.maximum(a, 0.0)
    m = b.mean(axis=(0, 2, 3), keepdims=True)
    v = ((b - m) ** 2).mean(axis=(0, 2, 3), keepdims=True)
    b = (b - m) * jax.lax.rsqrt(v + EPS) * p["g_bn1"][None, :, None, None] \
        + p["b_bn1"][None, :, None, None]
    b = jnp.maximum(b, 0.0)
    t = jnp.concatenate([a, b], axis=1)
    # ConvTranspose2d(mid, mid, 4, stride=2, padding=1)
    xt = t.transpose(0, 2, 3, 1)
    w_hwio = jnp.flip(p["wt"], axis=(2, 3)).transpose(2, 3, 0, 1)
    y = jax.lax.conv_general_dilated(
        xt, w_hwio, window_strides=(1, 1), padding=((2, 2), (2, 2)),
        lhs_dilation=(2, 2), dimension_numbers=("NHWC", "HWIO", "NHWC"))
    y = (y + p["bt"][None, None, None, :]).transpose(0, 3, 1, 2)
    m = y.mean(axis=(0, 2, 3), keepdims=True)
    v = ((y - m) ** 2).mean(axis=(0, 2, 3), keepdims=True)
    y = jnp.maximum((y - m) * jax.lax.rsqrt(v + EPS) * p["g2"][None, :, None, None]
                    + p["be2"][None, :, None, None], 0.0)
    z = jnp.einsum("nchw,oc->nohw", y, p["w2"].reshape(Cout, mid)) \
        + p["b2"][None, :, None, None]
    m = z.mean(axis=(0, 2, 3), keepdims=True)
    v = ((z - m) ** 2).mean(axis=(0, 2, 3), keepdims=True)
    z = jnp.maximum((z - m) * jax.lax.rsqrt(v + EPS) * p["g3"][None, :, None, None]
                    + p["be3"][None, :, None, None], 0.0)
    return z


if __name__ == "__main__":
    key = jax.random.PRNGKey(0)
    kx, kp = jax.random.split(key)
    N, Cin, H, W = 2, 16, 8, 8           # in_channels=16 -> mid=4, half=2
    Cout = 8
    x = jax.random.normal(kx, (N, Cin, H, W), dtype=jnp.float32)
    params = init_params(kp, Cin, Cout)

    out = jax.jit(improved_ibn_a_decoder_block)(x, params)
    out = jax.block_until_ready(out)
    assert out.shape == (N, Cout, 2 * H, 2 * W), out.shape

    ref = reference_forward(x, params)
    # bf16 HBM intermediates (kernel side only) + default single-pass MXU precision
    # on both sides -> relaxed tolerance.
    err = float(jnp.max(jnp.abs(out - ref) / (1.0 + jnp.abs(ref))))
    if err > 4e-2:
        raise AssertionError(f"kernel/reference mismatch: max rel err {err}")
    print("KERNEL_OK")
</pallas_src>

<mosaic_0001>
module attributes {stable_mosaic.version = 11 : i64} {
  func.func @_conv1_stats_kernel(%arg0: i32, %arg1: i32, %arg2: memref<1x32x16xbf16, #tpu.memory_space<vmem>>, %arg3: memref<16x4xbf16, #tpu.memory_space<vmem>>, %arg4: memref<1x32x4xbf16, #tpu.memory_space<vmem>>, %arg5: memref<1x2x4xf32, #tpu.memory_space<vmem>>) attributes {dimension_semantics = [#tpu.dimension_semantics<parallel>, #tpu.dimension_semantics<arbitrary>], iteration_bounds = array<i64: 2, 2>, scalar_prefetch = 0 : i64, scratch_operands = 0 : i64, tpu.core_type = #tpu.core_type<tc>, window_params = [{transform_indices = @transform_0, window_bounds = array<i64: 1, 32, 16>}, {pipeline_mode = #tpu.pipeline_mode<synchronous>, transform_indices = @transform_1, window_bounds = array<i64: 16, 4>}, {transform_indices = @transform_2, window_bounds = array<i64: 1, 32, 4>}, {transform_indices = @transform_3, window_bounds = array<i64: 1, 2, 4>}]} {
    %c0 = arith.constant 0 : index
    %c0_0 = arith.constant 0 : index
    %c0_1 = arith.constant 0 : index
    %0 = vector.load %arg2[%c0, %c0_0, %c0_1] : memref<1x32x16xbf16, #tpu.memory_space<vmem>>, vector<1x32x16xbf16>
    %1 = vector.shape_cast %0 : vector<1x32x16xbf16> to vector<32x16xbf16>
    %c0_2 = arith.constant 0 : index
    %c0_3 = arith.constant 0 : index
    %2 = vector.load %arg3[%c0_2, %c0_3] : memref<16x4xbf16, #tpu.memory_space<vmem>>, vector<16x4xbf16>
    %cst = arith.constant dense<0.000000e+00> : vector<32x4xf32>
    %3 = tpu.matmul %1, %2, %cst {dimension_numbers = #tpu.dot_dimension_numbers<[1], [0], [0], [1], [0, 0, 1, 1], [], []>} : vector<32x16xbf16>, vector<16x4xbf16>, vector<32x4xf32> -> vector<32x4xf32>
    %4 = vector.shape_cast %3 : vector<32x4xf32> to vector<1x32x4xf32>
    %5 = arith.truncf %4 : vector<1x32x4xf32> to vector<1x32x4xbf16>
    %c0_4 = arith.constant 0 : index
    %c0_5 = arith.constant 0 : index
    %c0_6 = arith.constant 0 : index
    %6 = vector.load %arg4[%c0_4, %c0_5, %c0_6] : memref<1x32x4xbf16, #tpu.memory_space<vmem>>, vector<1x32x4xbf16>
    tpu.vector_store %arg4[%c0_4, %c0_5, %c0_6], %5 {strides = array<i32>} : memref<1x32x4xbf16, #tpu.memory_space<vmem>>, vector<1x32x4xbf16>,
    %c0_i32 = arith.constant 0 : i32
    %7 = arith.cmpi eq, %arg1, %c0_i32 : i32
    %8 = arith.extui %7 : i1 to i32
    %c0_i32_7 = arith.constant 0 : i32
    %9 = arith.cmpi ne, %8, %c0_i32_7 : i32
    scf.if %9 {
      %cst_16 = arith.constant 0.000000e+00 : f32
      %20 = vector.broadcast %cst_16 : f32 to vector<1x2x4xf32>
      %c0_17 = arith.constant 0 : index
      %c0_18 = arith.constant 0 : index
      %c0_19 = arith.constant 0 : index
      %21 = vector.load %arg5[%c0_17, %c0_18, %c0_19] : memref<1x2x4xf32, #tpu.memory_space<vmem>>, vector<1x2x4xf32>
      tpu.vector_store %arg5[%c0_17, %c0_18, %c0_19], %20 {strides = array<i32>} : memref<1x2x4xf32, #tpu.memory_space<vmem>>, vector<1x2x4xf32>,
    } else {
    }
    %cst_8 = arith.constant dense<0.000000e+00> : vector<4xf32>
    %10 = vector.multi_reduction <add>, %3, %cst_8 [0] : vector<32x4xf32> to vector<4xf32>
    %11 = vector.shape_cast %10 : vector<4xf32> to vector<1x4xf32>
    %12 = arith.mulf %3, %3 : vector<32x4xf32>
    %cst_9 = arith.constant dense<0.000000e+00> : vector<4xf32>
    %13 = vector.multi_reduction <add>, %12, %cst_9 [0] : vector<32x4xf32> to vector<4xf32>
    %14 = vector.shape_cast %13 : vector<4xf32> to vector<1x4xf32>
    %c0_10 = arith.constant 0 : index
    %c0_11 = arith.constant 0 : index
    %c0_12 = arith.constant 0 : index
    %15 = vector.load %arg5[%c0_10, %c0_11, %c0_12] : memref<1x2x4xf32, #tpu.memory_space<vmem>>, vector<1x2x4xf32>
    %16 = tpu.concatenate %11, %14 in 0 : vector<1x4xf32>, vector<1x4xf32> -> vector<2x4xf32>
    %17 = vector.shape_cast %16 : vector<2x4xf32> to vector<1x2x4xf32>
    %18 = arith.addf %15, %17 : vector<1x2x4xf32>
    %c0_13 = arith.constant 0 : index
    %c0_14 = arith.constant 0 : index
    %c0_15 = arith.constant 0 : index
    %19 = vector.load %arg5[%c0_13, %c0_14, %c0_15] : memref<1x2x4xf32, #tpu.memory_space<vmem>>, vector<1x2x4xf32>
    tpu.vector_store %arg5[%c0_13, %c0_14, %c0_15], %18 {strides = array<i32>} : memref<1x2x4xf32, #tpu.memory_space<vmem>>, vector<1x2x4xf32>,
    return
  }
  func.func @transform_0(%arg0: i32, %arg1: i32) -> (i32, i32, i32) {
    %c0_i32 = arith.constant 0 : i32
    %c0_i32_0 = arith.constant 0 : i32
    return %arg0, %arg1, %c0_i32 : i32, i32, i32
  }
  func.func @transform_1(%arg0: i32, %arg1: i32) -> (i32, i32) {
    %c0_i32 = arith.constant 0 : i32
    %c0_i32_0 = arith.constant 0 : i32
    %c0_i32_1 = arith.constant 0 : i32
    return %c0_i32, %c0_i32_0 : i32, i32
  }
  func.func @transform_2(%arg0: i32, %arg1: i32) -> (i32, i32, i32) {
    %c0_i32 = arith.constant 0 : i32
    %c0_i32_0 = arith.constant 0 : i32
    return %arg0, %arg1, %c0_i32 : i32, i32, i32
  }
  func.func @transform_3(%arg0: i32, %arg1: i32) -> (i32, i32, i32) {
    %c0_i32 = arith.constant 0 : i32
    %c0_i32_0 = arith.constant 0 : i32
    %c0_i32_1 = arith.constant 0 : i32
    return %arg0, %c0_i32, %c0_i32_0 : i32, i32, i32
  }
}

module attributes {stable_mosaic.version = 11 : i64} {
  func.func @_bn2_conv2_kernel(%arg0: i32, %arg1: i32, %arg2: memref<1x4x2x8x8xbf16, #tpu.memory_space<vmem>>, %arg3: memref<2x2x4xf32, #tpu.memory_space<vmem>>, %arg4: memref<1x4xf32, #tpu.memory_space<vmem>>, %arg5: memref<1x4xf32, #tpu.memory_space<vmem>>, %arg6: memref<8x16xbf16, #tpu.memory_space<vmem>>, %arg7: memref<1x4x2x8x16xbf16, #tpu.memory_space<vmem>>, %arg8: memref<1x2x8xf32, #tpu.memory_space<vmem>>) attributes {dimension_semantics = [#tpu.dimension_semantics<parallel>, #tpu.dimension_semantics<parallel>], iteration_bounds = array<i64: 2, 2>, scalar_prefetch = 0 : i64, scratch_operands = 0 : i64, tpu.core_type = #tpu.core_type<tc>, window_params = [{transform_indices = @transform_0, window_bounds = array<i64: 1, 4, 2, 8, 8>}, {pipeline_mode = #tpu.pipeline_mode<synchronous>, transform_indices = @transform_1, window_bounds = array<i64: 2, 2, 4>}, {pipeline_mode = #tpu.pipeline_mode<synchronous>, transform_indices = @transform_2, window_bounds = array<i64: 1, 4>}, {pipeline_mode = #tpu.pipeline_mode<synchronous>, transform_indices = @transform_3, window_bounds = array<i64: 1, 4>}, {pipeline_mode = #tpu.pipeline_mode<synchronous>, transform_indices = @transform_4, window_bounds = array<i64: 8, 16>}, {transform_indices = @transform_5, window_bounds = array<i64: 1, 4, 2, 8, 16>}, {transform_indices = @transform_6, window_bounds = array<i64: 1, 2, 8>}]} {
    %c0 = arith.constant 0 : index
    %c0_0 = arith.constant 0 : index
    %c0_1 = arith.constant 0 : index
    %0 = vector.load %arg3[%c0, %c0_0, %c0_1] : memref<2x2x4xf32, #tpu.memory_space<vmem>>, vector<2x2x4xf32>
    %cst = arith.constant dense<0.000000e+00> : vector<2x4xf32>
    %1 = vector.multi_reduction <add>, %0, %cst [0] : vector<2x2x4xf32> to vector<2x4xf32>
    %2 = vector.extract_strided_slice %1 {offsets = [0, 0], sizes = [1, 4], strides = [1, 1]} : vector<2x4xf32> to vector<1x4xf32>
    %cst_2 = arith.constant 0.001953125 : f32
    %3 = vector.broadcast %cst_2 : f32 to vector<1x4xf32>
    %4 = arith.mulf %2, %3 : vector<1x4xf32>
    %5 = vector.extract_strided_slice %1 {offsets = [1, 0], sizes = [1, 4], strides = [1, 1]} : vector<2x4xf32> to vector<1x4xf32>
    %cst_3 = arith.constant 0.001953125 : f32
    %6 = vector.broadcast %cst_3 : f32 to vector<1x4xf32>
    %7 = arith.mulf %5, %6 : vector<1x4xf32>
    %8 = arith.mulf %4, %4 : vector<1x4xf32>
    %9 = arith.subf %7, %8 : vector<1x4xf32>
    %cst_4 = arith.constant 0.000000e+00 : f32
    %10 = vector.broadcast %cst_4 : f32 to vector<1x4xf32>
    %11 = arith.maximumf %9, %10 : vector<1x4xf32>
    %c0_5 = arith.constant 0 : index
    %c0_6 = arith.constant 0 : index
    %12 = vector.load %arg4[%c0_5, %c0_6] : memref<1x4xf32, #tpu.memory_space<vmem>>, vector<1x4xf32>
    %cst_7 = arith.constant 9.99999974E-6 : f32
    %13 = vector.broadcast %cst_7 : f32 to vector<1x4xf32>
    %14 = arith.addf %11, %13 : vector<1x4xf32>
    %15 = math.rsqrt %14 : vector<1x4xf32>
    %16 = arith.mulf %12, %15 : vector<1x4xf32>
    %c0_8 = arith.constant 0 : index
    %c0_9 = arith.constant 0 : index
    %17 = vector.load %arg5[%c0_8, %c0_9] : memref<1x4xf32, #tpu.memory_space<vmem>>, vector<1x4xf32>
    %18 = arith.mulf %4, %16 : vector<1x4xf32>
    %19 = arith.subf %17, %18 : vector<1x4xf32>
    %20 = tpu.concatenate %16, %16 in 1 : vector<1x4xf32>, vector<1x4xf32> -> vector<1x8xf32>
    %21 = tpu.concatenate %19, %19 in 1 : vector<1x4xf32>, vector<1x4xf32> -> vector<1x8xf32>
    %c0_10 = arith.constant 0 : index
    %c0_11 = arith.constant 0 : index
    %c0_12 = arith.constant 0 : index
    %c0_13 = arith.constant 0 : index
    %c0_14 = arith.constant 0 : index
    %22 = vector.load %arg2[%c0_10, %c0_11, %c0_12, %c0_13, %c0_14] : memref<1x4x2x8x8xbf16, #tpu.memory_space<vmem>>, vector<1x4x2x8x8xbf16>
    %23 = vector.shape_cast %22 : vector<1x4x2x8x8xbf16> to vector<4x2x8x8xbf16>
    %24 = vector.shape_cast %23 : vector<4x2x8x8xbf16> to vector<64x8xbf16>
    %25 = arith.extf %24 : vector<64x8xbf16> to vector<64x8xf32>
    %26 = vector.broadcast %20 : vector<1x8xf32> to vector<64x8xf32>
    %27 = arith.mulf %25, %26 : vector<64x8xf32>
    %28 = vector.broadcast %21 : vector<1x8xf32> to vector<64x8xf32>
    %29 = arith.addf %27, %28 : vector<64x8xf32>
    %cst_15 = arith.constant 0.000000e+00 : f32
    %30 = vector.broadcast %cst_15 : f32 to vector<64x8xf32>
    %31 = arith.maximumf %29, %30 : vector<64x8xf32>
    %32 = arith.truncf %31 : vector<64x8xf32> to vector<64x8xbf16>
    %c0_16 = arith.constant 0 : index
    %c0_17 = arith.constant 0 : index
    %33 = vector.load %arg6[%c0_16, %c0_17] : memref<8x16xbf16, #tpu.memory_space<vmem>>, vector<8x16xbf16>
    %cst_18 = arith.constant dense<0.000000e+00> : vector<64x16xf32>
    %34 = tpu.matmul %32, %33, %cst_18 {dimension_numbers = #tpu.dot_dimension_numbers<[1], [0], [0], [1], [0, 0, 1, 1], [], []>} : vector<64x8xbf16>, vector<8x16xbf16>, vector<64x16xf32> -> vector<64x16xf32>
    %35 = vector.shape_cast %34 : vector<64x16xf32> to vector<1x4x2x8x16xf32>
    %36 = arith.truncf %35 : vector<1x4x2x8x16xf32> to vector<1x4x2x8x16xbf16>
    %c0_19 = arith.constant 0 : index
    %c0_20 = arith.constant 0 : index
    %c0_21 = arith.constant 0 : index
    %c0_22 = arith.constant 0 : index
    %c0_23 = arith.constant 0 : index
    %37 = vector.load %arg7[%c0_19, %c0_20, %c0_21, %c0_22, %c0_23] : memref<1x4x2x8x16xbf16, #tpu.memory_space<vmem>>, vector<1x4x2x8x16xbf16>
    tpu.vector_store %arg7[%c0_19, %c0_20, %c0_21, %c0_22, %c0_23], %36 {strides = array<i32>} : memref<1x4x2x8x16xbf16, #tpu.memory_space<vmem>>, vector<1x4x2x8x16xbf16>,
    %cst_24 = arith.constant dense<0.000000e+00> : vector<16xf32>
    %38 = vector.multi_reduction <add>, %34, %cst_24 [0] : vector<64x16xf32> to vector<16xf32>
    %39 = vector.shape_cast %38 : vector<16xf32> to vector<1x16xf32>
    %40 = arith.mulf %34, %34 : vector<64x16xf32>
    %cst_25 = arith.constant dense<0.000000e+00> : vector<16xf32>
    %41 = vector.multi_reduction <add>, %40, %cst_25 [0] : vector<64x16xf32> to vector<16xf32>
    %42 = vector.shape_cast %41 : vector<16xf32> to vector<1x16xf32>
    %43 = vector.extract_strided_slice %39 {offsets = [0, 0], sizes = [1, 8], strides = [1, 1]} : vector<1x16xf32> to vector<1x8xf32>
    %44 = vector.extract_strided_slice %39 {offsets = [0, 8], sizes = [1, 8], strides = [1, 1]} : vector<1x16xf32> to vector<1x8xf32>
    %45 = arith.addf %43, %44 : vector<1x8xf32>
    %46 = vector.extract_strided_slice %42 {offsets = [0, 0], sizes = [1, 8], strides = [1, 1]} : vector<1x16xf32> to vector<1x8xf32>
    %47 = vector.extract_strided_slice %42 {offsets = [0, 8], sizes = [1, 8], strides = [1, 1]} : vector<1x16xf32> to vector<1x8xf32>
    %48 = arith.addf %46, %47 : vector<1x8xf32>
    %49 = tpu.concatenate %45, %48 in 0 : vector<1x8xf32>, vector<1x8xf32> -> vector<2x8xf32>
    %50 = vector.shape_cast %49 : vector<2x8xf32> to vector<1x2x8xf32>
    %c0_26 = arith.constant 0 : index
    %c0_27 = arith.constant 0 : index
    %c0_28 = arith.constant 0 : index
    %51 = vector.load %arg8[%c0_26, %c0_27, %c0_28] : memref<1x2x8xf32, #tpu.memory_space<vmem>>, vector<1x2x8xf32>
    tpu.vector_store %arg8[%c0_26, %c0_27, %c0_28], %50 {strides = array<i32>} : memref<1x2x8xf32, #tpu.memory_space<vmem>>, vector<1x2x8xf32>,
    return
  }
  func.func @transform_0(%arg0: i32, %arg1: i32) -> (i32, i32, i32, i32, i32) {
    %c0_i32 = arith.constant 0 : i32
    %c0_i32_0 = arith.constant 0 : i32
    %c0_i32_1 = arith.constant 0 : i32
    %c0_i32_2 = arith.constant 0 : i32
    return %arg0, %arg1, %c0_i32, %c0_i32_0, %c0_i32_1 : i32, i32, i32, i32, i32
  }
  func.func @transform_1(%arg0: i32, %arg1: i32) -> (i32, i32, i32) {
    %c0_i32 = arith.constant 0 : i32
    %c0_i32_0 = arith.constant 0 : i32
    %c0_i32_1 = arith.constant 0 : i32
    %c0_i32_2 = arith.constant 0 : i32
    return %c0_i32, %c0_i32_0, %c0_i32_1 : i32, i32, i32
  }
  func.func @transform_2(%arg0: i32, %arg1: i32) -> (i32, i32) {
    %c0_i32 = arith.constant 0 : i32
    %c0_i32_0 = arith.constant 0 : i32
    %c0_i32_1 = arith.constant 0 : i32
    return %c0_i32, %c0_i32_0 : i32, i32
  }
  func.func @transform_3(%arg0: i32, %arg1: i32) -> (i32, i32) {
    %c0_i32 = arith.constant 0 : i32
    %c0_i32_0 = arith.constant 0 : i32
    %c0_i32_1 = arith.constant 0 : i32
    return %c0_i32, %c0_i32_0 : i32, i32
  }
  func.func @transform_4(%arg0: i32, %arg1: i32) -> (i32, i32) {
    %c0_i32 = arith.constant 0 : i32
    %c0_i32_0 = arith.constant 0 : i32
    %c0_i32_1 = arith.constant 0 : i32
    return %c0_i32, %c0_i32_0 : i32, i32
  }
  func.func @transform_5(%arg0: i32, %arg1: i32) -> (i32, i32, i32, i32, i32) {
    %c0_i32 = arith.constant 0 : i32
    %c0_i32_0 = arith.constant 0 : i32
    %c0_i32_1 = arith.constant 0 : i32
    %c0_i32_2 = arith.constant 0 : i32
    return %arg0, %arg1, %c0_i32, %c0_i32_0, %c0_i32_1 : i32, i32, i32, i32, i32
  }
  func.func @transform_6(%arg0: i32, %arg1: i32) -> (i32, i32, i32) {
    %c2_i32 = arith.constant 2 : i32
    %0 = arith.muli %arg0, %c2_i32 : i32
    %1 = arith.addi %0, %arg1 : i32
    %c0_i32 = arith.constant 0 : i32
    %c0_i32_0 = arith.constant 0 : i32
    %c0_i32_1 = arith.constant 0 : i32
    return %1, %c0_i32, %c0_i32_0 : i32, i32, i32
  }
}

module attributes {stable_mosaic.version = 11 : i64} {
  func.func @_bn3_kernel(%arg0: i32, %arg1: i32, %arg2: memref<1x4x2x8x16xbf16, #tpu.memory_space<vmem>>, %arg3: memref<4x2x8xf32, #tpu.memory_space<vmem>>, %arg4: memref<1x8xf32, #tpu.memory_space<vmem>>, %arg5: memref<1x8xf32, #tpu.memory_space<vmem>>, %arg6: memref<1x4x2x8x16xf32, #tpu.memory_space<vmem>>) attributes {dimension_semantics = [#tpu.dimension_semantics<parallel>, #tpu.dimension_semantics<parallel>], iteration_bounds = array<i64: 2, 2>, scalar_prefetch = 0 : i64, scratch_operands = 0 : i64, tpu.core_type = #tpu.core_type<tc>, window_params = [{transform_indices = @transform_0, window_bounds = array<i64: 1, 4, 2, 8, 16>}, {pipeline_mode = #tpu.pipeline_mode<synchronous>, transform_indices = @transform_1, window_bounds = array<i64: 4, 2, 8>}, {pipeline_mode = #tpu.pipeline_mode<synchronous>, transform_indices = @transform_2, window_bounds = array<i64: 1, 8>}, {pipeline_mode = #tpu.pipeline_mode<synchronous>, transform_indices = @transform_3, window_bounds = array<i64: 1, 8>}, {transform_indices = @transform_4, window_bounds = array<i64: 1, 4, 2, 8, 16>}]} {
    %c0 = arith.constant 0 : index
    %c0_0 = arith.constant 0 : index
    %c0_1 = arith.constant 0 : index
    %0 = vector.load %arg3[%c0, %c0_0, %c0_1] : memref<4x2x8xf32, #tpu.memory_space<vmem>>, vector<4x2x8xf32>
    %cst = arith.constant dense<0.000000e+00> : vector<2x8xf32>
    %1 = vector.multi_reduction <add>, %0, %cst [0] : vector<4x2x8xf32> to vector<2x8xf32>
    %2 = vector.extract_strided_slice %1 {offsets = [0, 0], sizes = [1, 8], strides = [1, 1]} : vector<2x8xf32> to vector<1x8xf32>
    %cst_2 = arith.constant 0.001953125 : f32
    %3 = vector.broadcast %cst_2 : f32 to vector<1x8xf32>
    %4 = arith.mulf %2, %3 : vector<1x8xf32>
    %5 = vector.extract_strided_slice %1 {offsets = [1, 0], sizes = [1, 8], strides = [1, 1]} : vector<2x8xf32> to vector<1x8xf32>
    %cst_3 = arith.constant 0.001953125 : f32
    %6 = vector.broadcast %cst_3 : f32 to vector<1x8xf32>
    %7 = arith.mulf %5, %6 : vector<1x8xf32>
    %8 = arith.mulf %4, %4 : vector<1x8xf32>
    %9 = arith.subf %7, %8 : vector<1x8xf32>
    %cst_4 = arith.constant 0.000000e+00 : f32
    %10 = vector.broadcast %cst_4 : f32 to vector<1x8xf32>
    %11 = arith.maximumf %9, %10 : vector<1x8xf32>
    %c0_5 = arith.constant 0 : index
    %c0_6 = arith.constant 0 : index
    %12 = vector.load %arg4[%c0_5, %c0_6] : memref<1x8xf32, #tpu.memory_space<vmem>>, vector<1x8xf32>
    %cst_7 = arith.constant 9.99999974E-6 : f32
    %13 = vector.broadcast %cst_7 : f32 to vector<1x8xf32>
    %14 = arith.addf %11, %13 : vector<1x8xf32>
    %15 = math.rsqrt %14 : vector<1x8xf32>
    %16 = arith.mulf %12, %15 : vector<1x8xf32>
    %c0_8 = arith.constant 0 : index
    %c0_9 = arith.constant 0 : index
    %17 = vector.load %arg5[%c0_8, %c0_9] : memref<1x8xf32, #tpu.memory_space<vmem>>, vector<1x8xf32>
    %18 = arith.mulf %4, %16 : vector<1x8xf32>
    %19 = arith.subf %17, %18 : vector<1x8xf32>
    %20 = tpu.concatenate %16, %16 in 1 : vector<1x8xf32>, vector<1x8xf32> -> vector<1x16xf32>
    %21 = tpu.concatenate %19, %19 in 1 : vector<1x8xf32>, vector<1x8xf32> -> vector<1x16xf32>
    %c0_10 = arith.constant 0 : index
    %c0_11 = arith.constant 0 : index
    %c0_12 = arith.constant 0 : index
    %c0_13 = arith.constant 0 : index
    %c0_14 = arith.constant 0 : index
    %22 = vector.load %arg2[%c0_10, %c0_11, %c0_12, %c0_13, %c0_14] : memref<1x4x2x8x16xbf16, #tpu.memory_space<vmem>>, vector<1x4x2x8x16xbf16>
    %23 = vector.shape_cast %22 : vector<1x4x2x8x16xbf16> to vector<4x2x8x16xbf16>
    %24 = vector.shape_cast %23 : vector<4x2x8x16xbf16> to vector<64x16xbf16>
    %25 = arith.extf %24 : vector<64x16xbf16> to vector<64x16xf32>
    %26 = vector.broadcast %20 : vector<1x16xf32> to vector<64x16xf32>
    %27 = arith.mulf %25, %26 : vector<64x16xf32>
    %28 = vector.broadcast %21 : vector<1x16xf32> to vector<64x16xf32>
    %29 = arith.addf %27, %28 : vector<64x16xf32>
    %cst_15 = arith.constant 0.000000e+00 : f32
    %30 = vector.broadcast %cst_15 : f32 to vector<64x16xf32>
    %31 = arith.maximumf %29, %30 : vector<64x16xf32>
    %32 = vector.shape_cast %31 : vector<64x16xf32> to vector<1x4x2x8x16xf32>
    %c0_16 = arith.constant 0 : index
    %c0_17 = arith.constant 0 : index
    %c0_18 = arith.constant 0 : index
    %c0_19 = arith.constant 0 : index
    %c0_20 = arith.constant 0 : index
    %33 = vector.load %arg6[%c0_16, %c0_17, %c0_18, %c0_19, %c0_20] : memref<1x4x2x8x16xf32, #tpu.memory_space<vmem>>, vector<1x4x2x8x16xf32>
    tpu.vector_store %arg6[%c0_16, %c0_17, %c0_18, %c0_19, %c0_20], %32 {strides = array<i32>} : memref<1x4x2x8x16xf32, #tpu.memory_space<vmem>>, vector<1x4x2x8x16xf32>,
    return
  }
  func.func @transform_0(%arg0: i32, %arg1: i32) -> (i32, i32, i32, i32, i32) {
    %c0_i32 = arith.constant 0 : i32
    %c0_i32_0 = arith.constant 0 : i32
    %c0_i32_1 = arith.constant 0 : i32
    %c0_i32_2 = arith.constant 0 : i32
    return %arg0, %arg1, %c0_i32, %c0_i32_0, %c0_i32_1 : i32, i32, i32, i32, i32
  }
  func.func @transform_1(%arg0: i32, %arg1: i32) -> (i32, i32, i32) {
    %c0_i32 = arith.constant 0 : i32
    %c0_i32_0 = arith.constant 0 : i32
    %c0_i32_1 = arith.constant 0 : i32
    %c0_i32_2 = arith.constant 0 : i32
    return %c0_i32, %c0_i32_0, %c0_i32_1 : i32, i32, i32
  }
  func.func @transform_2(%arg0: i32, %arg1: i32) -> (i32, i32) {
    %c0_i32 = arith.constant 0 : i32
    %c0_i32_0 = arith.constant 0 : i32
    %c0_i32_1 = arith.constant 0 : i32
    return %c0_i32, %c0_i32_0 : i32, i32
  }
  func.func @transform_3(%arg0: i32, %arg1: i32) -> (i32, i32) {
    %c0_i32 = arith.constant 0 : i32
    %c0_i32_0 = arith.constant 0 : i32
    %c0_i32_1 = arith.constant 0 : i32
    return %c0_i32, %c0_i32_0 : i32, i32
  }
  func.func @transform_4(%arg0: i32, %arg1: i32) -> (i32, i32, i32, i32, i32) {
    %c0_i32 = arith.constant 0 : i32
    %c0_i32_0 = arith.constant 0 : i32
    %c0_i32_1 = arith.constant 0 : i32
    %c0_i32_2 = arith.constant 0 : i32
    return %arg0, %arg1, %c0_i32, %c0_i32_0, %c0_i32_1 : i32, i32, i32, i32, i32
  }
}

module attributes {stable_mosaic.version = 11 : i64} {
  func.func @_ibn_deconv_kernel(%arg0: i32, %arg1: memref<1x64x4xbf16, #tpu.memory_space<vmem>>, %arg2: memref<2x2x4xf32, #tpu.memory_space<vmem>>, %arg3: memref<1x4xf32, #tpu.memory_space<vmem>>, %arg4: memref<1x4xf32, #tpu.memory_space<vmem>>, %arg5: memref<4x4x4x4xbf16, #tpu.memory_space<vmem>>, %arg6: memref<1x8x2x8x8xbf16, #tpu.memory_space<vmem>>, %arg7: memref<1x2x4xf32, #tpu.memory_space<vmem>>, %arg8: memref<10x10x4xbf16, #tpu.memory_space<vmem>>) attributes {dimension_semantics = [#tpu.dimension_semantics<parallel>], iteration_bounds = array<i64: 2>, scalar_prefetch = 0 : i64, scratch_operands = 1 : i64, tpu.core_type = #tpu.core_type<tc>, window_params = [{transform_indices = @transform_0, window_bounds = array<i64: 1, 64, 4>}, {pipeline_mode = #tpu.pipeline_mode<synchronous>, transform_indices = @transform_1, window_bounds = array<i64: 2, 2, 4>}, {pipeline_mode = #tpu.pipeline_mode<synchronous>, transform_indices = @transform_2, window_bounds = array<i64: 1, 4>}, {pipeline_mode = #tpu.pipeline_mode<synchronous>, transform_indices = @transform_3, window_bounds = array<i64: 1, 4>}, {pipeline_mode = #tpu.pipeline_mode<synchronous>, transform_indices = @transform_4, window_bounds = array<i64: 4, 4, 4, 4>}, {transform_indices = @transform_5, window_bounds = array<i64: 1, 8, 2, 8, 8>}, {transform_indices = @transform_6, window_bounds = array<i64: 1, 2, 4>}]} {
    %0 = arith.index_cast %arg0 : i32 to index
    %c0 = arith.constant 0 : index
    %c0_0 = arith.constant 0 : index
    %1 = vector.load %arg2[%0, %c0, %c0_0] : memref<2x2x4xf32, #tpu.memory_space<vmem>>, vector<1x2x4xf32>
    %2 = vector.shape_cast %1 : vector<1x2x4xf32> to vector<2x4xf32>
    %3 = vector.extract_strided_slice %2 {offsets = [0, 0], sizes = [1, 4], strides = [1, 1]} : vector<2x4xf32> to vector<1x4xf32>
    %cst = arith.constant 1.562500e-02 : f32
    %4 = vector.broadcast %cst : f32 to vector<1x4xf32>
    %5 = arith.mulf %3, %4 : vector<1x4xf32>
    %6 = vector.extract_strided_slice %2 {offsets = [1, 0], sizes = [1, 4], strides = [1, 1]} : vector<2x4xf32> to vector<1x4xf32>
    %cst_1 = arith.constant 1.562500e-02 : f32
    %7 = vector.broadcast %cst_1 : f32 to vector<1x4xf32>
    %8 = arith.mulf %6, %7 : vector<1x4xf32>
    %9 = arith.mulf %5, %5 : vector<1x4xf32>
    %10 = arith.subf %8, %9 : vector<1x4xf32>
    %cst_2 = arith.constant 0.000000e+00 : f32
    %11 = vector.broadcast %cst_2 : f32 to vector<1x4xf32>
    %12 = arith.maximumf %10, %11 : vector<1x4xf32>
    %c0_3 = arith.constant 0 : index
    %c0_4 = arith.constant 0 : index
    %c0_5 = arith.constant 0 : index
    %13 = vector.load %arg2[%c0_3, %c0_4, %c0_5] : memref<2x2x4xf32, #tpu.memory_space<vmem>>, vector<2x2x4xf32>
    %cst_6 = arith.constant dense<0.000000e+00> : vector<2x4xf32>
    %14 = vector.multi_reduction <add>, %13, %cst_6 [0] : vector<2x2x4xf32> to vector<2x4xf32>
    %15 = vector.extract_strided_slice %14 {offsets = [0, 0], sizes = [1, 4], strides = [1, 1]} : vector<2x4xf32> to vector<1x4xf32>
    %cst_7 = arith.constant 7.812500e-03 : f32
    %16 = vector.broadcast %cst_7 : f32 to vector<1x4xf32>
    %17 = arith.mulf %15, %16 : vector<1x4xf32>
    %18 = vector.extract_strided_slice %14 {offsets = [1, 0], sizes = [1, 4], strides = [1, 1]} : vector<2x4xf32> to vector<1x4xf32>
    %cst_8 = arith.constant 7.812500e-03 : f32
    %19 = vector.broadcast %cst_8 : f32 to vector<1x4xf32>
    %20 = arith.mulf %18, %19 : vector<1x4xf32>
    %21 = arith.mulf %17, %17 : vector<1x4xf32>
    %22 = arith.subf %20, %21 : vector<1x4xf32>
    %cst_9 = arith.constant 0.000000e+00 : f32
    %23 = vector.broadcast %cst_9 : f32 to vector<1x4xf32>
    %24 = arith.maximumf %22, %23 : vector<1x4xf32>
    %25 = tpu.iota {dimensions = array<i32: 1>} : vector<1x4xi32>
    %c2_i32 = arith.constant 2 : i32
    %26 = vector.broadcast %c2_i32 : i32 to vector<1x4xi32>
    %27 = arith.cmpi slt, %25, %26 : vector<1x4xi32>
    %28 = arith.select %27, %5, %17 : vector<1x4xi1>, vector<1x4xf32>
    %29 = arith.select %27, %12, %24 : vector<1x4xi1>, vector<1x4xf32>
    %c0_10 = arith.constant 0 : index
    %c0_11 = arith.constant 0 : index
    %30 = vector.load %arg3[%c0_10, %c0_11] : memref<1x4xf32, #tpu.memory_space<vmem>>, vector<1x4xf32>
    %cst_12 = arith.constant 9.99999974E-6 : f32
    %31 = vector.broadcast %cst_12 : f32 to vector<1x4xf32>
    %32 = arith.addf %29, %31 : vector<1x4xf32>
    %33 = math.rsqrt %32 : vector<1x4xf32>
    %34 = arith.mulf %30, %33 : vector<1x4xf32>
    %c0_13 = arith.constant 0 : index
    %c0_14 = arith.constant 0 : index
    %35 = vector.load %arg4[%c0_13, %c0_14] : memref<1x4xf32, #tpu.memory_space<vmem>>, vector<1x4xf32>
    %36 = arith.mulf %28, %34 : vector<1x4xf32>
    %37 = arith.subf %35, %36 : vector<1x4xf32>
    %c0_15 = arith.constant 0 : index
    %c0_16 = arith.constant 0 : index
    %c0_17 = arith.constant 0 : index
    %38 = vector.load %arg1[%c0_15, %c0_16, %c0_17] : memref<1x64x4xbf16, #tpu.memory_space<vmem>>, vector<1x64x4xbf16>
    %39 = vector.shape_cast %38 : vector<1x64x4xbf16> to vector<64x4xbf16>
    %40 = arith.extf %39 : vector<64x4xbf16> to vector<64x4xf32>
    %41 = vector.broadcast %34 : vector<1x4xf32> to vector<64x4xf32>
    %42 = arith.mulf %40, %41 : vector<64x4xf32>
    %43 = vector.broadcast %37 : vector<1x4xf32> to vector<64x4xf32>
    %44 = arith.addf %42, %43 : vector<64x4xf32>
    %cst_18 = arith.constant 0.000000e+00 : f32
    %45 = vector.broadcast %cst_18 : f32 to vector<64x4xf32>
    %46 = arith.maximumf %44, %45 : vector<64x4xf32>
    %cst_19 = arith.constant 0.000000e+00 : bf16
    %47 = vector.broadcast %cst_19 : bf16 to vector<1x10x4xbf16>
    %c0_20 = arith.constant 0 : index
    %c0_21 = arith.constant 0 : index
    %c0_22 = arith.constant 0 : index
    %48 = vector.load %arg8[%c0_20, %c0_21, %c0_22] : memref<10x10x4xbf16, #tpu.memory_space<vmem>>, vector<1x10x4xbf16>
    tpu.vector_store %arg8[%c0_20, %c0_21, %c0_22], %47 {strides = array<i32>} : memref<10x10x4xbf16, #tpu.memory_space<vmem>>, vector<1x10x4xbf16>,
    %cst_23 = arith.constant 0.000000e+00 : bf16
    %49 = vector.broadcast %cst_23 : bf16 to vector<1x10x4xbf16>
    %c9 = arith.constant 9 : index
    %c0_24 = arith.constant 0 : index
    %c0_25 = arith.constant 0 : index
    %50 = vector.load %arg8[%c9, %c0_24, %c0_25] : memref<10x10x4xbf16, #tpu.memory_space<vmem>>, vector<1x10x4xbf16>
    tpu.vector_store %arg8[%c9, %c0_24, %c0_25], %49 {strides = array<i32>} : memref<10x10x4xbf16, #tpu.memory_space<vmem>>, vector<1x10x4xbf16>,
    %cst_26 = arith.constant 0.000000e+00 : bf16
    %51 = vector.broadcast %cst_26 : bf16 to vector<8x1x4xbf16>
    %c1 = arith.constant 1 : index
    %c0_27 = arith.constant 0 : index
    %c0_28 = arith.constant 0 : index
    %52 = vector.load %arg8[%c1, %c0_27, %c0_28] : memref<10x10x4xbf16, #tpu.memory_space<vmem>>, vector<8x1x4xbf16>
    tpu.vector_store %arg8[%c1, %c0_27, %c0_28], %51 {strides = array<i32>} : memref<10x10x4xbf16, #tpu.memory_space<vmem>>, vector<8x1x4xbf16>,
    %cst_29 = arith.constant 0.000000e+00 : bf16
    %53 = vector.broadcast %cst_29 : bf16 to vector<8x1x4xbf16>
    %c1_30 = arith.constant 1 : index
    %c9_31 = arith.constant 9 : index
    %c0_32 = arith.constant 0 : index
    %54 = vector.load %arg8[%c1_30, %c9_31, %c0_32] : memref<10x10x4xbf16, #tpu.memory_space<vmem>>, vector<8x1x4xbf16>
    tpu.vector_store %arg8[%c1_30, %c9_31, %c0_32], %53 {strides = array<i32>} : memref<10x10x4xbf16, #tpu.memory_space<vmem>>, vector<8x1x4xbf16>,
    %55 = vector.shape_cast %46 : vector<64x4xf32> to vector<8x8x4xf32>
    %56 = arith.truncf %55 : vector<8x8x4xf32> to vector<8x8x4xbf16>
    %c1_33 = arith.constant 1 : index
    %c1_34 = arith.constant 1 : index
    %c0_35 = arith.constant 0 : index
    %57 = vector.load %arg8[%c1_33, %c1_34, %c0_35] : memref<10x10x4xbf16, #tpu.memory_space<vmem>>, vector<8x8x4xbf16>
    tpu.vector_store %arg8[%c1_33, %c1_34, %c0_35], %56 {strides = array<i32>} : memref<10x10x4xbf16, #tpu.memory_space<vmem>>, vector<8x8x4xbf16>,
    %cst_36 = arith.constant 0.000000e+00 : f32
    %58 = vector.broadcast %cst_36 : f32 to vector<1x4xf32>
    %cst_37 = arith.constant 0.000000e+00 : f32
    %59 = vector.broadcast %cst_37 : f32 to vector<1x4xf32>
    %cst_38 = arith.constant 0.000000e+00 : f32
    %60 = vector.broadcast %cst_38 : f32 to vector<64x4xf32>
    %c1_39 = arith.constant 1 : index
    %c1_40 = arith.constant 1 : index
    %c0_41 = arith.constant 0 : index
    %61 = vector.load %arg8[%c1_39, %c1_40, %c0_41] : memref<10x10x4xbf16, #tpu.memory_space<vmem>>, vector<8x8x4xbf16>
    %62 = vector.shape_cast %61 : vector<8x8x4xbf16> to vector<64x4xbf16>
    %c1_42 = arith.constant 1 : index
    %c1_43 = arith.constant 1 : index
    %c0_44 = arith.constant 0 : index
    %c0_45 = arith.constant 0 : index
    %63 = vector.load %arg5[%c1_42, %c1_43, %c0_44, %c0_45] : memref<4x4x4x4xbf16, #tpu.memory_space<vmem>>, vector<1x1x4x4xbf16>
    %64 = vector.shape_cast %63 : vector<1x1x4x4xbf16> to vector<4x4xbf16>
    %cst_46 = arith.constant dense<0.000000e+00> : vector<64x4xf32>
    %65 = tpu.matmul %62, %64, %cst_46 {dimension_numbers = #tpu.dot_dimension_numbers<[1], [0], [0], [1], [0, 0, 1, 1], [], []>} : vector<64x4xbf16>, vector<4x4xbf16>, vector<64x4xf32> -> vector<64x4xf32>
    %66 = arith.addf %60, %65 : vector<64x4xf32>
    %c1_47 = arith.constant 1 : index
    %c0_48 = arith.constant 0 : index
    %c0_49 = arith.constant 0 : index
    %67 = vector.load %arg8[%c1_47, %c0_48, %c0_49] : memref<10x10x4xbf16, #tpu.memory_space<vmem>>, vector<8x8x4xbf16>
    %68 = vector.shape_cast %67 : vector<8x8x4xbf16> to vector<64x4xbf16>
    %c1_50 = arith.constant 1 : index
    %c3 = arith.constant 3 : index
    %c0_51 = arith.constant 0 : index
    %c0_52 = arith.constant 0 : index
    %69 = vector.load %arg5[%c1_50, %c3, %c0_51, %c0_52] : memref<4x4x4x4xbf16, #tpu.memory_space<vmem>>, vector<1x1x4x4xbf16>
    %70 = vector.shape_cast %69 : vector<1x1x4x4xbf16> to vector<4x4xbf16>
    %cst_53 = arith.constant dense<0.000000e+00> : vector<64x4xf32>
    %71 = tpu.matmul %68, %70, %cst_53 {dimension_numbers = #tpu.dot_dimension_numbers<[1], [0], [0], [1], [0, 0, 1, 1], [], []>} : vector<64x4xbf16>, vector<4x4xbf16>, vector<64x4xf32> -> vector<64x4xf32>
    %72 = arith.addf %66, %71 : vector<64x4xf32>
    %c0_54 = arith.constant 0 : index
    %c1_55 = arith.constant 1 : index
    %c0_56 = arith.constant 0 : index
    %73 = vector.load %arg8[%c0_54, %c1_55, %c0_56] : memref<10x10x4xbf16, #tpu.memory_space<vmem>>, vector<8x8x4xbf16>
    %74 = vector.shape_cast %73 : vector<8x8x4xbf16> to vector<64x4xbf16>
    %c3_57 = arith.constant 3 : index
    %c1_58 = arith.constant 1 : index
    %c0_59 = arith.constant 0 : index
    %c0_60 = arith.constant 0 : index
    %75 = vector.load %arg5[%c3_57, %c1_58, %c0_59, %c0_60] : memref<4x4x4x4xbf16, #tpu.memory_space<vmem>>, vector<1x1x4x4xbf16>
    %76 = vector.shape_cast %75 : vector<1x1x4x4xbf16> to vector<4x4xbf16>
    %cst_61 = arith.constant dense<0.000000e+00> : vector<64x4xf32>
    %77 = tpu.matmul %74, %76, %cst_61 {dimension_numbers = #tpu.dot_dimension_numbers<[1], [0], [0], [1], [0, 0, 1, 1], [], []>} : vector<64x4xbf16>, vector<4x4xbf16>, vector<64x4xf32> -> vector<64x4xf32>
    %78 = arith.addf %72, %77 : vector<64x4xf32>
    %c0_62 = arith.constant 0 : index
    %c0_63 = arith.constant 0 : index
    %c0_64 = arith.constant 0 : index
    %79 = vector.load %arg8[%c0_62, %c0_63, %c0_64] : memref<10x10x4xbf16, #tpu.memory_space<vmem>>, vector<8x8x4xbf16>
    %80 = vector.shape_cast %79 : vector<8x8x4xbf16> to vector<64x4xbf16>
    %c3_65 = arith.constant 3 : index
    %c3_66 = arith.constant 3 : index
    %c0_67 = arith.constant 0 : index
    %c0_68 = arith.constant 0 : index
    %81 = vector.load %arg5[%c3_65, %c3_66, %c0_67, %c0_68] : memref<4x4x4x4xbf16, #tpu.memory_space<vmem>>, vector<1x1x4x4xbf16>
    %82 = vector.shape_cast %81 : vector<1x1x4x4xbf16> to vector<4x4xbf16>
    %cst_69 = arith.constant dense<0.000000e+00> : vector<64x4xf32>
    %83 = tpu.matmul %80, %82, %cst_69 {dimension_numbers = #tpu.dot_dimension_numbers<[1], [0], [0], [1], [0, 0, 1, 1], [], []>} : vector<64x4xbf16>, vector<4x4xbf16>, vector<64x4xf32> -> vector<64x4xf32>
    %84 = arith.addf %78, %83 : vector<64x4xf32>
    %cst_70 = arith.constant dense<0.000000e+00> : vector<4xf32>
    %85 = vector.multi_reduction <add>, %84, %cst_70 [0] : vector<64x4xf32> to vector<4xf32>
    %86 = vector.shape_cast %85 : vector<4xf32> to vector<1x4xf32>
    %87 = arith.addf %58, %86 : vector<1x4xf32>
    %88 = arith.mulf %84, %84 : vector<64x4xf32>
    %cst_71 = arith.constant dense<0.000000e+00> : vector<4xf32>
    %89 = vector.multi_reduction <add>, %88, %cst_71 [0] : vector<64x4xf32> to vector<4xf32>
    %90 = vector.shape_cast %89 : vector<4xf32> to vector<1x4xf32>
    %91 = arith.addf %59, %90 : vector<1x4xf32>
    %92 = arith.truncf %84 : vector<64x4xf32> to vector<64x4xbf16>
    %cst_72 = arith.constant 0.000000e+00 : f32
    %93 = vector.broadcast %cst_72 : f32 to vector<64x4xf32>
    %c1_73 = arith.constant 1 : index
    %c2 = arith.constant 2 : index
    %c0_74 = arith.constant 0 : index
    %94 = vector.load %arg8[%c1_73, %c2, %c0_74] : memref<10x10x4xbf16, #tpu.memory_space<vmem>>, vector<8x8x4xbf16>
    %95 = vector.shape_cast %94 : vector<8x8x4xbf16> to vector<64x4xbf16>
    %c1_75 = arith.constant 1 : index
    %c0_76 = arith.constant 0 : index
    %c0_77 = arith.constant 0 : index
    %c0_78 = arith.constant 0 : index
    %96 = vector.load %arg5[%c1_75, %c0_76, %c0_77, %c0_78] : memref<4x4x4x4xbf16, #tpu.memory_space<vmem>>, vector<1x1x4x4xbf16>
    %97 = vector.shape_cast %96 : vector<1x1x4x4xbf16> to vector<4x4xbf16>
    %cst_79 = arith.constant dense<0.000000e+00> : vector<64x4xf32>
    %98 = tpu.matmul %95, %97, %cst_79 {dimension_numbers = #tpu.dot_dimension_numbers<[1], [0], [0], [1], [0, 0, 1, 1], [], []>} : vector<64x4xbf16>, vector<4x4xbf16>, vector<64x4xf32> -> vector<64x4xf32>
    %99 = arith.addf %93, %98 : vector<64x4xf32>
    %c1_80 = arith.constant 1 : index
    %c1_81 = arith.constant 1 : index
    %c0_82 = arith.constant 0 : index
    %100 = vector.load %arg8[%c1_80, %c1_81, %c0_82] : memref<10x10x4xbf16, #tpu.memory_space<vmem>>, vector<8x8x4xbf16>
    %101 = vector.shape_cast %100 : vector<8x8x4xbf16> to vector<64x4xbf16>
    %c1_83 = arith.constant 1 : index
    %c2_84 = arith.constant 2 : index
    %c0_85 = arith.constant 0 : index
    %c0_86 = arith.constant 0 : index
    %102 = vector.load %arg5[%c1_83, %c2_84, %c0_85, %c0_86] : memref<4x4x4x4xbf16, #tpu.memory_space<vmem>>, vector<1x1x4x4xbf16>
    %103 = vector.shape_cast %102 : vector<1x1x4x4xbf16> to vector<4x4xbf16>
    %cst_87 = arith.constant dense<0.000000e+00> : vector<64x4xf32>
    %104 = tpu.matmul %101, %103, %cst_87 {dimension_numbers = #tpu.dot_dimension_numbers<[1], [0], [0], [1], [0, 0, 1, 1], [], []>} : vector<64x4xbf16>, vector<4x4xbf16>, vector<64x4xf32> -> vector<64x4xf32>
    %105 = arith.addf %99, %104 : vector<64x4xf32>
    %c0_88 = arith.constant 0 : index
    %c2_89 = arith.constant 2 : index
    %c0_90 = arith.constant 0 : index
    %106 = vector.load %arg8[%c0_88, %c2_89, %c0_90] : memref<10x10x4xbf16, #tpu.memory_space<vmem>>, vector<8x8x4xbf16>
    %107 = vector.shape_cast %106 : vector<8x8x4xbf16> to vector<64x4xbf16>
    %c3_91 = arith.constant 3 : index
    %c0_92 = arith.constant 0 : index
    %c0_93 = arith.constant 0 : index
    %c0_94 = arith.constant 0 : index
    %108 = vector.load %arg5[%c3_91, %c0_92, %c0_93, %c0_94] : memref<4x4x4x4xbf16, #tpu.memory_space<vmem>>, vector<1x1x4x4xbf16>
    %109 = vector.shape_cast %108 : vector<1x1x4x4xbf16> to vector<4x4xbf16>
    %cst_95 = arith.constant dense<0.000000e+00> : vector<64x4xf32>
    %110 = tpu.matmul %107, %109, %cst_95 {dimension_numbers = #tpu.dot_dimension_numbers<[1], [0], [0], [1], [0, 0, 1, 1], [], []>} : vector<64x4xbf16>, vector<4x4xbf16>, vector<64x4xf32> -> vector<64x4xf32>
    %111 = arith.addf %105, %110 : vector<64x4xf32>
    %c0_96 = arith.constant 0 : index
    %c1_97 = arith.constant 1 : index
    %c0_98 = arith.constant 0 : index
    %112 = vector.load %arg8[%c0_96, %c1_97, %c0_98] : memref<10x10x4xbf16, #tpu.memory_space<vmem>>, vector<8x8x4xbf16>
    %113 = vector.shape_cast %112 : vector<8x8x4xbf16> to vector<64x4xbf16>
    %c3_99 = arith.constant 3 : index
    %c2_100 = arith.constant 2 : index
    %c0_101 = arith.constant 0 : index
    %c0_102 = arith.constant 0 : index
    %114 = vector.load %arg5[%c3_99, %c2_100, %c0_101, %c0_102] : memref<4x4x4x4xbf16, #tpu.memory_space<vmem>>, vector<1x1x4x4xbf16>
    %115 = vector.shape_cast %114 : vector<1x1x4x4xbf16> to vector<4x4xbf16>
    %cst_103 = arith.constant dense<0.000000e+00> : vector<64x4xf32>
    %116 = tpu.matmul %113, %115, %cst_103 {dimension_numbers = #tpu.dot_dimension_numbers<[1], [0], [0], [1], [0, 0, 1, 1], [], []>} : vector<64x4xbf16>, vector<4x4xbf16>, vector<64x4xf32> -> vector<64x4xf32>
    %117 = arith.addf %111, %116 : vector<64x4xf32>
    %cst_104 = arith.constant dense<0.000000e+00> : vector<4xf32>
    %118 = vector.multi_reduction <add>, %117, %cst_104 [0] : vector<64x4xf32> to vector<4xf32>
    %119 = vector.shape_cast %118 : vector<4xf32> to vector<1x4xf32>
    %120 = arith.addf %87, %119 : vector<1x4xf32>
    %121 = arith.mulf %117, %117 : vector<64x4xf32>
    %cst_105 = arith.constant dense<0.000000e+00> : vector<4xf32>
    %122 = vector.multi_reduction <add>, %121, %cst_105 [0] : vector<64x4xf32> to vector<4xf32>
    %123 = vector.shape_cast %122 : vector<4xf32> to vector<1x4xf32>
    %124 = arith.addf %91, %123 : vector<1x4xf32>
    %125 = arith.truncf %117 : vector<64x4xf32> to vector<64x4xbf16>
    %126 = tpu.concatenate %92, %125 in 1 : vector<64x4xbf16>, vector<64x4xbf16> -> vector<64x8xbf16>
    %127 = vector.shape_cast %126 : vector<64x8xbf16> to vector<1x8x1x8x8xbf16>
    %c0_106 = arith.constant 0 : index
    %c0_107 = arith.constant 0 : index
    %c0_108 = arith.constant 0 : index
    %c0_109 = arith.constant 0 : index
    %c0_110 = arith.constant 0 : index
    %128 = vector.load %arg6[%c0_106, %c0_107, %c0_108, %c0_109, %c0_110] : memref<1x8x2x8x8xbf16, #tpu.memory_space<vmem>>, vector<1x8x1x8x8xbf16>
    tpu.vector_store %arg6[%c0_106, %c0_107, %c0_108, %c0_109, %c0_110], %127 {strides = array<i32>} : memref<1x8x2x8x8xbf16, #tpu.memory_space<vmem>>, vector<1x8x1x8x8xbf16>,
    %cst_111 = arith.constant 0.000000e+00 : f32
    %129 = vector.broadcast %cst_111 : f32 to vector<64x4xf32>
    %c2_112 = arith.constant 2 : index
    %c1_113 = arith.constant 1 : index
    %c0_114 = arith.constant 0 : index
    %130 = vector.load %arg8[%c2_112, %c1_113, %c0_114] : memref<10x10x4xbf16, #tpu.memory_space<vmem>>, vector<8x8x4xbf16>
    %131 = vector.shape_cast %130 : vector<8x8x4xbf16> to vector<64x4xbf16>
    %c0_115 = arith.constant 0 : index
    %c1_116 = arith.constant 1 : index
    %c0_117 = arith.constant 0 : index
    %c0_118 = arith.constant 0 : index
    %132 = vector.load %arg5[%c0_115, %c1_116, %c0_117, %c0_118] : memref<4x4x4x4xbf16, #tpu.memory_space<vmem>>, vector<1x1x4x4xbf16>
    %133 = vector.shape_cast %132 : vector<1x1x4x4xbf16> to vector<4x4xbf16>
    %cst_119 = arith.constant dense<0.000000e+00> : vector<64x4xf32>
    %134 = tpu.matmul %131, %133, %cst_119 {dimension_numbers = #tpu.dot_dimension_numbers<[1], [0], [0], [1], [0, 0, 1, 1], [], []>} : vector<64x4xbf16>, vector<4x4xbf16>, vector<64x4xf32> -> vector<64x4xf32>
    %135 = arith.addf %129, %134 : vector<64x4xf32>
    %c2_120 = arith.constant 2 : index
    %c0_121 = arith.constant 0 : index
    %c0_122 = arith.constant 0 : index
    %136 = vector.load %arg8[%c2_120, %c0_121, %c0_122] : memref<10x10x4xbf16, #tpu.memory_space<vmem>>, vector<8x8x4xbf16>
    %137 = vector.shape_cast %136 : vector<8x8x4xbf16> to vector<64x4xbf16>
    %c0_123 = arith.constant 0 : index
    %c3_124 = arith.constant 3 : index
    %c0_125 = arith.constant 0 : index
    %c0_126 = arith.constant 0 : index
    %138 = vector.load %arg5[%c0_123, %c3_124, %c0_125, %c0_126] : memref<4x4x4x4xbf16, #tpu.memory_space<vmem>>, vector<1x1x4x4xbf16>
    %139 = vector.shape_cast %138 : vector<1x1x4x4xbf16> to vector<4x4xbf16>
    %cst_127 = arith.constant dense<0.000000e+00> : vector<64x4xf32>
    %140 = tpu.matmul %137, %139, %cst_127 {dimension_numbers = #tpu.dot_dimension_numbers<[1], [0], [0], [1], [0, 0, 1, 1], [], []>} : vector<64x4xbf16>, vector<4x4xbf16>, vector<64x4xf32> -> vector<64x4xf32>
    %141 = arith.addf %135, %140 : vector<64x4xf32>
    %c1_128 = arith.constant 1 : index
    %c1_129 = arith.constant 1 : index
    %c0_130 = arith.constant 0 : index
    %142 = vector.load %arg8[%c1_128, %c1_129, %c0_130] : memref<10x10x4xbf16, #tpu.memory_space<vmem>>, vector<8x8x4xbf16>
    %143 = vector.shape_cast %142 : vector<8x8x4xbf16> to vector<64x4xbf16>
    %c2_131 = arith.constant 2 : index
    %c1_132 = arith.constant 1 : index
    %c0_133 = arith.constant 0 : index
    %c0_134 = arith.constant 0 : index
    %144 = vector.load %arg5[%c2_131, %c1_132, %c0_133, %c0_134] : memref<4x4x4x4xbf16, #tpu.memory_space<vmem>>, vector<1x1x4x4xbf16>
    %145 = vector.shape_cast %144 : vector<1x1x4x4xbf16> to vector<4x4xbf16>
    %cst_135 = arith.constant dense<0.000000e+00> : vector<64x4xf32>
    %146 = tpu.matmul %143, %145, %cst_135 {dimension_numbers = #tpu.dot_dimension_numbers<[1], [0], [0], [1], [0, 0, 1, 1], [], []>} : vector<64x4xbf16>, vector<4x4xbf16>, vector<64x4xf32> -> vector<64x4xf32>
    %147 = arith.addf %141, %146 : vector<64x4xf32>
    %c1_136 = arith.constant 1 : index
    %c0_137 = arith.constant 0 : index
    %c0_138 = arith.constant 0 : index
    %148 = vector.load %arg8[%c1_136, %c0_137, %c0_138] : memref<10x10x4xbf16, #tpu.memory_space<vmem>>, vector<8x8x4xbf16>
    %149 = vector.shape_cast %148 : vector<8x8x4xbf16> to vector<64x4xbf16>
    %c2_139 = arith.constant 2 : index
    %c3_140 = arith.constant 3 : index
    %c0_141 = arith.constant 0 : index
    %c0_142 = arith.constant 0 : index
    %150 = vector.load %arg5[%c2_139, %c3_140, %c0_141, %c0_142] : memref<4x4x4x4xbf16, #tpu.memory_space<vmem>>, vector<1x1x4x4xbf16>
    %151 = vector.shape_cast %150 : vector<1x1x4x4xbf16> to vector<4x4xbf16>
    %cst_143 = arith.constant dense<0.000000e+00> : vector<64x4xf32>
    %152 = tpu.matmul %149, %151, %cst_143 {dimension_numbers = #tpu.dot_dimension_numbers<[1], [0], [0], [1], [0, 0, 1, 1], [], []>} : vector<64x4xbf16>, vector<4x4xbf16>, vector<64x4xf32> -> vector<64x4xf32>
    %153 = arith.addf %147, %152 : vector<64x4xf32>
    %cst_144 = arith.constant dense<0.000000e+00> : vector<4xf32>
    %154 = vector.multi_reduction <add>, %153, %cst_144 [0] : vector<64x4xf32> to vector<4xf32>
    %155 = vector.shape_cast %154 : vector<4xf32> to vector<1x4xf32>
    %156 = arith.addf %120, %155 : vector<1x4xf32>
    %157 = arith.mulf %153, %153 : vector<64x4xf32>
    %cst_145 = arith.constant dense<0.000000e+00> : vector<4xf32>
    %158 = vector.multi_reduction <add>, %157, %cst_145 [0] : vector<64x4xf32> to vector<4xf32>
    %159 = vector.shape_cast %158 : vector<4xf32> to vector<1x4xf32>
    %160 = arith.addf %124, %159 : vector<1x4xf32>
    %161 = arith.truncf %153 : vector<64x4xf32> to vector<64x4xbf16>
    %cst_146 = arith.constant 0.000000e+00 : f32
    %162 = vector.broadcast %cst_146 : f32 to vector<64x4xf32>
    %c2_147 = arith.constant 2 : index
    %c2_148 = arith.constant 2 : index
    %c0_149 = arith.constant 0 : index
    %163 = vector.load %arg8[%c2_147, %c2_148, %c0_149] : memref<10x10x4xbf16, #tpu.memory_space<vmem>>, vector<8x8x4xbf16>
    %164 = vector.shape_cast %163 : vector<8x8x4xbf16> to vector<64x4xbf16>
    %c0_150 = arith.constant 0 : index
    %c0_151 = arith.constant 0 : index
    %c0_152 = arith.constant 0 : index
    %c0_153 = arith.constant 0 : index
    %165 = vector.load %arg5[%c0_150, %c0_151, %c0_152, %c0_153] : memref<4x4x4x4xbf16, #tpu.memory_space<vmem>>, vector<1x1x4x4xbf16>
    %166 = vector.shape_cast %165 : vector<1x1x4x4xbf16> to vector<4x4xbf16>
    %cst_154 = arith.constant dense<0.000000e+00> : vector<64x4xf32>
    %167 = tpu.matmul %164, %166, %cst_154 {dimension_numbers = #tpu.dot_dimension_numbers<[1], [0], [0], [1], [0, 0, 1, 1], [], []>} : vector<64x4xbf16>, vector<4x4xbf16>, vector<64x4xf32> -> vector<64x4xf32>
    %168 = arith.addf %162, %167 : vector<64x4xf32>
    %c2_155 = arith.constant 2 : index
    %c1_156 = arith.constant 1 : index
    %c0_157 = arith.constant 0 : index
    %169 = vector.load %arg8[%c2_155, %c1_156, %c0_157] : memref<10x10x4xbf16, #tpu.memory_space<vmem>>, vector<8x8x4xbf16>
    %170 = vector.shape_cast %169 : vector<8x8x4xbf16> to vector<64x4xbf16>
    %c0_158 = arith.constant 0 : index
    %c2_159 = arith.constant 2 : index
    %c0_160 = arith.constant 0 : index
    %c0_161 = arith.constant 0 : index
    %171 = vector.load %arg5[%c0_158, %c2_159, %c0_160, %c0_161] : memref<4x4x4x4xbf16, #tpu.memory_space<vmem>>, vector<1x1x4x4xbf16>
    %172 = vector.shape_cast %171 : vector<1x1x4x4xbf16> to vector<4x4xbf16>
    %cst_162 = arith.constant dense<0.000000e+00> : vector<64x4xf32>
    %173 = tpu.matmul %170, %172, %cst_162 {dimension_numbers = #tpu.dot_dimension_numbers<[1], [0], [0], [1], [0, 0, 1, 1], [], []>} : vector<64x4xbf16>, vector<4x4xbf16>, vector<64x4xf32> -> vector<64x4xf32>
    %174 = arith.addf %168, %173 : vector<64x4xf32>
    %c1_163 = arith.constant 1 : index
    %c2_164 = arith.constant 2 : index
    %c0_165 = arith.constant 0 : index
    %175 = vector.load %arg8[%c1_163, %c2_164, %c0_165] : memref<10x10x4xbf16, #tpu.memory_space<vmem>>, vector<8x8x4xbf16>
    %176 = vector.shape_cast %175 : vector<8x8x4xbf16> to vector<64x4xbf16>
    %c2_166 = arith.constant 2 : index
    %c0_167 = arith.constant 0 : index
    %c0_168 = arith.constant 0 : index
    %c0_169 = arith.constant 0 : index
    %177 = vector.load %arg5[%c2_166, %c0_167, %c0_168, %c0_169] : memref<4x4x4x4xbf16, #tpu.memory_space<vmem>>, vector<1x1x4x4xbf16>
    %178 = vector.shape_cast %177 : vector<1x1x4x4xbf16> to vector<4x4xbf16>
    %cst_170 = arith.constant dense<0.000000e+00> : vector<64x4xf32>
    %179 = tpu.matmul %176, %178, %cst_170 {dimension_numbers = #tpu.dot_dimension_numbers<[1], [0], [0], [1], [0, 0, 1, 1], [], []>} : vector<64x4xbf16>, vector<4x4xbf16>, vector<64x4xf32> -> vector<64x4xf32>
    %180 = arith.addf %174, %179 : vector<64x4xf32>
    %c1_171 = arith.constant 1 : index
    %c1_172 = arith.constant 1 : index
    %c0_173 = arith.constant 0 : index
    %181 = vector.load %arg8[%c1_171, %c1_172, %c0_173] : memref<10x10x4xbf16, #tpu.memory_space<vmem>>, vector<8x8x4xbf16>
    %182 = vector.shape_cast %181 : vector<8x8x4xbf16> to vector<64x4xbf16>
    %c2_174 = arith.constant 2 : index
    %c2_175 = arith.constant 2 : index
    %c0_176 = arith.constant 0 : index
    %c0_177 = arith.constant 0 : index
    %183 = vector.load %arg5[%c2_174, %c2_175, %c0_176, %c0_177] : memref<4x4x4x4xbf16, #tpu.memory_space<vmem>>, vector<1x1x4x4xbf16>
    %184 = vector.shape_cast %183 : vector<1x1x4x4xbf16> to vector<4x4xbf16>
    %cst_178 = arith.constant dense<0.000000e+00> : vector<64x4xf32>
    %185 = tpu.matmul %182, %184, %cst_178 {dimension_numbers = #tpu.dot_dimension_numbers<[1], [0], [0], [1], [0, 0, 1, 1], [], []>} : vector<64x4xbf16>, vector<4x4xbf16>, vector<64x4xf32> -> vector<64x4xf32>
    %186 = arith.addf %180, %185 : vector<64x4xf32>
    %cst_179 = arith.constant dense<0.000000e+00> : vector<4xf32>
    %187 = vector.multi_reduction <add>, %186, %cst_179 [0] : vector<64x4xf32> to vector<4xf32>
    %188 = vector.shape_cast %187 : vector<4xf32> to vector<1x4xf32>
    %189 = arith.addf %156, %188 : vector<1x4xf32>
    %190 = arith.mulf %186, %186 : vector<64x4xf32>
    %cst_180 = arith.constant dense<0.000000e+00> : vector<4xf32>
    %191 = vector.multi_reduction <add>, %190, %cst_180 [0] : vector<64x4xf32> to vector<4xf32>
    %192 = vector.shape_cast %191 : vector<4xf32> to vector<1x4xf32>
    %193 = arith.addf %160, %192 : vector<1x4xf32>
    %194 = arith.truncf %186 : vector<64x4xf32> to vector<64x4xbf16>
    %195 = tpu.concatenate %161, %194 in 1 : vector<64x4xbf16>, vector<64x4xbf16> -> vector<64x8xbf16>
    %196 = vector.shape_cast %195 : vector<64x8xbf16> to vector<1x8x1x8x8xbf16>
    %c0_181 = arith.constant 0 : index
    %c0_182 = arith.constant 0 : index
    %c1_183 = arith.constant 1 : index
    %c0_184 = arith.constant 0 : index
    %c0_185 = arith.constant 0 : index
    %197 = vector.load %arg6[%c0_181, %c0_182, %c1_183, %c0_184, %c0_185] : memref<1x8x2x8x8xbf16, #tpu.memory_space<vmem>>, vector<1x8x1x8x8xbf16>
    tpu.vector_store %arg6[%c0_181, %c0_182, %c1_183, %c0_184, %c0_185], %196 {strides = array<i32>} : memref<1x8x2x8x8xbf16, #tpu.memory_space<vmem>>, vector<1x8x1x8x8xbf16>,
    %198 = tpu.concatenate %189, %193 in 0 : vector<1x4xf32>, vector<1x4xf32> -> vector<2x4xf32>
    %199 = vector.shape_cast %198 : vector<2x4xf32> to vector<1x2x4xf32>
    %c0_186 = arith.constant 0 : index
    %c0_187 = arith.constant 0 : index
    %c0_188 = arith.constant 0 : index
    %200 = vector.load %arg7[%c0_186, %c0_187, %c0_188] : memref<1x2x4xf32, #tpu.memory_space<vmem>>, vector<1x2x4xf32>
    tpu.vector_store %arg7[%c0_186, %c0_187, %c0_188], %199 {strides = array<i32>} : memref<1x2x4xf32, #tpu.memory_space<vmem>>, vector<1x2x4xf32>,
    return
  }
  func.func @transform_0(%arg0: i32) -> (i32, i32, i32) {
    %c0_i32 = arith.constant 0 : i32
    %c0_i32_0 = arith.constant 0 : i32
    %c0_i32_1 = arith.constant 0 : i32
    return %arg0, %c0_i32, %c0_i32_0 : i32, i32, i32
  }
  func.func @transform_1(%arg0: i32) -> (i32, i32, i32) {
    %c0_i32 = arith.constant 0 : i32
    %c0_i32_0 = arith.constant 0 : i32
    %c0_i32_1 = arith.constant 0 : i32
    %c0_i32_2 = arith.constant 0 : i32
    return %c0_i32, %c0_i32_0, %c0_i32_1 : i32, i32, i32
  }
  func.func @transform_2(%arg0: i32) -> (i32, i32) {
    %c0_i32 = arith.constant 0 : i32
    %c0_i32_0 = arith.constant 0 : i32
    %c0_i32_1 = arith.constant 0 : i32
    return %c0_i32, %c0_i32_0 : i32, i32
  }
  func.func @transform_3(%arg0: i32) -> (i32, i32) {
    %c0_i32 = arith.constant 0 : i32
    %c0_i32_0 = arith.constant 0 : i32
    %c0_i32_1 = arith.constant 0 : i32
    return %c0_i32, %c0_i32_0 : i32, i32
  }
  func.func @transform_4(%arg0: i32) -> (i32, i32, i32, i32) {
    %c0_i32 = arith.constant 0 : i32
    %c0_i32_0 = arith.constant 0 : i32
    %c0_i32_1 = arith.constant 0 : i32
    %c0_i32_2 = arith.constant 0 : i32
    %c0_i32_3 = arith.constant 0 : i32
    return %c0_i32, %c0_i32_0, %c0_i32_1, %c0_i32_2 : i32, i32, i32, i32
  }
  func.func @transform_5(%arg0: i32) -> (i32, i32, i32, i32, i32) {
    %c0_i32 = arith.constant 0 : i32
    %c0_i32_0 = arith.constant 0 : i32
    %c0_i32_1 = arith.constant 0 : i32
    %c0_i32_2 = arith.constant 0 : i32
    %c0_i32_3 = arith.constant 0 : i32
    return %arg0, %c0_i32, %c0_i32_0, %c0_i32_1, %c0_i32_2 : i32, i32, i32, i32, i32
  }
  func.func @transform_6(%arg0: i32) -> (i32, i32, i32) {
    %c0_i32 = arith.constant 0 : i32
    %c0_i32_0 = arith.constant 0 : i32
    %c0_i32_1 = arith.constant 0 : i32
    return %arg0, %c0_i32, %c0_i32_0 : i32, i32, i32
  }
}

</mosaic_0001>

<llo_original>
// kernel: improved_ibn_a_decoder_block.7
$region0: #{improved_ibn_a_decoder_block.7}
  #allocation0 [shape = 'u32[]', space=smem, size = 0x4, offset = 0x4, fixed_abs, tag = 'smem constant byte address 0x4 - core index']
  #allocation1 [shape = 'u32[144,128]{1,0:T(1,128)}', space=vmem, size = 0x12000, scoped, tag = 'internal scratch']
  %s0 = inlined_call_operand.vmem [shape: bf16[2,8,2,8,16], index: 0, kind: input, shape index: {}]
  %s1 = inlined_call_operand.vmem [shape: f32[4,2,8], index: 1, kind: input, shape index: {}]
  %s2 = inlined_call_operand.vmem [shape: f32[1,8], index: 2, kind: input, shape index: {}]
  %s3 = inlined_call_operand.vmem [shape: f32[1,8], index: 3, kind: input, shape index: {}]
  %s4 = inlined_call_operand.vmem [shape: f32[2,8,2,8,16], index: 4, kind: output, shape index: {}]
  %s5 = sld [smem:[#allocation0]]
  $region49: #{improved_ibn_a_decoder_block.7} parent=0
    _
  %s7 = ssub.s32 1, %s5
  %s8 = scalar_select 0, %s7, %s5
  loop: start=0, step=1, limit=6
  $region2: #{improved_ibn_a_decoder_block.7} parent=0 // loop_pre_header
    _
  $region3: #{improved_ibn_a_decoder_block.7} parent=0 // loop_header
    %s10 = sphi 0, %s14
    %p11 = scmp.ge.s32.totalorder %s10, 6
    %s17 = sphi 0, %s29
    %s18 = sphi 0, %s25
    %s19 = sphi 0, %s17
    %s20 = sphi 0, %s18
    %s21 = sphi 0, %s19
    %s22 = sphi 0, %s20
    %s34 = sphi 0, %s36
    %s37 = sphi 0, %s34
    %s38 = sphi 0, %s37
    %s54 = sphi 0, %s38
    %s58 = sphi 0, %s58
    %s60 = sphi 0, %s58
    %s61 = sphi 0, %s60
    %s75 = sphi 0, %s61
    %s79 = sphi 0, %s79
    %s81 = sphi 0, %s79
    %s82 = sphi 0, %s81
    %s96 = sphi 0, %s82
    %s100 = sphi 0, %s100
    %s102 = sphi 0, %s100
    %s103 = sphi 0, %s102
    %s117 = sphi 0, %s103
    %s125 = sphi 0, %s127
    %s128 = sphi 0, %s125
    %s129 = sphi 0, %s128
    %s145 = sphi 0, %s129
  $region4: #{improved_ibn_a_decoder_block.7} parent=0 // loop_header_branch
    %13 = sbr.rel (%p11) target = $region8
  $region5: #{improved_ibn_a_decoder_block.7} parent=0 // loop_body
    %s15 = ssub.s32 %s10, 1
    %s16 = ssub.s32 %s10, 2
    %s23 = sadd.s32 1, %s18
    %p24 = scmp.ge.s32.totalorder %s23, 2
    %s25 = scalar_select %p24, 0, %s23
    %s26 = sadd.s32 1, %s17
    %s27 = scalar_select %p24, %s26, %s17
    %p28 = scmp.ge.s32.totalorder %s27, 2
    %s29 = scalar_select %p28, 0, %s27
    %s30 = ssub.s32 %s17, %s29
    %s31 = ssub.s32 %s18, %s25
    %s32 = sor.u32 %s30, %s31
    %p33 = scmp.eq.s32.totalorder %s32, 0
    %s35 = sadd.s32 %s34, 1
    %s36 = scalar_select %p33, %s34, %s35
    %p39 = pneg %p33
    %p40 = scmp.eq.s32.totalorder %s10, 3
    %p41 = por %p39, %p40
    %p42 = scmp.ne.s32.totalorder %s34, %s37
    %p43 = scmp.eq.s32.totalorder %s10, 0
    %p44 = por %p42, %p43
    %p45 = scmp.ne.s32.totalorder %s34, %s37
    %p46 = scmp.eq.s32.totalorder %s15, 3
    %p47 = por %p45, %p46
    %p48 = scmp.ne.s32.totalorder %s37, %s38
    %p49 = scmp.eq.s32.totalorder %s15, 0
    %p50 = por %p48, %p49
    %p51 = scmp.ne.s32.totalorder %s37, %s38
    %p52 = scmp.eq.s32.totalorder %s16, 3
    %p53 = por %p51, %p52
    %p55 = scmp.ne.s32.totalorder %s38, %s54
    %p56 = scmp.eq.s32.totalorder %s16, 0
    %p57 = por %p55, %p56
    %s59 = sadd.s32 %s58, 1
    %p62 = scmp.eq.s32.totalorder %s10, 3
    %p63 = scmp.ne.s32.totalorder %s58, %s60
    %p64 = scmp.eq.s32.totalorder %s10, 0
    %p65 = por %p63, %p64
    %p66 = scmp.ne.s32.totalorder %s58, %s60
    %p67 = scmp.eq.s32.totalorder %s15, 3
    %p68 = por %p66, %p67
    %p69 = scmp.ne.s32.totalorder %s60, %s61
    %p70 = scmp.eq.s32.totalorder %s15, 0
    %p71 = por %p69, %p70
    %p72 = scmp.ne.s32.totalorder %s60, %s61
    %p73 = scmp.eq.s32.totalorder %s16, 3
    %p74 = por %p72, %p73
    %p76 = scmp.ne.s32.totalorder %s61, %s75
    %p77 = scmp.eq.s32.totalorder %s16, 0
    %p78 = por %p76, %p77
    %s80 = sadd.s32 %s79, 1
    %p83 = scmp.eq.s32.totalorder %s10, 3
    %p84 = scmp.ne.s32.totalorder %s79, %s81
    %p85 = scmp.eq.s32.totalorder %s10, 0
    %p86 = por %p84, %p85
    %p87 = scmp.ne.s32.totalorder %s79, %s81
    %p88 = scmp.eq.s32.totalorder %s15, 3
    %p89 = por %p87, %p88
    %p90 = scmp.ne.s32.totalorder %s81, %s82
    %p91 = scmp.eq.s32.totalorder %s15, 0
    %p92 = por %p90, %p91
    %p93 = scmp.ne.s32.totalorder %s81, %s82
    %p94 = scmp.eq.s32.totalorder %s16, 3
    %p95 = por %p93, %p94
    %p97 = scmp.ne.s32.totalorder %s82, %s96
    %p98 = scmp.eq.s32.totalorder %s16, 0
    %p99 = por %p97, %p98
    %s101 = sadd.s32 %s100, 1
    %p104 = scmp.eq.s32.totalorder %s10, 3
    %p105 = scmp.ne.s32.totalorder %s100, %s102
    %p106 = scmp.eq.s32.totalorder %s10, 0
    %p107 = por %p105, %p106
    %p108 = scmp.ne.s32.totalorder %s100, %s102
    %p109 = scmp.eq.s32.totalorder %s15, 3
    %p110 = por %p108, %p109
    %p111 = scmp.ne.s32.totalorder %s102, %s103
    %p112 = scmp.eq.s32.totalorder %s15, 0
    %p113 = por %p111, %p112
    %p114 = scmp.ne.s32.totalorder %s102, %s103
    %p115 = scmp.eq.s32.totalorder %s16, 3
    %p116 = por %p114, %p115
    %p118 = scmp.ne.s32.totalorder %s103, %s117
    %p119 = scmp.eq.s32.totalorder %s16, 0
    %p120 = por %p118, %p119
    %s121 = ssub.s32 %s17, %s29
    %s122 = ssub.s32 %s18, %s25
    %s123 = sor.u32 %s121, %s122
    %p124 = scmp.eq.s32.totalorder %s123, 0
    %s126 = sadd.s32 %s125, 1
    %s127 = scalar_select %p124, %s125, %s126
    %p130 = pneg %p124
    %p131 = scmp.eq.s32.totalorder %s10, 3
    %p132 = por %p130, %p131
    %p133 = scmp.ne.s32.totalorder %s125, %s128
    %p134 = scmp.eq.s32.totalorder %s10, 0
    %p135 = por %p133, %p134
    %p136 = scmp.ne.s32.totalorder %s125, %s128
    %p137 = scmp.eq.s32.totalorder %s15, 3
    %p138 = por %p136, %p137
    %p139 = scmp.ne.s32.totalorder %s128, %s129
    %p140 = scmp.eq.s32.totalorder %s15, 0
    %p141 = por %p139, %p140
    %p142 = scmp.ne.s32.totalorder %s128, %s129
    %p143 = scmp.eq.s32.totalorder %s16, 3
    %p144 = por %p142, %p143
    %p146 = scmp.ne.s32.totalorder %s129, %s145
    %p147 = scmp.eq.s32.totalorder %s16, 0
    %p148 = por %p146, %p147
    %p149 = scmp.le.s32.totalorder 1, %s10
    %p150 = scmp.lt.s32.totalorder %s10, 5
    %p151 = pnand %p149, %p150
    %p152 = pneg %p151
    // Predicated region
    $region9: #{improved_ibn_a_decoder_block.7} parent=5 // pred_check
      _
    $region10: #{improved_ibn_a_decoder_block.7} parent=5 // pred_check_branch
      %154 = sbr.rel (%p151) target = $region12
    $region11: #{improved_ibn_a_decoder_block.7} parent=5 // pred_region
      %s155 = ssub.s32 %s10, 1
      // Predicated region
      $region13: #{improved_ibn_a_decoder_block.7} parent=11 // pred_check
        %p156 = pneg %p71
      $region14: #{improved_ibn_a_decoder_block.7} parent=11 // pred_check_branch
        %158 = sbr.rel (%p156) target = $region16
      $region15: #{improved_ibn_a_decoder_block.7} parent=11 // pred_region
        _
      $region16: #{improved_ibn_a_decoder_block.7} parent=11 // pred_fallthru
        _
      // Predicated region
      $region17: #{improved_ibn_a_decoder_block.7} parent=11 // pred_check
        %p159 = pneg %p92
      $region18: #{improved_ibn_a_decoder_block.7} parent=11 // pred_check_branch
        %161 = sbr.rel (%p159) target = $region20
      $region19: #{improved_ibn_a_decoder_block.7} parent=11 // pred_region
        _
      $region20: #{improved_ibn_a_decoder_block.7} parent=11 // pred_fallthru
        _
      // Predicated region
      $region21: #{improved_ibn_a_decoder_block.7} parent=11 // pred_check
        %p162 = pneg %p113
      $region22: #{improved_ibn_a_decoder_block.7} parent=11 // pred_check_branch
        %164 = sbr.rel (%p162) target = $region24
      $region23: #{improved_ibn_a_decoder_block.7} parent=11 // pred_region
        _
      $region24: #{improved_ibn_a_decoder_block.7} parent=11 // pred_fallthru
        _
    $region12: #{improved_ibn_a_decoder_block.7} parent=5 // pred_fallthru
      _
    %p165 = scmp.lt.s32.totalorder %s10, 4
    // Predicated region
    $region25: #{improved_ibn_a_decoder_block.7} parent=5 // pred_check
      %p166 = pneg %p165
    $region26: #{improved_ibn_a_decoder_block.7} parent=5 // pred_check_branch
      %168 = sbr.rel (%p166) target = $region28
    $region27: #{improved_ibn_a_decoder_block.7} parent=5 // pred_region
      // Predicated region
      $region29: #{improved_ibn_a_decoder_block.7} parent=27 // pred_check
        %p169 = pneg %p44
      $region30: #{improved_ibn_a_decoder_block.7} parent=27 // pred_check_branch
        %171 = sbr.rel (%p169) target = $region32
      $region31: #{improved_ibn_a_decoder_block.7} parent=27 // pred_region
        %s172 = smul.u32 4, %s18
        %p173 = scmp.lt.s32.totalorder %s17, 1
        %s174 = scalar_select %p173, %s17, 1
        %p175 = scmp.lt.s32.totalorder %s172, 7
        %s176 = scalar_select %p175, %s172, 7
        %s177 = smul.addr %s176, 2
        %s178 = smul.addr %s174, 16
        %s179 = sadd.s32 %s177, %s178
        %s180 = smul.addr %s179, 4
        %s181 = scalar_lea.vmem %s0, %s180
        %s182 = smul.u32 4, %s18
      $region32: #{improved_ibn_a_decoder_block.7} parent=27 // pred_fallthru
        _
    $region28: #{improved_ibn_a_decoder_block.7} parent=5 // pred_fallthru
      _
    %p183 = scmp.le.s32.totalorder 1, %s10
    %p184 = scmp.lt.s32.totalorder %s10, 5
    %p185 = pnand %p183, %p184
    %p186 = pneg %p185
    // Predicated region
    $region33: #{improved_ibn_a_decoder_block.7} parent=5 // pred_check
      _
    $region34: #{improved_ibn_a_decoder_block.7} parent=5 // pred_check_branch
      %188 = sbr.rel (%p185) target = $region36
    $region35: #{improved_ibn_a_decoder_block.7} parent=5 // pred_region
      %s189 = ssub.s32 %s10, 1
      %s190 = smul.u32 4, %s20
      %p191 = scmp.lt.s32.totalorder %s19, 1
      %s192 = scalar_select %p191, %s19, 1
      %p193 = scmp.lt.s32.totalorder %s190, 7
      %s194 = scalar_select %p193, %s190, 7
      %s195 = smul.addr %s194, 2
      %s196 = smul.addr %s192, 16
      %s197 = sadd.s32 %s195, %s196
      %s198 = smul.addr %s197, 4
      %s199 = scalar_lea.vmem %s0, %s198
      %p200 = pneg %p50
      %p201 = pneg %p47
      %p202 = pneg %p71
      %p203 = pneg %p68
      %p204 = pneg %p92
      %p205 = pneg %p89
      %p206 = pneg %p113
      %p207 = pneg %p110
      %p208 = pneg %p141
      %p209 = pneg %p138
      %s210 = smul.u32 4, %s20
      %p211 = scmp.lt.s32.totalorder %s19, 1
      %s212 = scalar_select %p211, %s19, 1
      %p213 = scmp.lt.s32.totalorder %s210, 7
      %s214 = scalar_select %p213, %s210, 7
      %s215 = smul.addr %s214, 2
      %s216 = smul.addr %s212, 16
      %s217 = sadd.s32 %s215, %s216
      %s218 = smul.addr %s217, 8
      %s219 = scalar_lea.vmem %s4, %s218
      %s220 = smul.u32 4, %s20
      %p221 = scmp.lt.s32.totalorder %s19, 1
      %s222 = scalar_select %p221, %s19, 1
      %p223 = scmp.lt.s32.totalorder %s220, 7
      %s224 = scalar_select %p223, %s220, 7
      %s225 = smul.addr %s224, 2
      %s226 = smul.addr %s222, 16
      %s227 = sadd.s32 %s225, %s226
      %s228 = smul.addr %s227, 4
      %s229 = scalar_lea.vmem %s0, %s228
      %s230 = smul.u32 4, %s20
      %s231 = smul.u32 4, %s20
      %p232 = scmp.lt.s32.totalorder %s19, 1
      %s233 = scalar_select %p232, %s19, 1
      %p234 = scmp.lt.s32.totalorder %s231, 7
      %s235 = scalar_select %p234, %s231, 7
      %s236 = smul.addr %s235, 2
      %s237 = smul.addr %s233, 16
      %s238 = sadd.s32 %s236, %s237
      %s239 = smul.addr %s238, 8
      %s240 = scalar_lea.vmem %s4, %s239
      %s241 = smul.u32 4, %s20
      %v242 = vld [vmem:[%s1] sm:$0x3]
      %v243 = vld [vmem:[%s1 + $0x2] sm:$0x3]
      %v244 = vld [vmem:[%s1 + $0x4] sm:$0x3]
      %v245 = vld [vmem:[%s1 + $0x6] sm:$0x3]
      %vm246 = vcmask 58368
      %v247 = vsel %vm246, %v242, 0.0
      %v248 = vsel %vm246, %v243, 0.0
      %v249 = vadd.f32 %v247, %v248
      %v250 = vsel %vm246, %v244, 0.0
      %v251 = vadd.f32 %v249, %v250
      %v252 = vsel %vm246, %v245, 0.0
      %v253 = vadd.f32 %v251, %v252
      %v254 = vmul.f32 %v253, 0.001953125
      %v255 = vmul.f32 %v254, %v254
      %v257 = vrot.slane %v255, 7
      %v259 = vsub.f32 %v254, %v257
      %v260 = vmax.f32 %v259, 0.0
      %v261 = vld [vmem:[%s2] sm:$0x1]
      %v262 = vadd.f32 %v260, 1e-05
      %v263 = vrsqrt.pop %v262
      %v266 = vunpack.c.l.s4 1966171168
      %v267 = vunpack.c.0.s8 %v266
      %v268 = vlaneseq
      %v269 = vshrl.u32 %v268, 7
      %v270 = vsub.s32 %v267, %v269
      %v271 = vrot.slane %v263, %v270
      %v272 = vcombine.high %v271, %v271
      %v274 = vunpack.c.l.s4 1966171168
      %v275 = vunpack.c.0.s8 %v274
      %v276 = vlaneseq
      %v277 = vshrl.u32 %v276, 7
      %v278 = vsub.s32 %v275, %v277
      %v279 = vrot.slane %v272, %v278
      %v281 = vmul.f32 %v261, %v279
      %v282 = vld [vmem:[%s3] sm:$0x1]
      %v283 = vmul.f32 %v254, %v281
      %v284 = vsub.f32 %v282, %v283
      %v286 = vlaneseq
      %v287 = vshrl.u32 %v286, 7
      %v288 = vsub.s32 0, %v287
      %v289 = vrot.slane %v281, %v288
      %290 = vrot.lane.b32.xlu0 %v289, 8
      %v291 = vpop.permute.xlu0 %290
      %vm293 = vcmask 64512
      %v294 = vsel %vm293, %v281, %v291
      %v296 = vlaneseq
      %v297 = vshrl.u32 %v296, 7
      %v298 = vsub.s32 0, %v297
      %v299 = vrot.slane %v284, %v298
      %300 = vrot.lane.b32.xlu0 %v299, 8
      %v301 = vpop.permute.xlu0 %300
      %v303 = vsel %vm293, %v284, %v301
      %v304 = vld [vmem:[%s229] sm:$0xf]
      %v305 = vld [vmem:[%s229 + $0x4] sm:$0xf]
      %v306 = vld [vmem:[%s229 + $0x8] sm:$0xf]
      %v307 = vld [vmem:[%s229 + $0xc] sm:$0xf]
      %v308 = vld [vmem:[%s229 + $0x10] sm:$0xf]
      %v309 = vld [vmem:[%s229 + $0x14] sm:$0xf]
      %v310 = vld [vmem:[%s229 + $0x18] sm:$0xf]
      %v311 = vld [vmem:[%s229 + $0x1c] sm:$0xf]
      %v312 = vunpack.c.l.bf16 %v304
      %v313 = vunpack.c.l.bf16 %v305
      %v314 = vunpack.c.l.bf16 %v306
      %v315 = vunpack.c.l.bf16 %v307
      %v316 = vunpack.c.l.bf16 %v308
      %v317 = vunpack.c.l.bf16 %v309
      %v318 = vunpack.c.l.bf16 %v310
      %v319 = vunpack.c.l.bf16 %v311
      %v320 = vlaneseq
      %v321 = vshrl.u32 %v320, 7
      %v322 = vsub.s32 0, %v321
      %v323 = vrot.slane %v294, %v322
      %v324 = vmul.f32 %v312, %v323
      %v325 = vmul.f32 %v313, %v323
      %v326 = vmul.f32 %v314, %v323
      %v327 = vmul.f32 %v315, %v323
      %v328 = vmul.f32 %v316, %v323
      %v329 = vmul.f32 %v317, %v323
      %v330 = vmul.f32 %v318, %v323
      %v331 = vmul.f32 %v319, %v323
      %v332 = vlaneseq
      %v333 = vshrl.u32 %v332, 7
      %v334 = vsub.s32 0, %v333
      %v335 = vrot.slane %v303, %v334
      %v336 = vadd.f32 %v324, %v335
      %v337 = vadd.f32 %v325, %v335
      %v338 = vadd.f32 %v326, %v335
      %v339 = vadd.f32 %v327, %v335
      %v340 = vadd.f32 %v328, %v335
      %v341 = vadd.f32 %v329, %v335
      %v342 = vadd.f32 %v330, %v335
      %v343 = vadd.f32 %v331, %v335
      %v344 = vmax.f32 %v336, 0.0
      %v345 = vmax.f32 %v337, 0.0
      %v346 = vmax.f32 %v338, 0.0
      %v347 = vmax.f32 %v339, 0.0
      %v348 = vmax.f32 %v340, 0.0
      %v349 = vmax.f32 %v341, 0.0
      %v350 = vmax.f32 %v342, 0.0
      %v351 = vmax.f32 %v343, 0.0
      %vm352 = vcmask 130048
      %353 = vst.msk [vmem:[%s240] sm:$0xff] %vm352, %v344
      %354 = vst.msk [vmem:[%s240 + $0x8] sm:$0xff] %vm352, %v345
      %355 = vst.msk [vmem:[%s240 + $0x10] sm:$0xff] %vm352, %v346
      %356 = vst.msk [vmem:[%s240 + $0x18] sm:$0xff] %vm352, %v347
      %357 = vst.msk [vmem:[%s240 + $0x20] sm:$0xff] %vm352, %v348
      %358 = vst.msk [vmem:[%s240 + $0x28] sm:$0xff] %vm352, %v349
      %359 = vst.msk [vmem:[%s240 + $0x30] sm:$0xff] %vm352, %v350
      %360 = vst.msk [vmem:[%s240 + $0x38] sm:$0xff] %vm352, %v351
      %s361 = smul.u32 4, %s20
      %p362 = scmp.lt.s32.totalorder %s19, 1
      %s363 = scalar_select %p362, %s19, 1
      %p364 = scmp.lt.s32.totalorder %s361, 7
      %s365 = scalar_select %p364, %s361, 7
      %s366 = smul.addr %s365, 2
      %s367 = smul.addr %s363, 16
      %s368 = sadd.s32 %s366, %s367
      %s369 = smul.addr %s368, 8
      %s370 = scalar_lea.vmem %s4, %s369
      // Predicated region
      $region37: #{improved_ibn_a_decoder_block.7} parent=35 // pred_check
        %p371 = pneg %p138
      $region38: #{improved_ibn_a_decoder_block.7} parent=35 // pred_check_branch
        %373 = sbr.rel (%p371) target = $region40
      $region39: #{improved_ibn_a_decoder_block.7} parent=35 // pred_region
        %s374 = smul.u32 4, %s20
      $region40: #{improved_ibn_a_decoder_block.7} parent=35 // pred_fallthru
        _
    $region36: #{improved_ibn_a_decoder_block.7} parent=5 // pred_fallthru
      _
    %p375 = scmp.le.s32.totalorder 2, %s10
    // Predicated region
    $region41: #{improved_ibn_a_decoder_block.7} parent=5 // pred_check
      %p376 = pneg %p375
    $region42: #{improved_ibn_a_decoder_block.7} parent=5 // pred_check_branch
      %378 = sbr.rel (%p376) target = $region44
    $region43: #{improved_ibn_a_decoder_block.7} parent=5 // pred_region
      %s379 = ssub.s32 %s10, 2
      // Predicated region
      $region45: #{improved_ibn_a_decoder_block.7} parent=43 // pred_check
        %p380 = pneg %p144
      $region46: #{improved_ibn_a_decoder_block.7} parent=43 // pred_check_branch
        %382 = sbr.rel (%p380) target = $region48
      $region47: #{improved_ibn_a_decoder_block.7} parent=43 // pred_region
        %s383 = smul.u32 4, %s22
        %p384 = scmp.lt.s32.totalorder %s21, 1
        %s385 = scalar_select %p384, %s21, 1
        %p386 = scmp.lt.s32.totalorder %s383, 7
        %s387 = scalar_select %p386, %s383, 7
        %s388 = smul.addr %s387, 2
        %s389 = smul.addr %s385, 16
        %s390 = sadd.s32 %s388, %s389
        %s391 = smul.addr %s390, 8
        %s392 = scalar_lea.vmem %s4, %s391
      $region48: #{improved_ibn_a_decoder_block.7} parent=43 // pred_fallthru
        _
    $region44: #{improved_ibn_a_decoder_block.7} parent=5 // pred_fallthru
      _
  $region6: #{improved_ibn_a_decoder_block.7} parent=0 // loop_footer
    %s14 = sadd.s32 1, %s10
  $region7: #{improved_ibn_a_decoder_block.7} parent=0 // loop_footer_branch
    %9 = sbr.rel target = $region3
  $region8: #{improved_ibn_a_decoder_block.7} parent=0 // loop_exit
    _

// kernel: improved_ibn_a_decoder_block.6
$region0: #{improved_ibn_a_decoder_block.6}
  #allocation0 [shape = 'u32[]', space=smem, size = 0x4, offset = 0x4, fixed_abs, tag = 'smem constant byte address 0x4 - core index']
  #allocation1 [shape = 'u32[144,128]{1,0:T(1,128)}', space=vmem, size = 0x12000, scoped, tag = 'internal scratch']
  %s0 = inlined_call_operand.vmem [shape: bf16[2,8,2,8,8], index: 0, kind: input, shape index: {}]
  %s1 = inlined_call_operand.vmem [shape: f32[2,2,4], index: 1, kind: input, shape index: {}]
  %s2 = inlined_call_operand.vmem [shape: f32[1,4], index: 2, kind: input, shape index: {}]
  %s3 = inlined_call_operand.vmem [shape: f32[1,4], index: 3, kind: input, shape index: {}]
  %s4 = inlined_call_operand.vmem [shape: bf16[8,16], index: 4, kind: input, shape index: {}]
  %s5 = inlined_call_operand.vmem [shape: bf16[2,8,2,8,16], index: 5, kind: output, shape index: {0}]
  %s6 = inlined_call_operand.vmem [shape: f32[4,2,8], index: 6, kind: output, shape index: {1}]
  %7 = xla_tuple %s5, %s6
  %s8 = sld [smem:[#allocation0]]
  $region61: #{improved_ibn_a_decoder_block.6} parent=0
    _
  %s10 = ssub.s32 1, %s8
  %s11 = scalar_select 0, %s10, %s8
  loop: start=0, step=1, limit=6
  $region2: #{improved_ibn_a_decoder_block.6} parent=0 // loop_pre_header
    _
  $region3: #{improved_ibn_a_decoder_block.6} parent=0 // loop_header
    %s13 = sphi 0, %s17
    %p14 = scmp.ge.s32.totalorder %s13, 6
    %s20 = sphi 0, %s32
    %s21 = sphi 0, %s28
    %s22 = sphi 0, %s20
    %s23 = sphi 0, %s21
    %s24 = sphi 0, %s22
    %s25 = sphi 0, %s23
    %s37 = sphi 0, %s39
    %s40 = sphi 0, %s37
    %s41 = sphi 0, %s40
    %s57 = sphi 0, %s41
    %s61 = sphi 0, %s61
    %s63 = sphi 0, %s61
    %s64 = sphi 0, %s63
    %s78 = sphi 0, %s64
    %s82 = sphi 0, %s82
    %s84 = sphi 0, %s82
    %s85 = sphi 0, %s84
    %s99 = sphi 0, %s85
    %s103 = sphi 0, %s103
    %s105 = sphi 0, %s103
    %s106 = sphi 0, %s105
    %s120 = sphi 0, %s106
    %s124 = sphi 0, %s124
    %s126 = sphi 0, %s124
    %s127 = sphi 0, %s126
    %s141 = sphi 0, %s127
    %s149 = sphi 0, %s151
    %s152 = sphi 0, %s149
    %s153 = sphi 0, %s152
    %s169 = sphi 0, %s153
    %s179 = sphi 0, %s181
    %s182 = sphi 0, %s179
    %s183 = sphi 0, %s182
    %s199 = sphi 0, %s183
  $region4: #{improved_ibn_a_decoder_block.6} parent=0 // loop_header_branch
    %16 = sbr.rel (%p14) target = $region8
  $region5: #{improved_ibn_a_decoder_block.6} parent=0 // loop_body
    %s18 = ssub.s32 %s13, 1
    %s19 = ssub.s32 %s13, 2
    %s26 = sadd.s32 1, %s21
    %p27 = scmp.ge.s32.totalorder %s26, 2
    %s28 = scalar_select %p27, 0, %s26
    %s29 = sadd.s32 1, %s20
    %s30 = scalar_select %p27, %s29, %s20
    %p31 = scmp.ge.s32.totalorder %s30, 2
    %s32 = scalar_select %p31, 0, %s30
    %s33 = ssub.s32 %s20, %s32
    %s34 = ssub.s32 %s21, %s28
    %s35 = sor.u32 %s33, %s34
    %p36 = scmp.eq.s32.totalorder %s35, 0
    %s38 = sadd.s32 %s37, 1
    %s39 = scalar_select %p36, %s37, %s38
    %p42 = pneg %p36
    %p43 = scmp.eq.s32.totalorder %s13, 3
    %p44 = por %p42, %p43
    %p45 = scmp.ne.s32.totalorder %s37, %s40
    %p46 = scmp.eq.s32.totalorder %s13, 0
    %p47 = por %p45, %p46
    %p48 = scmp.ne.s32.totalorder %s37, %s40
    %p49 = scmp.eq.s32.totalorder %s18, 3
    %p50 = por %p48, %p49
    %p51 = scmp.ne.s32.totalorder %s40, %s41
    %p52 = scmp.eq.s32.totalorder %s18, 0
    %p53 = por %p51, %p52
    %p54 = scmp.ne.s32.totalorder %s40, %s41
    %p55 = scmp.eq.s32.totalorder %s19, 3
    %p56 = por %p54, %p55
    %p58 = scmp.ne.s32.totalorder %s41, %s57
    %p59 = scmp.eq.s32.totalorder %s19, 0
    %p60 = por %p58, %p59
    %s62 = sadd.s32 %s61, 1
    %p65 = scmp.eq.s32.totalorder %s13, 3
    %p66 = scmp.ne.s32.totalorder %s61, %s63
    %p67 = scmp.eq.s32.totalorder %s13, 0
    %p68 = por %p66, %p67
    %p69 = scmp.ne.s32.totalorder %s61, %s63
    %p70 = scmp.eq.s32.totalorder %s18, 3
    %p71 = por %p69, %p70
    %p72 = scmp.ne.s32.totalorder %s63, %s64
    %p73 = scmp.eq.s32.totalorder %s18, 0
    %p74 = por %p72, %p73
    %p75 = scmp.ne.s32.totalorder %s63, %s64
    %p76 = scmp.eq.s32.totalorder %s19, 3
    %p77 = por %p75, %p76
    %p79 = scmp.ne.s32.totalorder %s64, %s78
    %p80 = scmp.eq.s32.totalorder %s19, 0
    %p81 = por %p79, %p80
    %s83 = sadd.s32 %s82, 1
    %p86 = scmp.eq.s32.totalorder %s13, 3
    %p87 = scmp.ne.s32.totalorder %s82, %s84
    %p88 = scmp.eq.s32.totalorder %s13, 0
    %p89 = por %p87, %p88
    %p90 = scmp.ne.s32.totalorder %s82, %s84
    %p91 = scmp.eq.s32.totalorder %s18, 3
    %p92 = por %p90, %p91
    %p93 = scmp.ne.s32.totalorder %s84, %s85
    %p94 = scmp.eq.s32.totalorder %s18, 0
    %p95 = por %p93, %p94
    %p96 = scmp.ne.s32.totalorder %s84, %s85
    %p97 = scmp.eq.s32.totalorder %s19, 3
    %p98 = por %p96, %p97
    %p100 = scmp.ne.s32.totalorder %s85, %s99
    %p101 = scmp.eq.s32.totalorder %s19, 0
    %p102 = por %p100, %p101
    %s104 = sadd.s32 %s103, 1
    %p107 = scmp.eq.s32.totalorder %s13, 3
    %p108 = scmp.ne.s32.totalorder %s103, %s105
    %p109 = scmp.eq.s32.totalorder %s13, 0
    %p110 = por %p108, %p109
    %p111 = scmp.ne.s32.totalorder %s103, %s105
    %p112 = scmp.eq.s32.totalorder %s18, 3
    %p113 = por %p111, %p112
    %p114 = scmp.ne.s32.totalorder %s105, %s106
    %p115 = scmp.eq.s32.totalorder %s18, 0
    %p116 = por %p114, %p115
    %p117 = scmp.ne.s32.totalorder %s105, %s106
    %p118 = scmp.eq.s32.totalorder %s19, 3
    %p119 = por %p117, %p118
    %p121 = scmp.ne.s32.totalorder %s106, %s120
    %p122 = scmp.eq.s32.totalorder %s19, 0
    %p123 = por %p121, %p122
    %s125 = sadd.s32 %s124, 1
    %p128 = scmp.eq.s32.totalorder %s13, 3
    %p129 = scmp.ne.s32.totalorder %s124, %s126
    %p130 = scmp.eq.s32.totalorder %s13, 0
    %p131 = por %p129, %p130
    %p132 = scmp.ne.s32.totalorder %s124, %s126
    %p133 = scmp.eq.s32.totalorder %s18, 3
    %p134 = por %p132, %p133
    %p135 = scmp.ne.s32.totalorder %s126, %s127
    %p136 = scmp.eq.s32.totalorder %s18, 0
    %p137 = por %p135, %p136
    %p138 = scmp.ne.s32.totalorder %s126, %s127
    %p139 = scmp.eq.s32.totalorder %s19, 3
    %p140 = por %p138, %p139
    %p142 = scmp.ne.s32.totalorder %s127, %s141
    %p143 = scmp.eq.s32.totalorder %s19, 0
    %p144 = por %p142, %p143
    %s145 = ssub.s32 %s20, %s32
    %s146 = ssub.s32 %s21, %s28
    %s147 = sor.u32 %s145, %s146
    %p148 = scmp.eq.s32.totalorder %s147, 0
    %s150 = sadd.s32 %s149, 1
    %s151 = scalar_select %p148, %s149, %s150
    %p154 = pneg %p148
    %p155 = scmp.eq.s32.totalorder %s13, 3
    %p156 = por %p154, %p155
    %p157 = scmp.ne.s32.totalorder %s149, %s152
    %p158 = scmp.eq.s32.totalorder %s13, 0
    %p159 = por %p157, %p158
    %p160 = scmp.ne.s32.totalorder %s149, %s152
    %p161 = scmp.eq.s32.totalorder %s18, 3
    %p162 = por %p160, %p161
    %p163 = scmp.ne.s32.totalorder %s152, %s153
    %p164 = scmp.eq.s32.totalorder %s18, 0
    %p165 = por %p163, %p164
    %p166 = scmp.ne.s32.totalorder %s152, %s153
    %p167 = scmp.eq.s32.totalorder %s19, 3
    %p168 = por %p166, %p167
    %p170 = scmp.ne.s32.totalorder %s153, %s169
    %p171 = scmp.eq.s32.totalorder %s19, 0
    %p172 = por %p170, %p171
    %s173 = smul.u32 %s20, 2
    %s174 = sadd.s32 %s173, %s21
    %s175 = smul.u32 %s32, 2
    %s176 = sadd.s32 %s175, %s28
    %s177 = ssub.s32 %s174, %s176
    %p178 = scmp.eq.s32.totalorder %s177, 0
    %s180 = sadd.s32 %s179, 1
    %s181 = scalar_select %p178, %s179, %s180
    %p184 = pneg %p178
    %p185 = scmp.eq.s32.totalorder %s13, 3
    %p186 = por %p184, %p185
    %p187 = scmp.ne.s32.totalorder %s179, %s182
    %p188 = scmp.eq.s32.totalorder %s13, 0
    %p189 = por %p187, %p188
    %p190 = scmp.ne.s32.totalorder %s179, %s182
    %p191 = scmp.eq.s32.totalorder %s18, 3
    %p192 = por %p190, %p191
    %p193 = scmp.ne.s32.totalorder %s182, %s183
    %p194 = scmp.eq.s32.totalorder %s18, 0
    %p195 = por %p193, %p194
    %p196 = scmp.ne.s32.totalorder %s182, %s183
    %p197 = scmp.eq.s32.totalorder %s19, 3
    %p198 = por %p196, %p197
    %p200 = scmp.ne.s32.totalorder %s183, %s199
    %p201 = scmp.eq.s32.totalorder %s19, 0
    %p202 = por %p200, %p201
    %p203 = scmp.le.s32.totalorder 1, %s13
    %p204 = scmp.lt.s32.totalorder %s13, 5
    %p205 = pnand %p203, %p204
    %p206 = pneg %p205
    // Predicated region
    $region9: #{improved_ibn_a_decoder_block.6} parent=5 // pred_check
      _
    $region10: #{improved_ibn_a_decoder_block.6} parent=5 // pred_check_branch
      %208 = sbr.rel (%p205) target = $region12
    $region11: #{improved_ibn_a_decoder_block.6} parent=5 // pred_region
      %s209 = ssub.s32 %s13, 1
      // Predicated region
      $region13: #{improved_ibn_a_decoder_block.6} parent=11 // pred_check
        %p210 = pneg %p74
      $region14: #{improved_ibn_a_decoder_block.6} parent=11 // pred_check_branch
        %212 = sbr.rel (%p210) target = $region16
      $region15: #{improved_ibn_a_decoder_block.6} parent=11 // pred_region
        _
      $region16: #{improved_ibn_a_decoder_block.6} parent=11 // pred_fallthru
        _
      // Predicated region
      $region17: #{improved_ibn_a_decoder_block.6} parent=11 // pred_check
        %p213 = pneg %p95
      $region18: #{improved_ibn_a_decoder_block.6} parent=11 // pred_check_branch
        %215 = sbr.rel (%p213) target = $region20
      $region19: #{improved_ibn_a_decoder_block.6} parent=11 // pred_region
        _
      $region20: #{improved_ibn_a_decoder_block.6} parent=11 // pred_fallthru
        _
      // Predicated region
      $region21: #{improved_ibn_a_decoder_block.6} parent=11 // pred_check
        %p216 = pneg %p116
      $region22: #{improved_ibn_a_decoder_block.6} parent=11 // pred_check_branch
        %218 = sbr.rel (%p216) target = $region24
      $region23: #{improved_ibn_a_decoder_block.6} parent=11 // pred_region
        _
      $region24: #{improved_ibn_a_decoder_block.6} parent=11 // pred_fallthru
        _
      // Predicated region
      $region25: #{improved_ibn_a_decoder_block.6} parent=11 // pred_check
        %p219 = pneg %p137
      $region26: #{improved_ibn_a_decoder_block.6} parent=11 // pred_check_branch
        %221 = sbr.rel (%p219) target = $region28
      $region27: #{improved_ibn_a_decoder_block.6} parent=11 // pred_region
        _
      $region28: #{improved_ibn_a_decoder_block.6} parent=11 // pred_fallthru
        _
    $region12: #{improved_ibn_a_decoder_block.6} parent=5 // pred_fallthru
      _
    %p222 = scmp.lt.s32.totalorder %s13, 4
    // Predicated region
    $region29: #{improved_ibn_a_decoder_block.6} parent=5 // pred_check
      %p223 = pneg %p222
    $region30: #{improved_ibn_a_decoder_block.6} parent=5 // pred_check_branch
      %225 = sbr.rel (%p223) target = $region32
    $region31: #{improved_ibn_a_decoder_block.6} parent=5 // pred_region
      // Predicated region
      $region33: #{improved_ibn_a_decoder_block.6} parent=31 // pred_check
        %p226 = pneg %p47
      $region34: #{improved_ibn_a_decoder_block.6} parent=31 // pred_check_branch
        %228 = sbr.rel (%p226) target = $region36
      $region35: #{improved_ibn_a_decoder_block.6} parent=31 // pred_region
        %s229 = smul.u32 4, %s21
        %p230 = scmp.lt.s32.totalorder %s20, 1
        %s231 = scalar_select %p230, %s20, 1
        %p232 = scmp.lt.s32.totalorder %s229, 7
        %s233 = scalar_select %p232, %s229, 7
        %s234 = smul.addr %s233, 2
        %s235 = smul.addr %s231, 16
        %s236 = sadd.s32 %s234, %s235
        %s237 = smul.addr %s236, 4
        %s238 = scalar_lea.vmem %s0, %s237
        %s239 = smul.u32 4, %s21
      $region36: #{improved_ibn_a_decoder_block.6} parent=31 // pred_fallthru
        _
    $region32: #{improved_ibn_a_decoder_block.6} parent=5 // pred_fallthru
      _
    %p240 = scmp.le.s32.totalorder 1, %s13
    %p241 = scmp.lt.s32.totalorder %s13, 5
    %p242 = pnand %p240, %p241
    %p243 = pneg %p242
    // Predicated region
    $region37: #{improved_ibn_a_decoder_block.6} parent=5 // pred_check
      _
    $region38: #{improved_ibn_a_decoder_block.6} parent=5 // pred_check_branch
      %245 = sbr.rel (%p242) target = $region40
    $region39: #{improved_ibn_a_decoder_block.6} parent=5 // pred_region
      %s246 = ssub.s32 %s13, 1
      %s247 = smul.u32 4, %s23
      %p248 = scmp.lt.s32.totalorder %s22, 1
      %s249 = scalar_select %p248, %s22, 1
      %p250 = scmp.lt.s32.totalorder %s247, 7
      %s251 = scalar_select %p250, %s247, 7
      %s252 = smul.addr %s251, 2
      %s253 = smul.addr %s249, 16
      %s254 = sadd.s32 %s252, %s253
      %s255 = smul.addr %s254, 4
      %s256 = scalar_lea.vmem %s0, %s255
      %p257 = pneg %p53
      %p258 = pneg %p50
      %p259 = pneg %p74
      %p260 = pneg %p71
      %p261 = pneg %p95
      %p262 = pneg %p92
      %p263 = pneg %p116
      %p264 = pneg %p113
      %p265 = pneg %p137
      %p266 = pneg %p134
      %p267 = pneg %p165
      %p268 = pneg %p162
      %s269 = smul.u32 4, %s23
      %p270 = scmp.lt.s32.totalorder %s22, 1
      %s271 = scalar_select %p270, %s22, 1
      %p272 = scmp.lt.s32.totalorder %s269, 7
      %s273 = scalar_select %p272, %s269, 7
      %s274 = smul.addr %s273, 2
      %s275 = smul.addr %s271, 16
      %s276 = sadd.s32 %s274, %s275
      %s277 = smul.addr %s276, 4
      %s278 = scalar_lea.vmem %s5, %s277
      %p279 = pneg %p195
      %p280 = pneg %p192
      %s281 = smul.u32 %s22, 2
      %s282 = sadd.s32 %s281, %s23
      %p283 = scmp.lt.s32.totalorder %s282, 3
      %s284 = scalar_select %p283, %s282, 3
      %s285 = smul.addr %s284, 2
      %s286 = scalar_lea.vmem %s6, %s285
      %s287 = smul.u32 4, %s23
      %p288 = scmp.lt.s32.totalorder %s22, 1
      %s289 = scalar_select %p288, %s22, 1
      %p290 = scmp.lt.s32.totalorder %s287, 7
      %s291 = scalar_select %p290, %s287, 7
      %s292 = smul.addr %s291, 2
      %s293 = smul.addr %s289, 16
      %s294 = sadd.s32 %s292, %s293
      %s295 = smul.addr %s294, 4
      %s296 = scalar_lea.vmem %s0, %s295
      %s297 = smul.u32 4, %s23
      %s298 = smul.u32 4, %s23
      %p299 = scmp.lt.s32.totalorder %s22, 1
      %s300 = scalar_select %p299, %s22, 1
      %p301 = scmp.lt.s32.totalorder %s298, 7
      %s302 = scalar_select %p301, %s298, 7
      %s303 = smul.addr %s302, 2
      %s304 = smul.addr %s300, 16
      %s305 = sadd.s32 %s303, %s304
      %s306 = smul.addr %s305, 4
      %s307 = scalar_lea.vmem %s5, %s306
      %s308 = smul.u32 4, %s23
      %s309 = smul.u32 %s22, 2
      %s310 = sadd.s32 %s309, %s23
      %p311 = scmp.lt.s32.totalorder %s310, 3
      %s312 = scalar_select %p311, %s310, 3
      %s313 = smul.addr %s312, 2
      %s314 = scalar_lea.vmem %s6, %s313
      %s315 = smul.u32 %s22, 2
      %s316 = sadd.s32 %s315, %s23
      %v318 = vld [vmem:[%s1] sm:$0x3]
      %v319 = vld [vmem:[%s1 + $0x2] sm:$0x3]
      %vm320 = vcmask 25600
      %v321 = vsel %vm320, %v318, 0.0
      %v322 = vsel %vm320, %v319, 0.0
      %v323 = vadd.f32 %v321, %v322
      %v324 = vmul.f32 %v323, 0.001953125
      %v325 = vmul.f32 %v324, %v324
      %v327 = vrot.slane %v325, 7
      %v329 = vsub.f32 %v324, %v327
      %v330 = vmax.f32 %v329, 0.0
      %v331 = vld [vmem:[%s2] sm:$0x1]
      %v332 = vadd.f32 %v330, 1e-05
      %v333 = vrsqrt.pop %v332
      %v336 = vunpack.c.l.s4 1966171168
      %v337 = vunpack.c.0.s8 %v336
      %v338 = vlaneseq
      %v339 = vshrl.u32 %v338, 7
      %v340 = vsub.s32 %v337, %v339
      %v341 = vrot.slane %v333, %v340
      %v342 = vcombine.high %v341, %v341
      %v344 = vunpack.c.l.s4 1966171168
      %v345 = vunpack.c.0.s8 %v344
      %v346 = vlaneseq
      %v347 = vshrl.u32 %v346, 7
      %v348 = vsub.s32 %v345, %v347
      %v349 = vrot.slane %v342, %v348
      %v351 = vmul.f32 %v331, %v349
      %v352 = vld [vmem:[%s3] sm:$0x1]
      %v353 = vmul.f32 %v324, %v351
      %v354 = vsub.f32 %v352, %v353
      %v356 = vlaneseq
      %v357 = vshrl.u32 %v356, 7
      %v358 = vsub.s32 0, %v357
      %v359 = vrot.slane %v351, %v358
      %360 = vrot.lane.b32.xlu0 %v359, 4
      %v361 = vpop.permute.xlu0 %360
      %vm363 = vcmask 31744
      %v364 = vsel %vm363, %v351, %v361
      %v366 = vlaneseq
      %v367 = vshrl.u32 %v366, 7
      %v368 = vsub.s32 0, %v367
      %v369 = vrot.slane %v354, %v368
      %370 = vrot.lane.b32.xlu0 %v369, 4
      %v371 = vpop.permute.xlu0 %370
      %v373 = vsel %vm363, %v354, %v371
      %v374 = vld [vmem:[%s296] sm:$0xf]
      %v375 = vld [vmem:[%s296 + $0x4] sm:$0xf]
      %v376 = vld [vmem:[%s296 + $0x8] sm:$0xf]
      %v377 = vld [vmem:[%s296 + $0xc] sm:$0xf]
      %v378 = vld [vmem:[%s296 + $0x10] sm:$0xf]
      %v379 = vld [vmem:[%s296 + $0x14] sm:$0xf]
      %v380 = vld [vmem:[%s296 + $0x18] sm:$0xf]
      %v381 = vld [vmem:[%s296 + $0x1c] sm:$0xf]
      %v382 = vunpack.c.l.bf16 %v374
      %v383 = vunpack.c.l.bf16 %v375
      %v384 = vunpack.c.l.bf16 %v376
      %v385 = vunpack.c.l.bf16 %v377
      %v386 = vunpack.c.l.bf16 %v378
      %v387 = vunpack.c.l.bf16 %v379
      %v388 = vunpack.c.l.bf16 %v380
      %v389 = vunpack.c.l.bf16 %v381
      %v390 = vlaneseq
      %v391 = vshrl.u32 %v390, 7
      %v392 = vsub.s32 0, %v391
      %v393 = vrot.slane %v364, %v392
      %v394 = vmul.f32 %v382, %v393
      %v395 = vmul.f32 %v383, %v393
      %v396 = vmul.f32 %v384, %v393
      %v397 = vmul.f32 %v385, %v393
      %v398 = vmul.f32 %v386, %v393
      %v399 = vmul.f32 %v387, %v393
      %v400 = vmul.f32 %v388, %v393
      %v401 = vmul.f32 %v389, %v393
      %v402 = vlaneseq
      %v403 = vshrl.u32 %v402, 7
      %v404 = vsub.s32 0, %v403
      %v405 = vrot.slane %v373, %v404
      %v406 = vadd.f32 %v394, %v405
      %v407 = vadd.f32 %v395, %v405
      %v408 = vadd.f32 %v396, %v405
      %v409 = vadd.f32 %v397, %v405
      %v410 = vadd.f32 %v398, %v405
      %v411 = vadd.f32 %v399, %v405
      %v412 = vadd.f32 %v400, %v405
      %v413 = vadd.f32 %v401, %v405
      %v414 = vmax.f32 %v406, 0.0
      %v415 = vmax.f32 %v407, 0.0
      %v416 = vmax.f32 %v408, 0.0
      %v417 = vmax.f32 %v409, 0.0
      %v418 = vmax.f32 %v410, 0.0
      %v419 = vmax.f32 %v411, 0.0
      %v420 = vmax.f32 %v412, 0.0
      %v421 = vmax.f32 %v413, 0.0
      %v422 = vpack.c.bf16 %v415, %v414
      %v423 = vpack.c.bf16 %v417, %v416
      %v424 = vpack.c.bf16 %v419, %v418
      %v425 = vpack.c.bf16 %v421, %v420
      %v426 = vld [vmem:[%s4] sm:$0xf]
      %vm427 = vcmask 64512
      %v429 = vsel %vm427, %v422, 0
      %v432 = vsel %vm427, %v423, 0
      %v435 = vsel %vm427, %v424, 0
      %v438 = vsel %vm427, %v425, 0
      %vm440 = vcmask 1043456
      %v442 = vsel %vm440, %v426, 0
      %444 = vmatprep.subr.bf16.mxu0 0
      %445 = vmatpush1.bf16.msra.mxu0 0
      %446 = vmatprep.subr.bf16.mxu0 0
      %447 = vmatpush1.bf16.msra.mxu0 0
      %448 = vmatprep.subr.bf16.mxu0 0
      %449 = vmatpush1.bf16.msra.mxu0 0
      %450 = vmatprep.subr.bf16.mxu0 0
      %451 = vmatpush1.bf16.msra.mxu0 0
      %452 = vmatprep.subr.bf16.mxu0 0
      %453 = vmatpush1.bf16.msra.mxu0 0
      %454 = vmatprep.subr.bf16.mxu0 0
      %455 = vmatpush1.bf16.msra.mxu0 0
      %456 = vmatprep.subr.bf16.mxu0 0
      %457 = vmatpush1.bf16.msra.mxu0 0
      %458 = vmatprep.subr.bf16.mxu0 0
      %459 = vmatpush1.bf16.msra.mxu0 %v442
      %460 = vmatprep.subr.bf16.mxu0 0
      %461 = vmatpush2.bf16.msra.mxu0 0
      %462 = vmatprep.subr.bf16.mxu0 0
      %463 = vmatpush2.bf16.msra.mxu0 0
      %464 = vmatprep.subr.bf16.mxu0 0
      %465 = vmatpush2.bf16.msra.mxu0 0
      %466 = vmatprep.subr.bf16.mxu0 0
      %467 = vmatpush2.bf16.msra.mxu0 0
      %468 = vmatprep.subr.bf16.mxu0 0
      %469 = vmatpush2.bf16.msra.mxu0 0
      %470 = vmatprep.subr.bf16.mxu0 0
      %471 = vmatpush2.bf16.msra.mxu0 0
      %472 = vmatprep.subr.bf16.mxu0 0
      %473 = vmatpush2.bf16.msra.mxu0 0
      %474 = vmatprep.subr.bf16.mxu0 0
      %475 = vmatpush2.bf16.msra.mxu0 0
      %476 = vmatprep.mubr.bf16.mxu0 0
      %477 = vmatmul.mubr.bf16.gmra.mxu0 %v429
      %v478 = vpop.f32.mrf.mxu0
      %v479 = vadd.f32 0.0, %v478
      %v480 = vpop.f32.mrf.mxu0
      %v481 = vpop.f32.mrf.mxu0
      %v482 = vadd.f32 0.0, %v481
      %v483 = vpop.f32.mrf.mxu0
      %484 = vmatprep.mubr.bf16.mxu0 0
      %485 = vmatmul.mubr.bf16.gmra.mxu0 %v432
      %v486 = vpop.f32.mrf.mxu0
      %v487 = vadd.f32 0.0, %v486
      %v488 = vpop.f32.mrf.mxu0
      %v489 = vpop.f32.mrf.mxu0
      %v490 = vadd.f32 0.0, %v489
      %v491 = vpop.f32.mrf.mxu0
      %492 = vmatprep.mubr.bf16.mxu0 0
      %493 = vmatmul.mubr.bf16.gmra.mxu0 %v435
      %v494 = vpop.f32.mrf.mxu0
      %v495 = vadd.f32 0.0, %v494
      %v496 = vpop.f32.mrf.mxu0
      %v497 = vpop.f32.mrf.mxu0
      %v498 = vadd.f32 0.0, %v497
      %v499 = vpop.f32.mrf.mxu0
      %500 = vmatprep.mubr.bf16.mxu0 0
      %501 = vmatmul.mubr.bf16.gmra.mxu0 %v438
      %v502 = vpop.f32.mrf.mxu0
      %v503 = vadd.f32 0.0, %v502
      %v504 = vpop.f32.mrf.mxu0
      %v505 = vpop.f32.mrf.mxu0
      %v506 = vadd.f32 0.0, %v505
      %v507 = vpop.f32.mrf.mxu0
      %508 = vdwg.mxu0
      %v509 = vpack.c.bf16 %v479, %v479
      %v510 = vpack.c.bf16 %v482, %v482
      %v511 = vpack.c.bf16 %v487, %v487
      %v512 = vpack.c.bf16 %v490, %v490
      %v513 = vpack.c.bf16 %v495, %v495
      %v514 = vpack.c.bf16 %v498, %v498
      %v515 = vpack.c.bf16 %v503, %v503
      %v516 = vpack.c.bf16 %v506, %v506
      %vm517 = vcmask 125952
      %518 = vst.msk [vmem:[%s307] sm:$0xf] %vm517, %v509
      %519 = vst.msk [vmem:[%s307 + $0x4] sm:$0xf] %vm517, %v510
      %520 = vst.msk [vmem:[%s307 + $0x8] sm:$0xf] %vm517, %v511
      %521 = vst.msk [vmem:[%s307 + $0xc] sm:$0xf] %vm517, %v512
      %522 = vst.msk [vmem:[%s307 + $0x10] sm:$0xf] %vm517, %v513
      %523 = vst.msk [vmem:[%s307 + $0x14] sm:$0xf] %vm517, %v514
      %524 = vst.msk [vmem:[%s307 + $0x18] sm:$0xf] %vm517, %v515
      %525 = vst.msk [vmem:[%s307 + $0x1c] sm:$0xf] %vm517, %v516
      %vm526 = vcmask 130048
      %v527 = vsel %vm526, %v479, 0.0
      %v528 = vsel %vm526, %v482, 0.0
      %v529 = vadd.f32 %v527, %v528
      %v530 = vsel %vm526, %v487, 0.0
      %v531 = vadd.f32 %v529, %v530
      %v532 = vsel %vm526, %v490, 0.0
      %v533 = vadd.f32 %v531, %v532
      %v534 = vsel %vm526, %v495, 0.0
      %v535 = vadd.f32 %v533, %v534
      %v536 = vsel %vm526, %v498, 0.0
      %v537 = vadd.f32 %v535, %v536
      %v538 = vsel %vm526, %v503, 0.0
      %v539 = vadd.f32 %v537, %v538
      %v540 = vsel %vm526, %v506, 0.0
      %v541 = vadd.f32 %v539, %v540
      %v542 = vrot.slane %v541, 4
      %v543 = vadd.f32 %v541, %v542
      %v544 = vrot.slane %v543, 2
      %v545 = vadd.f32 %v543, %v544
      %v546 = vrot.slane %v545, 1
      %v547 = vadd.f32 %v545, %v546
      %v548 = vmul.f32 %v479, %v479
      %v549 = vmul.f32 %v482, %v482
      %v550 = vmul.f32 %v487, %v487
      %v551 = vmul.f32 %v490, %v490
      %v552 = vmul.f32 %v495, %v495
      %v553 = vmul.f32 %v498, %v498
      %v554 = vmul.f32 %v503, %v503
      %v555 = vmul.f32 %v506, %v506
      %v556 = vsel %vm526, %v548, 0.0
      %v557 = vsel %vm526, %v549, 0.0
      %v558 = vadd.f32 %v556, %v557
      %v559 = vsel %vm526, %v550, 0.0
      %v560 = vadd.f32 %v558, %v559
      %v561 = vsel %vm526, %v551, 0.0
      %v562 = vadd.f32 %v560, %v561
      %v563 = vsel %vm526, %v552, 0.0
      %v564 = vadd.f32 %v562, %v563
      %v565 = vsel %vm526, %v553, 0.0
      %v566 = vadd.f32 %v564, %v565
      %v567 = vsel %vm526, %v554, 0.0
      %v568 = vadd.f32 %v566, %v567
      %v569 = vsel %vm526, %v555, 0.0
      %v570 = vadd.f32 %v568, %v569
      %v571 = vrot.slane %v570, 4
      %v572 = vadd.f32 %v570, %v571
      %v573 = vrot.slane %v572, 2
      %v574 = vadd.f32 %v572, %v573
      %v575 = vrot.slane %v574, 1
      %v576 = vadd.f32 %v574, %v575
      %578 = vrot.lane.b32.xlu0 %v547, 120
      %v579 = vpop.permute.xlu0 %578
      %v581 = vadd.f32 %v547, %v579
      %583 = vrot.lane.b32.xlu0 %v576, 120
      %v584 = vpop.permute.xlu0 %583
      %v586 = vadd.f32 %v576, %v584
      %v588 = vrot.slane %v586, 7
      %vm590 = vcmask 1040384
      %v591 = vsel %vm590, %v581, %v588
      %vm592 = vcmask 58368
      %593 = vst.msk [vmem:[%s314] sm:$0x3] %vm592, %v591
      %s594 = smul.u32 4, %s23
      %p595 = scmp.lt.s32.totalorder %s22, 1
      %s596 = scalar_select %p595, %s22, 1
      %p597 = scmp.lt.s32.totalorder %s594, 7
      %s598 = scalar_select %p597, %s594, 7
      %s599 = smul.addr %s598, 2
      %s600 = smul.addr %s596, 16
      %s601 = sadd.s32 %s599, %s600
      %s602 = smul.addr %s601, 4
      %s603 = scalar_lea.vmem %s5, %s602
      %s604 = smul.u32 %s22, 2
      %s605 = sadd.s32 %s604, %s23
      %p606 = scmp.lt.s32.totalorder %s605, 3
      %s607 = scalar_select %p606, %s605, 3
      %s608 = smul.addr %s607, 2
      %s609 = scalar_lea.vmem %s6, %s608
      // Predicated region
      $region41: #{improved_ibn_a_decoder_block.6} parent=39 // pred_check
        %p610 = pneg %p162
      $region42: #{improved_ibn_a_decoder_block.6} parent=39 // pred_check_branch
        %612 = sbr.rel (%p610) target = $region44
      $region43: #{improved_ibn_a_decoder_block.6} parent=39 // pred_region
        %s613 = smul.u32 4, %s23
      $region44: #{improved_ibn_a_decoder_block.6} parent=39 // pred_fallthru
        _
      // Predicated region
      $region45: #{improved_ibn_a_decoder_block.6} parent=39 // pred_check
        %p614 = pneg %p192
      $region46: #{improved_ibn_a_decoder_block.6} parent=39 // pred_check_branch
        %616 = sbr.rel (%p614) target = $region48
      $region47: #{improved_ibn_a_decoder_block.6} parent=39 // pred_region
        %s617 = smul.u32 %s22, 2
        %s618 = sadd.s32 %s617, %s23
      $region48: #{improved_ibn_a_decoder_block.6} parent=39 // pred_fallthru
        _
    $region40: #{improved_ibn_a_decoder_block.6} parent=5 // pred_fallthru
      _
    %p619 = scmp.le.s32.totalorder 2, %s13
    // Predicated region
    $region49: #{improved_ibn_a_decoder_block.6} parent=5 // pred_check
      %p620 = pneg %p619
    $region50: #{improved_ibn_a_decoder_block.6} parent=5 // pred_check_branch
      %622 = sbr.rel (%p620) target = $region52
    $region51: #{improved_ibn_a_decoder_block.6} parent=5 // pred_region
      %s623 = ssub.s32 %s13, 2
      // Predicated region
      $region53: #{improved_ibn_a_decoder_block.6} parent=51 // pred_check
        %p624 = pneg %p168
      $region54: #{improved_ibn_a_decoder_block.6} parent=51 // pred_check_branch
        %626 = sbr.rel (%p624) target = $region56
      $region55: #{improved_ibn_a_decoder_block.6} parent=51 // pred_region
        %s627 = smul.u32 4, %s25
        %p628 = scmp.lt.s32.totalorder %s24, 1
        %s629 = scalar_select %p628, %s24, 1
        %p630 = scmp.lt.s32.totalorder %s627, 7
        %s631 = scalar_select %p630, %s627, 7
        %s632 = smul.addr %s631, 2
        %s633 = smul.addr %s629, 16
        %s634 = sadd.s32 %s632, %s633
        %s635 = smul.addr %s634, 4
        %s636 = scalar_lea.vmem %s5, %s635
      $region56: #{improved_ibn_a_decoder_block.6} parent=51 // pred_fallthru
        _
      // Predicated region
      $region57: #{improved_ibn_a_decoder_block.6} parent=51 // pred_check
        %p637 = pneg %p198
      $region58: #{improved_ibn_a_decoder_block.6} parent=51 // pred_check_branch
        %639 = sbr.rel (%p637) target = $region60
      $region59: #{improved_ibn_a_decoder_block.6} parent=51 // pred_region
        %s640 = smul.u32 %s24, 2
        %s641 = sadd.s32 %s640, %s25
        %p642 = scmp.lt.s32.totalorder %s641, 3
        %s643 = scalar_select %p642, %s641, 3
        %s644 = smul.addr %s643, 2
        %s645 = scalar_lea.vmem %s6, %s644
      $region60: #{improved_ibn_a_decoder_block.6} parent=51 // pred_fallthru
        _
    $region52: #{improved_ibn_a_decoder_block.6} parent=5 // pred_fallthru
      _
  $region6: #{improved_ibn_a_decoder_block.6} parent=0 // loop_footer
    %s17 = sadd.s32 1, %s13
  $region7: #{improved_ibn_a_decoder_block.6} parent=0 // loop_footer_branch
    %12 = sbr.rel target = $region3
  $region8: #{improved_ibn_a_decoder_block.6} parent=0 // loop_exit
    _

// kernel: improved_ibn_a_decoder_block.4
$region0: #{improved_ibn_a_decoder_block.4}
  #allocation0 [shape = 'u32[]', space=smem, size = 0x4, offset = 0x4, fixed_abs, tag = 'smem constant byte address 0x4 - core index']
  #allocation1 [shape = 'u32[144,128]{1,0:T(1,128)}', space=vmem, size = 0x12000, scoped, tag = 'internal scratch']
  %s0 = inlined_call_operand.vmem [shape: bf16[2,64,16], index: 0, kind: input, shape index: {}]
  %s1 = inlined_call_operand.vmem [shape: bf16[16,4], index: 1, kind: input, shape index: {}]
  %s2 = inlined_call_operand.vmem [shape: bf16[2,64,4], index: 2, kind: output, shape index: {0}]
  %s3 = inlined_call_operand.vmem [shape: f32[2,2,4], index: 3, kind: output, shape index: {1}]
  %4 = xla_tuple %s2, %s3
  %s5 = sld [smem:[#allocation0]]
  $region53: #{improved_ibn_a_decoder_block.4} parent=0
    _
  %s7 = ssub.s32 1, %s5
  %s8 = scalar_select 0, %s7, %s5
  loop: start=0, step=1, limit=6
  $region2: #{improved_ibn_a_decoder_block.4} parent=0 // loop_pre_header
    _
  $region3: #{improved_ibn_a_decoder_block.4} parent=0 // loop_header
    %s10 = sphi 0, %s14
    %p11 = scmp.ge.s32.totalorder %s10, 6
    %s17 = sphi 0, %s29
    %s18 = sphi 0, %s25
    %s19 = sphi 0, %s17
    %s20 = sphi 0, %s18
    %s21 = sphi 0, %s19
    %s22 = sphi 0, %s20
    %s34 = sphi 0, %s36
    %s37 = sphi 0, %s34
    %s38 = sphi 0, %s37
    %s54 = sphi 0, %s38
    %s58 = sphi 0, %s58
    %s60 = sphi 0, %s58
    %s61 = sphi 0, %s60
    %s75 = sphi 0, %s61
    %s83 = sphi 0, %s85
    %s86 = sphi 0, %s83
    %s87 = sphi 0, %s86
    %s103 = sphi 0, %s87
    %s109 = sphi 0, %s111
    %s112 = sphi 0, %s109
    %s113 = sphi 0, %s112
    %s129 = sphi 0, %s113
  $region4: #{improved_ibn_a_decoder_block.4} parent=0 // loop_header_branch
    %13 = sbr.rel (%p11) target = $region8
  $region5: #{improved_ibn_a_decoder_block.4} parent=0 // loop_body
    %s15 = ssub.s32 %s10, 1
    %s16 = ssub.s32 %s10, 2
    %s23 = sadd.s32 1, %s18
    %p24 = scmp.ge.s32.totalorder %s23, 2
    %s25 = scalar_select %p24, 0, %s23
    %s26 = sadd.s32 1, %s17
    %s27 = scalar_select %p24, %s26, %s17
    %p28 = scmp.ge.s32.totalorder %s27, 2
    %s29 = scalar_select %p28, 0, %s27
    %s30 = ssub.s32 %s17, %s29
    %s31 = ssub.s32 %s18, %s25
    %s32 = sor.u32 %s30, %s31
    %p33 = scmp.eq.s32.totalorder %s32, 0
    %s35 = sadd.s32 %s34, 1
    %s36 = scalar_select %p33, %s34, %s35
    %p39 = pneg %p33
    %p40 = scmp.eq.s32.totalorder %s10, 3
    %p41 = por %p39, %p40
    %p42 = scmp.ne.s32.totalorder %s34, %s37
    %p43 = scmp.eq.s32.totalorder %s10, 0
    %p44 = por %p42, %p43
    %p45 = scmp.ne.s32.totalorder %s34, %s37
    %p46 = scmp.eq.s32.totalorder %s15, 3
    %p47 = por %p45, %p46
    %p48 = scmp.ne.s32.totalorder %s37, %s38
    %p49 = scmp.eq.s32.totalorder %s15, 0
    %p50 = por %p48, %p49
    %p51 = scmp.ne.s32.totalorder %s37, %s38
    %p52 = scmp.eq.s32.totalorder %s16, 3
    %p53 = por %p51, %p52
    %p55 = scmp.ne.s32.totalorder %s38, %s54
    %p56 = scmp.eq.s32.totalorder %s16, 0
    %p57 = por %p55, %p56
    %s59 = sadd.s32 %s58, 1
    %p62 = scmp.eq.s32.totalorder %s10, 3
    %p63 = scmp.ne.s32.totalorder %s58, %s60
    %p64 = scmp.eq.s32.totalorder %s10, 0
    %p65 = por %p63, %p64
    %p66 = scmp.ne.s32.totalorder %s58, %s60
    %p67 = scmp.eq.s32.totalorder %s15, 3
    %p68 = por %p66, %p67
    %p69 = scmp.ne.s32.totalorder %s60, %s61
    %p70 = scmp.eq.s32.totalorder %s15, 0
    %p71 = por %p69, %p70
    %p72 = scmp.ne.s32.totalorder %s60, %s61
    %p73 = scmp.eq.s32.totalorder %s16, 3
    %p74 = por %p72, %p73
    %p76 = scmp.ne.s32.totalorder %s61, %s75
    %p77 = scmp.eq.s32.totalorder %s16, 0
    %p78 = por %p76, %p77
    %s79 = ssub.s32 %s17, %s29
    %s80 = ssub.s32 %s18, %s25
    %s81 = sor.u32 %s79, %s80
    %p82 = scmp.eq.s32.totalorder %s81, 0
    %s84 = sadd.s32 %s83, 1
    %s85 = scalar_select %p82, %s83, %s84
    %p88 = pneg %p82
    %p89 = scmp.eq.s32.totalorder %s10, 3
    %p90 = por %p88, %p89
    %p91 = scmp.ne.s32.totalorder %s83, %s86
    %p92 = scmp.eq.s32.totalorder %s10, 0
    %p93 = por %p91, %p92
    %p94 = scmp.ne.s32.totalorder %s83, %s86
    %p95 = scmp.eq.s32.totalorder %s15, 3
    %p96 = por %p94, %p95
    %p97 = scmp.ne.s32.totalorder %s86, %s87
    %p98 = scmp.eq.s32.totalorder %s15, 0
    %p99 = por %p97, %p98
    %p100 = scmp.ne.s32.totalorder %s86, %s87
    %p101 = scmp.eq.s32.totalorder %s16, 3
    %p102 = por %p100, %p101
    %p104 = scmp.ne.s32.totalorder %s87, %s103
    %p105 = scmp.eq.s32.totalorder %s16, 0
    %p106 = por %p104, %p105
    %s107 = ssub.s32 %s17, %s29
    %p108 = scmp.eq.s32.totalorder %s107, 0
    %s110 = sadd.s32 %s109, 1
    %s111 = scalar_select %p108, %s109, %s110
    %p114 = pneg %p108
    %p115 = scmp.eq.s32.totalorder %s10, 3
    %p116 = por %p114, %p115
    %p117 = scmp.ne.s32.totalorder %s109, %s112
    %p118 = scmp.eq.s32.totalorder %s10, 0
    %p119 = por %p117, %p118
    %p120 = scmp.ne.s32.totalorder %s109, %s112
    %p121 = scmp.eq.s32.totalorder %s15, 3
    %p122 = por %p120, %p121
    %p123 = scmp.ne.s32.totalorder %s112, %s113
    %p124 = scmp.eq.s32.totalorder %s15, 0
    %p125 = por %p123, %p124
    %p126 = scmp.ne.s32.totalorder %s112, %s113
    %p127 = scmp.eq.s32.totalorder %s16, 3
    %p128 = por %p126, %p127
    %p130 = scmp.ne.s32.totalorder %s113, %s129
    %p131 = scmp.eq.s32.totalorder %s16, 0
    %p132 = por %p130, %p131
    %p133 = scmp.le.s32.totalorder 1, %s10
    %p134 = scmp.lt.s32.totalorder %s10, 5
    %p135 = pnand %p133, %p134
    %p136 = pneg %p135
    // Predicated region
    $region9: #{improved_ibn_a_decoder_block.4} parent=5 // pred_check
      _
    $region10: #{improved_ibn_a_decoder_block.4} parent=5 // pred_check_branch
      %138 = sbr.rel (%p135) target = $region12
    $region11: #{improved_ibn_a_decoder_block.4} parent=5 // pred_region
      %s139 = ssub.s32 %s10, 1
      // Predicated region
      $region13: #{improved_ibn_a_decoder_block.4} parent=11 // pred_check
        %p140 = pneg %p71
      $region14: #{improved_ibn_a_decoder_block.4} parent=11 // pred_check_branch
        %142 = sbr.rel (%p140) target = $region16
      $region15: #{improved_ibn_a_decoder_block.4} parent=11 // pred_region
        _
      $region16: #{improved_ibn_a_decoder_block.4} parent=11 // pred_fallthru
        _
    $region12: #{improved_ibn_a_decoder_block.4} parent=5 // pred_fallthru
      _
    %p143 = scmp.lt.s32.totalorder %s10, 4
    // Predicated region
    $region17: #{improved_ibn_a_decoder_block.4} parent=5 // pred_check
      %p144 = pneg %p143
    $region18: #{improved_ibn_a_decoder_block.4} parent=5 // pred_check_branch
      %146 = sbr.rel (%p144) target = $region20
    $region19: #{improved_ibn_a_decoder_block.4} parent=5 // pred_region
      // Predicated region
      $region21: #{improved_ibn_a_decoder_block.4} parent=19 // pred_check
        %p147 = pneg %p44
      $region22: #{improved_ibn_a_decoder_block.4} parent=19 // pred_check_branch
        %149 = sbr.rel (%p147) target = $region24
      $region23: #{improved_ibn_a_decoder_block.4} parent=19 // pred_region
        %s150 = smul.u32 4, %s18
        %p151 = scmp.lt.s32.totalorder %s17, 1
        %s152 = scalar_select %p151, %s17, 1
        %p153 = scmp.lt.s32.totalorder %s150, 7
        %s154 = scalar_select %p153, %s150, 7
        %s155 = smul.addr %s152, 8
        %s156 = sadd.s32 %s154, %s155
        %s157 = smul.addr %s156, 4
        %s158 = scalar_lea.vmem %s0, %s157
        %s159 = smul.u32 4, %s18
      $region24: #{improved_ibn_a_decoder_block.4} parent=19 // pred_fallthru
        _
    $region20: #{improved_ibn_a_decoder_block.4} parent=5 // pred_fallthru
      _
    %p160 = scmp.le.s32.totalorder 1, %s10
    %p161 = scmp.lt.s32.totalorder %s10, 5
    %p162 = pnand %p160, %p161
    %p163 = pneg %p162
    // Predicated region
    $region25: #{improved_ibn_a_decoder_block.4} parent=5 // pred_check
      _
    $region26: #{improved_ibn_a_decoder_block.4} parent=5 // pred_check_branch
      %165 = sbr.rel (%p162) target = $region28
    $region27: #{improved_ibn_a_decoder_block.4} parent=5 // pred_region
      %s166 = ssub.s32 %s10, 1
      %s167 = smul.u32 4, %s20
      %p168 = scmp.lt.s32.totalorder %s19, 1
      %s169 = scalar_select %p168, %s19, 1
      %p170 = scmp.lt.s32.totalorder %s167, 7
      %s171 = scalar_select %p170, %s167, 7
      %s172 = smul.addr %s169, 8
      %s173 = sadd.s32 %s171, %s172
      %s174 = smul.addr %s173, 4
      %s175 = scalar_lea.vmem %s0, %s174
      %p176 = pneg %p50
      %p177 = pneg %p47
      %p178 = pneg %p71
      %p179 = pneg %p68
      %p180 = pneg %p99
      %p181 = pneg %p96
      %s182 = smul.u32 4, %s20
      %p183 = scmp.lt.s32.totalorder %s19, 1
      %s184 = scalar_select %p183, %s19, 1
      %p185 = scmp.lt.s32.totalorder %s182, 7
      %s186 = scalar_select %p185, %s182, 7
      %s187 = smul.addr %s184, 8
      %s188 = sadd.s32 %s186, %s187
      %s189 = smul.addr %s188, 4
      %s190 = scalar_lea.vmem %s2, %s189
      %p191 = pneg %p125
      %p192 = pneg %p122
      %p193 = scmp.lt.s32.totalorder %s19, 1
      %s194 = scalar_select %p193, %s19, 1
      %s195 = smul.addr %s194, 2
      %s196 = scalar_lea.vmem %s3, %s195
      %s197 = smul.u32 4, %s20
      %p198 = scmp.lt.s32.totalorder %s19, 1
      %s199 = scalar_select %p198, %s19, 1
      %p200 = scmp.lt.s32.totalorder %s197, 7
      %s201 = scalar_select %p200, %s197, 7
      %s202 = smul.addr %s199, 8
      %s203 = sadd.s32 %s201, %s202
      %s204 = smul.addr %s203, 4
      %s205 = scalar_lea.vmem %s0, %s204
      %s206 = smul.u32 4, %s20
      %s207 = smul.u32 4, %s20
      %p208 = scmp.lt.s32.totalorder %s19, 1
      %s209 = scalar_select %p208, %s19, 1
      %p210 = scmp.lt.s32.totalorder %s207, 7
      %s211 = scalar_select %p210, %s207, 7
      %s212 = smul.addr %s209, 8
      %s213 = sadd.s32 %s211, %s212
      %s214 = smul.addr %s213, 4
      %s215 = scalar_lea.vmem %s2, %s214
      %s216 = smul.u32 4, %s20
      %p217 = scmp.lt.s32.totalorder %s19, 1
      %s218 = scalar_select %p217, %s19, 1
      %s219 = smul.addr %s218, 2
      %s220 = scalar_lea.vmem %s3, %s219
      %v222 = vld [vmem:[%s205] sm:$0xf]
      %v223 = vld [vmem:[%s205 + $0x4] sm:$0xf]
      %v224 = vld [vmem:[%s205 + $0x8] sm:$0xf]
      %v225 = vld [vmem:[%s205 + $0xc] sm:$0xf]
      %v226 = vld [vmem:[%s1] sm:$0xf]
      %v227 = vld [vmem:[%s1 + $0x4] sm:$0xf]
      %v232 = vunpack.c.l.b16 %v222
      %v233 = vunpack.c.l.b16 %v223
      %v234 = vunpack.c.l.b16 %v224
      %v235 = vunpack.c.l.b16 %v225
      %v236 = vpack.c.b16 %v233, %v232
      %v237 = vpack.c.b16 %v235, %v234
      %v240 = vunpack.c.l.b16 %v226
      %v241 = vunpack.c.l.b16 %v227
      %v242 = vpack.c.b16 %v241, %v240
      %vm244 = vcmask 130048
      %v246 = vsel %vm244, %v236, 0
      %v249 = vsel %vm244, %v237, 0
      %251 = vmatprep.subr.bf16.mxu0 0
      %252 = vmatpush1.bf16.msra.mxu0 0
      %253 = vmatprep.subr.bf16.mxu0 0
      %254 = vmatpush1.bf16.msra.mxu0 0
      %255 = vmatprep.subr.bf16.mxu0 0
      %256 = vmatpush1.bf16.msra.mxu0 0
      %257 = vmatprep.subr.bf16.mxu0 0
      %258 = vmatpush1.bf16.msra.mxu0 0
      %259 = vmatprep.subr.bf16.mxu0 0
      %260 = vmatpush1.bf16.msra.mxu0 0
      %261 = vmatprep.subr.bf16.mxu0 0
      %262 = vmatpush1.bf16.msra.mxu0 0
      %263 = vmatprep.subr.bf16.mxu0 0
      %264 = vmatpush1.bf16.msra.mxu0 0
      %265 = vmatprep.subr.bf16.mxu0 0
      %266 = vmatpush1.bf16.msra.mxu0 %v242
      %267 = vmatprep.subr.bf16.mxu0 0
      %268 = vmatpush2.bf16.msra.mxu0 0
      %269 = vmatprep.subr.bf16.mxu0 0
      %270 = vmatpush2.bf16.msra.mxu0 0
      %271 = vmatprep.subr.bf16.mxu0 0
      %272 = vmatpush2.bf16.msra.mxu0 0
      %273 = vmatprep.subr.bf16.mxu0 0
      %274 = vmatpush2.bf16.msra.mxu0 0
      %275 = vmatprep.subr.bf16.mxu0 0
      %276 = vmatpush2.bf16.msra.mxu0 0
      %277 = vmatprep.subr.bf16.mxu0 0
      %278 = vmatpush2.bf16.msra.mxu0 0
      %279 = vmatprep.subr.bf16.mxu0 0
      %280 = vmatpush2.bf16.msra.mxu0 0
      %281 = vmatprep.subr.bf16.mxu0 0
      %282 = vmatpush2.bf16.msra.mxu0 0
      %283 = vmatprep.mubr.bf16.mxu0 0
      %284 = vmatmul.mubr.bf16.gmra.mxu0 %v246
      %v285 = vpop.f32.mrf.mxu0
      %v286 = vadd.f32 0.0, %v285
      %v287 = vpop.f32.mrf.mxu0
      %v288 = vpop.f32.mrf.mxu0
      %v289 = vadd.f32 0.0, %v288
      %v290 = vpop.f32.mrf.mxu0
      %291 = vmatprep.mubr.bf16.mxu0 0
      %292 = vmatmul.mubr.bf16.gmra.mxu0 %v249
      %v293 = vpop.f32.mrf.mxu0
      %v294 = vadd.f32 0.0, %v293
      %v295 = vpop.f32.mrf.mxu0
      %v296 = vpop.f32.mrf.mxu0
      %v297 = vadd.f32 0.0, %v296
      %v298 = vpop.f32.mrf.mxu0
      %299 = vdwg.mxu0
      %v300 = vpack.c.bf16 %v289, %v286
      %v301 = vpack.c.bf16 %v297, %v294
      %v304 = vunpack.c.l.b16 %v300
      %v305 = vunpack.c.h.b16 %v300
      %v306 = vunpack.c.l.b16 %v301
      %v307 = vunpack.c.h.b16 %v301
      %v308 = vpack.c.b16 %v304, %v304
      %v309 = vpack.c.b16 %v305, %v305
      %v310 = vpack.c.b16 %v306, %v306
      %v311 = vpack.c.b16 %v307, %v307
      %vm316 = vcmask 27648
      %317 = vst.msk [vmem:[%s215] sm:$0xf] %vm316, %v308
      %318 = vst.msk [vmem:[%s215 + $0x4] sm:$0xf] %vm316, %v309
      %319 = vst.msk [vmem:[%s215 + $0x8] sm:$0xf] %vm316, %v310
      %320 = vst.msk [vmem:[%s215 + $0xc] sm:$0xf] %vm316, %v311
      %p321 = scmp.eq.s32.totalorder %s20, 0
      // Predicated region
      $region29: #{improved_ibn_a_decoder_block.4} parent=27 // pred_check
        %p322 = pneg %p321
      $region30: #{improved_ibn_a_decoder_block.4} parent=27 // pred_check_branch
        %324 = sbr.rel (%p322) target = $region32
      $region31: #{improved_ibn_a_decoder_block.4} parent=27 // pred_region
        %vm325 = vcmask 25600
        %326 = vst.msk [vmem:[%s220] sm:$0x3] %vm325, 0.0
      $region32: #{improved_ibn_a_decoder_block.4} parent=27 // pred_fallthru
        _
      %vm327 = vcmask 31744
      %v328 = vsel %vm327, %v286, 0.0
      %v329 = vsel %vm327, %v289, 0.0
      %v330 = vadd.f32 %v328, %v329
      %v331 = vsel %vm327, %v294, 0.0
      %v332 = vadd.f32 %v330, %v331
      %v333 = vsel %vm327, %v297, 0.0
      %v334 = vadd.f32 %v332, %v333
      %v335 = vrot.slane %v334, 4
      %v336 = vadd.f32 %v334, %v335
      %v337 = vrot.slane %v336, 2
      %v338 = vadd.f32 %v336, %v337
      %v339 = vrot.slane %v338, 1
      %v340 = vadd.f32 %v338, %v339
      %v341 = vmul.f32 %v286, %v286
      %v342 = vmul.f32 %v289, %v289
      %v343 = vmul.f32 %v294, %v294
      %v344 = vmul.f32 %v297, %v297
      %v345 = vsel %vm327, %v341, 0.0
      %v346 = vsel %vm327, %v342, 0.0
      %v347 = vadd.f32 %v345, %v346
      %v348 = vsel %vm327, %v343, 0.0
      %v349 = vadd.f32 %v347, %v348
      %v350 = vsel %vm327, %v344, 0.0
      %v351 = vadd.f32 %v349, %v350
      %v352 = vrot.slane %v351, 4
      %v353 = vadd.f32 %v351, %v352
      %v354 = vrot.slane %v353, 2
      %v355 = vadd.f32 %v353, %v354
      %v356 = vrot.slane %v355, 1
      %v357 = vadd.f32 %v355, %v356
      %v358 = vld [vmem:[%s220] sm:$0x3]
      %vm359 = vcmask 1040384
      %v360 = vsel %vm359, %v340, %v357
      %v361 = vadd.f32 %v358, %v360
      %vm362 = vcmask 25600
      %363 = vst.msk [vmem:[%s220] sm:$0x3] %vm362, %v361
      %s364 = smul.u32 4, %s20
      %p365 = scmp.lt.s32.totalorder %s19, 1
      %s366 = scalar_select %p365, %s19, 1
      %p367 = scmp.lt.s32.totalorder %s364, 7
      %s368 = scalar_select %p367, %s364, 7
      %s369 = smul.addr %s366, 8
      %s370 = sadd.s32 %s368, %s369
      %s371 = smul.addr %s370, 4
      %s372 = scalar_lea.vmem %s2, %s371
      %p373 = scmp.lt.s32.totalorder %s19, 1
      %s374 = scalar_select %p373, %s19, 1
      %s375 = smul.addr %s374, 2
      %s376 = scalar_lea.vmem %s3, %s375
      // Predicated region
      $region33: #{improved_ibn_a_decoder_block.4} parent=27 // pred_check
        %p377 = pneg %p96
      $region34: #{improved_ibn_a_decoder_block.4} parent=27 // pred_check_branch
        %379 = sbr.rel (%p377) target = $region36
      $region35: #{improved_ibn_a_decoder_block.4} parent=27 // pred_region
        %s380 = smul.u32 4, %s20
      $region36: #{improved_ibn_a_decoder_block.4} parent=27 // pred_fallthru
        _
      // Predicated region
      $region37: #{improved_ibn_a_decoder_block.4} parent=27 // pred_check
        %p381 = pneg %p122
      $region38: #{improved_ibn_a_decoder_block.4} parent=27 // pred_check_branch
        %383 = sbr.rel (%p381) target = $region40
      $region39: #{improved_ibn_a_decoder_block.4} parent=27 // pred_region
        _
      $region40: #{improved_ibn_a_decoder_block.4} parent=27 // pred_fallthru
        _
    $region28: #{improved_ibn_a_decoder_block.4} parent=5 // pred_fallthru
      _
    %p384 = scmp.le.s32.totalorder 2, %s10
    // Predicated region
    $region41: #{improved_ibn_a_decoder_block.4} parent=5 // pred_check
      %p385 = pneg %p384
    $region42: #{improved_ibn_a_decoder_block.4} parent=5 // pred_check_branch
      %387 = sbr.rel (%p385) target = $region44
    $region43: #{improved_ibn_a_decoder_block.4} parent=5 // pred_region
      %s388 = ssub.s32 %s10, 2
      // Predicated region
      $region45: #{improved_ibn_a_decoder_block.4} parent=43 // pred_check
        %p389 = pneg %p102
      $region46: #{improved_ibn_a_decoder_block.4} parent=43 // pred_check_branch
        %391 = sbr.rel (%p389) target = $region48
      $region47: #{improved_ibn_a_decoder_block.4} parent=43 // pred_region
        %s392 = smul.u32 4, %s22
        %p393 = scmp.lt.s32.totalorder %s21, 1
        %s394 = scalar_select %p393, %s21, 1
        %p395 = scmp.lt.s32.totalorder %s392, 7
        %s396 = scalar_select %p395, %s392, 7
        %s397 = smul.addr %s394, 8
        %s398 = sadd.s32 %s396, %s397
        %s399 = smul.addr %s398, 4
        %s400 = scalar_lea.vmem %s2, %s399
      $region48: #{improved_ibn_a_decoder_block.4} parent=43 // pred_fallthru
        _
      // Predicated region
      $region49: #{improved_ibn_a_decoder_block.4} parent=43 // pred_check
        %p401 = pneg %p128
      $region50: #{improved_ibn_a_decoder_block.4} parent=43 // pred_check_branch
        %403 = sbr.rel (%p401) target = $region52
      $region51: #{improved_ibn_a_decoder_block.4} parent=43 // pred_region
        %p404 = scmp.lt.s32.totalorder %s21, 1
        %s405 = scalar_select %p404, %s21, 1
        %s406 = smul.addr %s405, 2
        %s407 = scalar_lea.vmem %s3, %s406
      $region52: #{improved_ibn_a_decoder_block.4} parent=43 // pred_fallthru
        _
    $region44: #{improved_ibn_a_decoder_block.4} parent=5 // pred_fallthru
      _
  $region6: #{improved_ibn_a_decoder_block.4} parent=0 // loop_footer
    %s14 = sadd.s32 1, %s10
  $region7: #{improved_ibn_a_decoder_block.4} parent=0 // loop_footer_branch
    %9 = sbr.rel target = $region3
  $region8: #{improved_ibn_a_decoder_block.4} parent=0 // loop_exit
    _

// kernel: improved_ibn_a_decoder_block.5
$region0: #{improved_ibn_a_decoder_block.5}
  #allocation0 [shape = 'u32[]', space=smem, size = 0x4, offset = 0x4, fixed_abs, tag = 'smem constant byte address 0x4 - core index']
  #allocation1 [shape = 'u32[144,128]{1,0:T(1,128)}', space=vmem, size = 0x12000, scoped, tag = 'internal scratch']
  #allocation2 [shape = 'bf16[10,10,4]{2,1,0:T(8,128)(2,1)}', space=vmem, size = 0xa000, scoped, tag = 'scratch operand']
  %s0 = inlined_call_operand.vmem [shape: bf16[2,64,4], index: 0, kind: input, shape index: {}]
  %s1 = inlined_call_operand.vmem [shape: f32[2,2,4], index: 1, kind: input, shape index: {}]
  %s2 = inlined_call_operand.vmem [shape: f32[1,4], index: 2, kind: input, shape index: {}]
  %s3 = inlined_call_operand.vmem [shape: f32[1,4], index: 3, kind: input, shape index: {}]
  %s4 = inlined_call_operand.vmem [shape: bf16[4,4,4,4], index: 4, kind: input, shape index: {}]
  %s5 = inlined_call_operand.vmem [shape: bf16[2,8,2,8,8], index: 5, kind: output, shape index: {0}]
  %s6 = inlined_call_operand.vmem [shape: f32[2,2,4], index: 6, kind: output, shape index: {1}]
  %7 = xla_tuple %s5, %s6
  %s8 = sld [smem:[#allocation0]]
  $region61: #{improved_ibn_a_decoder_block.5} parent=0
    _
  %s10 = ssub.s32 1, %s8
  %s11 = scalar_select 0, %s10, %s8
  loop: start=0, step=1, limit=4
  $region2: #{improved_ibn_a_decoder_block.5} parent=0 // loop_pre_header
    _
  $region3: #{improved_ibn_a_decoder_block.5} parent=0 // loop_header
    %s13 = sphi 0, %s17
    %p14 = scmp.ge.s32.totalorder %s13, 4
    %s23 = sphi 0, %s25
    %s26 = sphi 0, %s23
    %s27 = sphi 0, %s26
    %s43 = sphi 0, %s27
    %s47 = sphi 0, %s47
    %s49 = sphi 0, %s47
    %s50 = sphi 0, %s49
    %s64 = sphi 0, %s50
    %s68 = sphi 0, %s68
    %s70 = sphi 0, %s68
    %s71 = sphi 0, %s70
    %s85 = sphi 0, %s71
    %s89 = sphi 0, %s89
    %s91 = sphi 0, %s89
    %s92 = sphi 0, %s91
    %s106 = sphi 0, %s92
    %s110 = sphi 0, %s110
    %s112 = sphi 0, %s110
    %s113 = sphi 0, %s112
    %s127 = sphi 0, %s113
    %s133 = sphi 0, %s135
    %s136 = sphi 0, %s133
    %s137 = sphi 0, %s136
    %s153 = sphi 0, %s137
    %s159 = sphi 0, %s161
    %s162 = sphi 0, %s159
    %s163 = sphi 0, %s162
    %s179 = sphi 0, %s163
  $region4: #{improved_ibn_a_decoder_block.5} parent=0 // loop_header_branch
    %16 = sbr.rel (%p14) target = $region8
  $region5: #{improved_ibn_a_decoder_block.5} parent=0 // loop_body
    %s18 = ssub.s32 %s13, 1
    %s19 = ssub.s32 %s13, 2
    %s20 = sadd.s32 %s13, 1
    %s21 = ssub.s32 %s13, %s20
    %p22 = scmp.eq.s32.totalorder %s21, 0
    %s24 = sadd.s32 %s23, 1
    %s25 = scalar_select %p22, %s23, %s24
    %p28 = pneg %p22
    %p29 = scmp.eq.s32.totalorder %s13, 1
    %p30 = por %p28, %p29
    %p31 = scmp.ne.s32.totalorder %s23, %s26
    %p32 = scmp.eq.s32.totalorder %s13, 0
    %p33 = por %p31, %p32
    %p34 = scmp.ne.s32.totalorder %s23, %s26
    %p35 = scmp.eq.s32.totalorder %s18, 1
    %p36 = por %p34, %p35
    %p37 = scmp.ne.s32.totalorder %s26, %s27
    %p38 = scmp.eq.s32.totalorder %s18, 0
    %p39 = por %p37, %p38
    %p40 = scmp.ne.s32.totalorder %s26, %s27
    %p41 = scmp.eq.s32.totalorder %s19, 1
    %p42 = por %p40, %p41
    %p44 = scmp.ne.s32.totalorder %s27, %s43
    %p45 = scmp.eq.s32.totalorder %s19, 0
    %p46 = por %p44, %p45
    %s48 = sadd.s32 %s47, 1
    %p51 = scmp.eq.s32.totalorder %s13, 1
    %p52 = scmp.ne.s32.totalorder %s47, %s49
    %p53 = scmp.eq.s32.totalorder %s13, 0
    %p54 = por %p52, %p53
    %p55 = scmp.ne.s32.totalorder %s47, %s49
    %p56 = scmp.eq.s32.totalorder %s18, 1
    %p57 = por %p55, %p56
    %p58 = scmp.ne.s32.totalorder %s49, %s50
    %p59 = scmp.eq.s32.totalorder %s18, 0
    %p60 = por %p58, %p59
    %p61 = scmp.ne.s32.totalorder %s49, %s50
    %p62 = scmp.eq.s32.totalorder %s19, 1
    %p63 = por %p61, %p62
    %p65 = scmp.ne.s32.totalorder %s50, %s64
    %p66 = scmp.eq.s32.totalorder %s19, 0
    %p67 = por %p65, %p66
    %s69 = sadd.s32 %s68, 1
    %p72 = scmp.eq.s32.totalorder %s13, 1
    %p73 = scmp.ne.s32.totalorder %s68, %s70
    %p74 = scmp.eq.s32.totalorder %s13, 0
    %p75 = por %p73, %p74
    %p76 = scmp.ne.s32.totalorder %s68, %s70
    %p77 = scmp.eq.s32.totalorder %s18, 1
    %p78 = por %p76, %p77
    %p79 = scmp.ne.s32.totalorder %s70, %s71
    %p80 = scmp.eq.s32.totalorder %s18, 0
    %p81 = por %p79, %p80
    %p82 = scmp.ne.s32.totalorder %s70, %s71
    %p83 = scmp.eq.s32.totalorder %s19, 1
    %p84 = por %p82, %p83
    %p86 = scmp.ne.s32.totalorder %s71, %s85
    %p87 = scmp.eq.s32.totalorder %s19, 0
    %p88 = por %p86, %p87
    %s90 = sadd.s32 %s89, 1
    %p93 = scmp.eq.s32.totalorder %s13, 1
    %p94 = scmp.ne.s32.totalorder %s89, %s91
    %p95 = scmp.eq.s32.totalorder %s13, 0
    %p96 = por %p94, %p95
    %p97 = scmp.ne.s32.totalorder %s89, %s91
    %p98 = scmp.eq.s32.totalorder %s18, 1
    %p99 = por %p97, %p98
    %p100 = scmp.ne.s32.totalorder %s91, %s92
    %p101 = scmp.eq.s32.totalorder %s18, 0
    %p102 = por %p100, %p101
    %p103 = scmp.ne.s32.totalorder %s91, %s92
    %p104 = scmp.eq.s32.totalorder %s19, 1
    %p105 = por %p103, %p104
    %p107 = scmp.ne.s32.totalorder %s92, %s106
    %p108 = scmp.eq.s32.totalorder %s19, 0
    %p109 = por %p107, %p108
    %s111 = sadd.s32 %s110, 1
    %p114 = scmp.eq.s32.totalorder %s13, 1
    %p115 = scmp.ne.s32.totalorder %s110, %s112
    %p116 = scmp.eq.s32.totalorder %s13, 0
    %p117 = por %p115, %p116
    %p118 = scmp.ne.s32.totalorder %s110, %s112
    %p119 = scmp.eq.s32.totalorder %s18, 1
    %p120 = por %p118, %p119
    %p121 = scmp.ne.s32.totalorder %s112, %s113
    %p122 = scmp.eq.s32.totalorder %s18, 0
    %p123 = por %p121, %p122
    %p124 = scmp.ne.s32.totalorder %s112, %s113
    %p125 = scmp.eq.s32.totalorder %s19, 1
    %p126 = por %p124, %p125
    %p128 = scmp.ne.s32.totalorder %s113, %s127
    %p129 = scmp.eq.s32.totalorder %s19, 0
    %p130 = por %p128, %p129
    %s131 = ssub.s32 %s13, %s20
    %p132 = scmp.eq.s32.totalorder %s131, 0
    %s134 = sadd.s32 %s133, 1
    %s135 = scalar_select %p132, %s133, %s134
    %p138 = pneg %p132
    %p139 = scmp.eq.s32.totalorder %s13, 1
    %p140 = por %p138, %p139
    %p141 = scmp.ne.s32.totalorder %s133, %s136
    %p142 = scmp.eq.s32.totalorder %s13, 0
    %p143 = por %p141, %p142
    %p144 = scmp.ne.s32.totalorder %s133, %s136
    %p145 = scmp.eq.s32.totalorder %s18, 1
    %p146 = por %p144, %p145
    %p147 = scmp.ne.s32.totalorder %s136, %s137
    %p148 = scmp.eq.s32.totalorder %s18, 0
    %p149 = por %p147, %p148
    %p150 = scmp.ne.s32.totalorder %s136, %s137
    %p151 = scmp.eq.s32.totalorder %s19, 1
    %p152 = por %p150, %p151
    %p154 = scmp.ne.s32.totalorder %s137, %s153
    %p155 = scmp.eq.s32.totalorder %s19, 0
    %p156 = por %p154, %p155
    %s157 = ssub.s32 %s13, %s20
    %p158 = scmp.eq.s32.totalorder %s157, 0
    %s160 = sadd.s32 %s159, 1
    %s161 = scalar_select %p158, %s159, %s160
    %p164 = pneg %p158
    %p165 = scmp.eq.s32.totalorder %s13, 1
    %p166 = por %p164, %p165
    %p167 = scmp.ne.s32.totalorder %s159, %s162
    %p168 = scmp.eq.s32.totalorder %s13, 0
    %p169 = por %p167, %p168
    %p170 = scmp.ne.s32.totalorder %s159, %s162
    %p171 = scmp.eq.s32.totalorder %s18, 1
    %p172 = por %p170, %p171
    %p173 = scmp.ne.s32.totalorder %s162, %s163
    %p174 = scmp.eq.s32.totalorder %s18, 0
    %p175 = por %p173, %p174
    %p176 = scmp.ne.s32.totalorder %s162, %s163
    %p177 = scmp.eq.s32.totalorder %s19, 1
    %p178 = por %p176, %p177
    %p180 = scmp.ne.s32.totalorder %s163, %s179
    %p181 = scmp.eq.s32.totalorder %s19, 0
    %p182 = por %p180, %p181
    %p183 = scmp.le.s32.totalorder 1, %s13
    %p184 = scmp.lt.s32.totalorder %s13, 3
    %p185 = pnand %p183, %p184
    %p186 = pneg %p185
    // Predicated region
    $region9: #{improved_ibn_a_decoder_block.5} parent=5 // pred_check
      _
    $region10: #{improved_ibn_a_decoder_block.5} parent=5 // pred_check_branch
      %188 = sbr.rel (%p185) target = $region12
    $region11: #{improved_ibn_a_decoder_block.5} parent=5 // pred_region
      %s189 = ssub.s32 %s13, 1
      // Predicated region
      $region13: #{improved_ibn_a_decoder_block.5} parent=11 // pred_check
        %p190 = pneg %p60
      $region14: #{improved_ibn_a_decoder_block.5} parent=11 // pred_check_branch
        %192 = sbr.rel (%p190) target = $region16
      $region15: #{improved_ibn_a_decoder_block.5} parent=11 // pred_region
        _
      $region16: #{improved_ibn_a_decoder_block.5} parent=11 // pred_fallthru
        _
      // Predicated region
      $region17: #{improved_ibn_a_decoder_block.5} parent=11 // pred_check
        %p193 = pneg %p81
      $region18: #{improved_ibn_a_decoder_block.5} parent=11 // pred_check_branch
        %195 = sbr.rel (%p193) target = $region20
      $region19: #{improved_ibn_a_decoder_block.5} parent=11 // pred_region
        _
      $region20: #{improved_ibn_a_decoder_block.5} parent=11 // pred_fallthru
        _
      // Predicated region
      $region21: #{improved_ibn_a_decoder_block.5} parent=11 // pred_check
        %p196 = pneg %p102
      $region22: #{improved_ibn_a_decoder_block.5} parent=11 // pred_check_branch
        %198 = sbr.rel (%p196) target = $region24
      $region23: #{improved_ibn_a_decoder_block.5} parent=11 // pred_region
        _
      $region24: #{improved_ibn_a_decoder_block.5} parent=11 // pred_fallthru
        _
      // Predicated region
      $region25: #{improved_ibn_a_decoder_block.5} parent=11 // pred_check
        %p199 = pneg %p123
      $region26: #{improved_ibn_a_decoder_block.5} parent=11 // pred_check_branch
        %201 = sbr.rel (%p199) target = $region28
      $region27: #{improved_ibn_a_decoder_block.5} parent=11 // pred_region
        _
      $region28: #{improved_ibn_a_decoder_block.5} parent=11 // pred_fallthru
        _
    $region12: #{improved_ibn_a_decoder_block.5} parent=5 // pred_fallthru
      _
    %p202 = scmp.lt.s32.totalorder %s13, 2
    // Predicated region
    $region29: #{improved_ibn_a_decoder_block.5} parent=5 // pred_check
      %p203 = pneg %p202
    $region30: #{improved_ibn_a_decoder_block.5} parent=5 // pred_check_branch
      %205 = sbr.rel (%p203) target = $region32
    $region31: #{improved_ibn_a_decoder_block.5} parent=5 // pred_region
      // Predicated region
      $region33: #{improved_ibn_a_decoder_block.5} parent=31 // pred_check
        %p206 = pneg %p33
      $region34: #{improved_ibn_a_decoder_block.5} parent=31 // pred_check_branch
        %208 = sbr.rel (%p206) target = $region36
      $region35: #{improved_ibn_a_decoder_block.5} parent=31 // pred_region
        %p209 = scmp.lt.s32.totalorder %s13, 1
        %s210 = scalar_select %p209, %s13, 1
        %s211 = smul.addr %s210, 8
        %s212 = smul.addr %s211, 4
        %s213 = scalar_lea.vmem %s0, %s212
      $region36: #{improved_ibn_a_decoder_block.5} parent=31 // pred_fallthru
        _
    $region32: #{improved_ibn_a_decoder_block.5} parent=5 // pred_fallthru
      _
    %p214 = scmp.le.s32.totalorder 1, %s13
    %p215 = scmp.lt.s32.totalorder %s13, 3
    %p216 = pnand %p214, %p215
    %p217 = pneg %p216
    // Predicated region
    $region37: #{improved_ibn_a_decoder_block.5} parent=5 // pred_check
      _
    $region38: #{improved_ibn_a_decoder_block.5} parent=5 // pred_check_branch
      %219 = sbr.rel (%p216) target = $region40
    $region39: #{improved_ibn_a_decoder_block.5} parent=5 // pred_region
      %s220 = ssub.s32 %s13, 1
      %p221 = scmp.lt.s32.totalorder %s18, 1
      %s222 = scalar_select %p221, %s18, 1
      %s223 = smul.addr %s222, 8
      %s224 = smul.addr %s223, 4
      %s225 = scalar_lea.vmem %s0, %s224
      %p226 = pneg %p39
      %p227 = pneg %p36
      %p228 = pneg %p60
      %p229 = pneg %p57
      %p230 = pneg %p81
      %p231 = pneg %p78
      %p232 = pneg %p102
      %p233 = pneg %p99
      %p234 = pneg %p123
      %p235 = pneg %p120
      %p236 = pneg %p149
      %p237 = pneg %p146
      %p238 = scmp.lt.s32.totalorder %s18, 1
      %s239 = scalar_select %p238, %s18, 1
      %s240 = smul.addr %s239, 16
      %s241 = smul.addr %s240, 4
      %s242 = scalar_lea.vmem %s5, %s241
      %p243 = pneg %p175
      %p244 = pneg %p172
      %p245 = scmp.lt.s32.totalorder %s18, 1
      %s246 = scalar_select %p245, %s18, 1
      %s247 = smul.addr %s246, 2
      %s248 = scalar_lea.vmem %s6, %s247
      %p249 = scmp.lt.s32.totalorder %s18, 1
      %s250 = scalar_select %p249, %s18, 1
      %s251 = smul.addr %s250, 8
      %s252 = smul.addr %s251, 4
      %s253 = scalar_lea.vmem %s0, %s252
      %p254 = scmp.lt.s32.totalorder %s18, 1
      %s255 = scalar_select %p254, %s18, 1
      %s256 = smul.addr %s255, 16
      %s257 = smul.addr %s256, 4
      %s258 = scalar_lea.vmem %s5, %s257
      %p259 = scmp.lt.s32.totalorder %s18, 1
      %s260 = scalar_select %p259, %s18, 1
      %s261 = smul.addr %s260, 2
      %s262 = scalar_lea.vmem %s6, %s261
      %s264 = smul.u32 %s18, 2
      %s265 = scalar_lea.vmem %s1, %s264
      %v266 = vld [vmem:[%s265] sm:$0x3]
      %v267 = vmul.f32 %v266, 0.015625
      %v268 = vmul.f32 %v267, %v267
      %v270 = vrot.slane %v268, 7
      %v272 = vsub.f32 %v267, %v270
      %v273 = vmax.f32 %v272, 0.0
      %v274 = vld [vmem:[%s1] sm:$0x3]
      %v275 = vld [vmem:[%s1 + $0x2] sm:$0x3]
      %vm276 = vcmask 25600
      %v277 = vsel %vm276, %v274, 0.0
      %v278 = vsel %vm276, %v275, 0.0
      %v279 = vadd.f32 %v277, %v278
      %v280 = vmul.f32 %v279, 0.0078125
      %v281 = vmul.f32 %v280, %v280
      %v283 = vrot.slane %v281, 7
      %v285 = vsub.f32 %v280, %v283
      %v286 = vmax.f32 %v285, 0.0
      %v287 = vlaneseq
      %v288 = vand.u32 %v287, 127
      %vm289 = vcmp.lt.s32.totalorder %v288, 2
      %v290 = vsel %vm289, %v267, %v280
      %v291 = vsel %vm289, %v273, %v286
      %v292 = vld [vmem:[%s2] sm:$0x1]
      %v293 = vadd.f32 %v291, 1e-05
      %v294 = vrsqrt.pop %v293
      %v297 = vunpack.c.l.s4 1966171168
      %v298 = vunpack.c.0.s8 %v297
      %v299 = vlaneseq
      %v300 = vshrl.u32 %v299, 7
      %v301 = vsub.s32 %v298, %v300
      %v302 = vrot.slane %v294, %v301
      %v303 = vcombine.high %v302, %v302
      %v305 = vunpack.c.l.s4 1966171168
      %v306 = vunpack.c.0.s8 %v305
      %v307 = vlaneseq
      %v308 = vshrl.u32 %v307, 7
      %v309 = vsub.s32 %v306, %v308
      %v310 = vrot.slane %v303, %v309
      %v312 = vmul.f32 %v292, %v310
      %v313 = vld [vmem:[%s3] sm:$0x1]
      %v314 = vmul.f32 %v290, %v312
      %v315 = vsub.f32 %v313, %v314
      %v316 = vld [vmem:[%s253] sm:$0xf]
      %v317 = vld [vmem:[%s253 + $0x4] sm:$0xf]
      %v318 = vld [vmem:[%s253 + $0x8] sm:$0xf]
      %v319 = vld [vmem:[%s253 + $0xc] sm:$0xf]
      %v320 = vld [vmem:[%s253 + $0x10] sm:$0xf]
      %v321 = vld [vmem:[%s253 + $0x14] sm:$0xf]
      %v322 = vld [vmem:[%s253 + $0x18] sm:$0xf]
      %v323 = vld [vmem:[%s253 + $0x1c] sm:$0xf]
      %v324 = vunpack.c.l.bf16 %v316
      %v325 = vunpack.c.l.bf16 %v317
      %v326 = vunpack.c.l.bf16 %v318
      %v327 = vunpack.c.l.bf16 %v319
      %v328 = vunpack.c.l.bf16 %v320
      %v329 = vunpack.c.l.bf16 %v321
      %v330 = vunpack.c.l.bf16 %v322
      %v331 = vunpack.c.l.bf16 %v323
      %v333 = vlaneseq
      %v334 = vshrl.u32 %v333, 7
      %v335 = vsub.s32 0, %v334
      %v336 = vrot.slane %v312, %v335
      %v338 = vmul.f32 %v324, %v336
      %v339 = vmul.f32 %v325, %v336
      %v340 = vmul.f32 %v326, %v336
      %v341 = vmul.f32 %v327, %v336
      %v342 = vmul.f32 %v328, %v336
      %v343 = vmul.f32 %v329, %v336
      %v344 = vmul.f32 %v330, %v336
      %v345 = vmul.f32 %v331, %v336
      %v347 = vlaneseq
      %v348 = vshrl.u32 %v347, 7
      %v349 = vsub.s32 0, %v348
      %v350 = vrot.slane %v315, %v349
      %v352 = vadd.f32 %v338, %v350
      %v353 = vadd.f32 %v339, %v350
      %v354 = vadd.f32 %v340, %v350
      %v355 = vadd.f32 %v341, %v350
      %v356 = vadd.f32 %v342, %v350
      %v357 = vadd.f32 %v343, %v350
      %v358 = vadd.f32 %v344, %v350
      %v359 = vadd.f32 %v345, %v350
      %v360 = vmax.f32 %v352, 0.0
      %v361 = vmax.f32 %v353, 0.0
      %v362 = vmax.f32 %v354, 0.0
      %v363 = vmax.f32 %v355, 0.0
      %v364 = vmax.f32 %v356, 0.0
      %v365 = vmax.f32 %v357, 0.0
      %v366 = vmax.f32 %v358, 0.0
      %v367 = vmax.f32 %v359, 0.0
      %vm368 = vcmask 27648
      %369 = vst.msk [vmem:[#allocation2] sm:$0xf] %vm368, 0
      %vm370 = vcmask 24576
      %371 = vst.msk [vmem:[#allocation2 + $0x4] sm:$0x1] %vm370, 0
      %s372 = scalar_lea.vmem [#allocation2], 72
      %373 = vst.msk [vmem:[%s372] sm:$0xf] %vm368, 0
      %374 = vst.msk [vmem:[%s372 + $0x4] sm:$0x1] %vm370, 0
      %s375 = scalar_lea.vmem [#allocation2], 8
      %vm376 = vcmask 24576
      %vm377 = vsmask.f32 256
      %vm378 = vmand %vm376, %vm377
      %v379 = vld [vmem:[%s375] sm:$0x1]
      %v380 = vsel %vm378, 0, %v379
      %381 = vst [vmem:[%s375] sm:$0x1] %v380
      %v382 = vld [vmem:[%s375 + $0x8] sm:$0x1]
      %v383 = vsel %vm378, 0, %v382
      %384 = vst [vmem:[%s375 + $0x8] sm:$0x1] %v383
      %v385 = vld [vmem:[%s375 + $0x10] sm:$0x1]
      %v386 = vsel %vm378, 0, %v385
      %387 = vst [vmem:[%s375 + $0x10] sm:$0x1] %v386
      %v388 = vld [vmem:[%s375 + $0x18] sm:$0x1]
      %v389 = vsel %vm378, 0, %v388
      %390 = vst [vmem:[%s375 + $0x18] sm:$0x1] %v389
      %v391 = vld [vmem:[%s375 + $0x20] sm:$0x1]
      %v392 = vsel %vm378, 0, %v391
      %393 = vst [vmem:[%s375 + $0x20] sm:$0x1] %v392
      %v394 = vld [vmem:[%s375 + $0x28] sm:$0x1]
      %v395 = vsel %vm378, 0, %v394
      %396 = vst [vmem:[%s375 + $0x28] sm:$0x1] %v395
      %v397 = vld [vmem:[%s375 + $0x30] sm:$0x1]
      %v398 = vsel %vm378, 0, %v397
      %399 = vst [vmem:[%s375 + $0x30] sm:$0x1] %v398
      %v400 = vld [vmem:[%s375 + $0x38] sm:$0x1]
      %v401 = vsel %vm378, 0, %v400
      %402 = vst [vmem:[%s375 + $0x38] sm:$0x1] %v401
      %vm403 = vsmask.f32 7938
      %vm404 = vmand %vm376, %vm403
      %v405 = vld [vmem:[%s375 + $0x4] sm:$0x1]
      %v406 = vsel %vm404, 0, %v405
      %407 = vst [vmem:[%s375 + $0x4] sm:$0x1] %v406
      %v408 = vld [vmem:[%s375 + $0xc] sm:$0x1]
      %v409 = vsel %vm404, 0, %v408
      %410 = vst [vmem:[%s375 + $0xc] sm:$0x1] %v409
      %v411 = vld [vmem:[%s375 + $0x14] sm:$0x1]
      %v412 = vsel %vm404, 0, %v411
      %413 = vst [vmem:[%s375 + $0x14] sm:$0x1] %v412
      %v414 = vld [vmem:[%s375 + $0x1c] sm:$0x1]
      %v415 = vsel %vm404, 0, %v414
      %416 = vst [vmem:[%s375 + $0x1c] sm:$0x1] %v415
      %v417 = vld [vmem:[%s375 + $0x24] sm:$0x1]
      %v418 = vsel %vm404, 0, %v417
      %419 = vst [vmem:[%s375 + $0x24] sm:$0x1] %v418
      %v420 = vld [vmem:[%s375 + $0x2c] sm:$0x1]
      %v421 = vsel %vm404, 0, %v420
      %422 = vst [vmem:[%s375 + $0x2c] sm:$0x1] %v421
      %v423 = vld [vmem:[%s375 + $0x34] sm:$0x1]
      %v424 = vsel %vm404, 0, %v423
      %425 = vst [vmem:[%s375 + $0x34] sm:$0x1] %v424
      %v426 = vld [vmem:[%s375 + $0x3c] sm:$0x1]
      %v427 = vsel %vm404, 0, %v426
      %428 = vst [vmem:[%s375 + $0x3c] sm:$0x1] %v427
      %v429 = vpack.c.bf16 %v360, %v360
      %v430 = vpack.c.bf16 %v361, %v361
      %v431 = vpack.c.bf16 %v362, %v362
      %v432 = vpack.c.bf16 %v363, %v363
      %v433 = vpack.c.bf16 %v364, %v364
      %v434 = vpack.c.bf16 %v365, %v365
      %v435 = vpack.c.bf16 %v366, %v366
      %v436 = vpack.c.bf16 %v367, %v367
      %v445 = vunpack.c.l.b16 %v429
      %v446 = vunpack.c.l.b16 %v430
      %v447 = vunpack.c.l.b16 %v431
      %v448 = vunpack.c.l.b16 %v432
      %v449 = vunpack.c.l.b16 %v433
      %v450 = vunpack.c.l.b16 %v434
      %v451 = vunpack.c.l.b16 %v435
      %v452 = vunpack.c.l.b16 %v436
      %v453 = vpack.c.b16 %v445, %v445
      %v454 = vpack.c.b16 %v446, %v446
      %v455 = vpack.c.b16 %v447, %v447
      %v456 = vpack.c.b16 %v448, %v448
      %v457 = vpack.c.b16 %v449, %v449
      %v458 = vpack.c.b16 %v450, %v450
      %v459 = vpack.c.b16 %v451, %v451
      %v460 = vpack.c.b16 %v452, %v452
      %v462 = vshrl.u32 %v453, 16
      %v464 = vrot.slane %v462, 7
      %v465 = vshll.u32 %v453, 16
      %v467 = vor.u32 %v464, %v465
      %v468 = vrot.slane %v464, 4
      %v470 = vshrl.u32 %v454, 16
      %v472 = vrot.slane %v470, 7
      %v473 = vshll.u32 %v454, 16
      %v475 = vor.u32 %v472, %v473
      %v476 = vrot.slane %v472, 4
      %v478 = vshrl.u32 %v455, 16
      %v480 = vrot.slane %v478, 7
      %v481 = vshll.u32 %v455, 16
      %v483 = vor.u32 %v480, %v481
      %v484 = vrot.slane %v480, 4
      %v486 = vshrl.u32 %v456, 16
      %v488 = vrot.slane %v486, 7
      %v489 = vshll.u32 %v456, 16
      %v491 = vor.u32 %v488, %v489
      %v492 = vrot.slane %v488, 4
      %v494 = vshrl.u32 %v457, 16
      %v496 = vrot.slane %v494, 7
      %v497 = vshll.u32 %v457, 16
      %v499 = vor.u32 %v496, %v497
      %v500 = vrot.slane %v496, 4
      %v502 = vshrl.u32 %v458, 16
      %v504 = vrot.slane %v502, 7
      %v505 = vshll.u32 %v458, 16
      %v507 = vor.u32 %v504, %v505
      %v508 = vrot.slane %v504, 4
      %v510 = vshrl.u32 %v459, 16
      %v512 = vrot.slane %v510, 7
      %v513 = vshll.u32 %v459, 16
      %v515 = vor.u32 %v512, %v513
      %v516 = vrot.slane %v512, 4
      %v518 = vshrl.u32 %v460, 16
      %v520 = vrot.slane %v518, 7
      %v521 = vshll.u32 %v460, 16
      %v523 = vor.u32 %v520, %v521
      %v524 = vrot.slane %v520, 4
      %vm541 = vcmask 27648
      %vm542 = vmand %vm541, %vm403
      %v543 = vld [vmem:[%s375] sm:$0xf]
      %v544 = vsel %vm542, %v467, %v543
      %545 = vst [vmem:[%s375] sm:$0xf] %v544
      %v546 = vld [vmem:[%s375 + $0x4] sm:$0x1]
      %v547 = vsel %vm378, %v468, %v546
      %548 = vst [vmem:[%s375 + $0x4] sm:$0x1] %v547
      %v549 = vld [vmem:[%s375 + $0x8] sm:$0xf]
      %v550 = vsel %vm542, %v475, %v549
      %551 = vst [vmem:[%s375 + $0x8] sm:$0xf] %v550
      %v552 = vld [vmem:[%s375 + $0xc] sm:$0x1]
      %v553 = vsel %vm378, %v476, %v552
      %554 = vst [vmem:[%s375 + $0xc] sm:$0x1] %v553
      %v555 = vld [vmem:[%s375 + $0x10] sm:$0xf]
      %v556 = vsel %vm542, %v483, %v555
      %557 = vst [vmem:[%s375 + $0x10] sm:$0xf] %v556
      %v558 = vld [vmem:[%s375 + $0x14] sm:$0x1]
      %v559 = vsel %vm378, %v484, %v558
      %560 = vst [vmem:[%s375 + $0x14] sm:$0x1] %v559
      %v561 = vld [vmem:[%s375 + $0x18] sm:$0xf]
      %v562 = vsel %vm542, %v491, %v561
      %563 = vst [vmem:[%s375 + $0x18] sm:$0xf] %v562
      %v564 = vld [vmem:[%s375 + $0x1c] sm:$0x1]
      %v565 = vsel %vm378, %v492, %v564
      %566 = vst [vmem:[%s375 + $0x1c] sm:$0x1] %v565
      %v567 = vld [vmem:[%s375 + $0x20] sm:$0xf]
      %v568 = vsel %vm542, %v499, %v567
      %569 = vst [vmem:[%s375 + $0x20] sm:$0xf] %v568
      %v570 = vld [vmem:[%s375 + $0x24] sm:$0x1]
      %v571 = vsel %vm378, %v500, %v570
      %572 = vst [vmem:[%s375 + $0x24] sm:$0x1] %v571
      %v573 = vld [vmem:[%s375 + $0x28] sm:$0xf]
      %v574 = vsel %vm542, %v507, %v573
      %575 = vst [vmem:[%s375 + $0x28] sm:$0xf] %v574
      %v576 = vld [vmem:[%s375 + $0x2c] sm:$0x1]
      %v577 = vsel %vm378, %v508, %v576
      %578 = vst [vmem:[%s375 + $0x2c] sm:$0x1] %v577
      %v579 = vld [vmem:[%s375 + $0x30] sm:$0xf]
      %v580 = vsel %vm542, %v515, %v579
      %581 = vst [vmem:[%s375 + $0x30] sm:$0xf] %v580
      %v582 = vld [vmem:[%s375 + $0x34] sm:$0x1]
      %v583 = vsel %vm378, %v516, %v582
      %584 = vst [vmem:[%s375 + $0x34] sm:$0x1] %v583
      %v585 = vld [vmem:[%s375 + $0x38] sm:$0xf]
      %v586 = vsel %vm542, %v523, %v585
      %587 = vst [vmem:[%s375 + $0x38] sm:$0xf] %v586
      %v588 = vld [vmem:[%s375 + $0x3c] sm:$0x1]
      %v589 = vsel %vm378, %v524, %v588
      %590 = vst [vmem:[%s375 + $0x3c] sm:$0x1] %v589
      %v591 = vld [vmem:[%s375] sm:$0xf]
      %v592 = vld [vmem:[%s375 + $0x4] sm:$0x1]
      %v593 = vld [vmem:[%s375 + $0x8] sm:$0xf]
      %v594 = vld [vmem:[%s375 + $0xc] sm:$0x1]
      %v595 = vld [vmem:[%s375 + $0x10] sm:$0xf]
      %v596 = vld [vmem:[%s375 + $0x14] sm:$0x1]
      %v597 = vld [vmem:[%s375 + $0x18] sm:$0xf]
      %v598 = vld [vmem:[%s375 + $0x1c] sm:$0x1]
      %v599 = vld [vmem:[%s375 + $0x20] sm:$0xf]
      %v600 = vld [vmem:[%s375 + $0x24] sm:$0x1]
      %v601 = vld [vmem:[%s375 + $0x28] sm:$0xf]
      %v602 = vld [vmem:[%s375 + $0x2c] sm:$0x1]
      %v603 = vld [vmem:[%s375 + $0x30] sm:$0xf]
      %v604 = vld [vmem:[%s375 + $0x34] sm:$0x1]
      %v605 = vld [vmem:[%s375 + $0x38] sm:$0xf]
      %v606 = vld [vmem:[%s375 + $0x3c] sm:$0x1]
      %vm607 = vsmask.f32 3328
      %vm608 = vsmask.f32 7440
      %vm609 = vmor %vm607, %vm608
      %v611 = vshrl.u32 %v591, 16
      %v613 = vrot.slane %v611, 4
      %v614 = vshll.u32 %v591, 16
      %v616 = vrot.slane %v614, 5
      %v617 = vor.u32 %v613, %v616
      %v618 = vrot.slane %v617, 4
      %v620 = vshll.u32 %v592, 16
      %v622 = vrot.slane %v620, 5
      %v623 = vsel %vm609, %v618, %v622
      %v625 = vshrl.u32 %v593, 16
      %v627 = vrot.slane %v625, 4
      %v628 = vshll.u32 %v593, 16
      %v630 = vrot.slane %v628, 5
      %v631 = vor.u32 %v627, %v630
      %v632 = vrot.slane %v631, 4
      %v634 = vshll.u32 %v594, 16
      %v636 = vrot.slane %v634, 5
      %v637 = vsel %vm609, %v632, %v636
      %v639 = vshrl.u32 %v595, 16
      %v641 = vrot.slane %v639, 4
      %v642 = vshll.u32 %v595, 16
      %v644 = vrot.slane %v642, 5
      %v645 = vor.u32 %v641, %v644
      %v646 = vrot.slane %v645, 4
      %v648 = vshll.u32 %v596, 16
      %v650 = vrot.slane %v648, 5
      %v651 = vsel %vm609, %v646, %v650
      %v653 = vshrl.u32 %v597, 16
      %v655 = vrot.slane %v653, 4
      %v656 = vshll.u32 %v597, 16
      %v658 = vrot.slane %v656, 5
      %v659 = vor.u32 %v655, %v658
      %v660 = vrot.slane %v659, 4
      %v662 = vshll.u32 %v598, 16
      %v664 = vrot.slane %v662, 5
      %v665 = vsel %vm609, %v660, %v664
      %v667 = vshrl.u32 %v599, 16
      %v669 = vrot.slane %v667, 4
      %v670 = vshll.u32 %v599, 16
      %v672 = vrot.slane %v670, 5
      %v673 = vor.u32 %v669, %v672
      %v674 = vrot.slane %v673, 4
      %v676 = vshll.u32 %v600, 16
      %v678 = vrot.slane %v676, 5
      %v679 = vsel %vm609, %v674, %v678
      %v681 = vshrl.u32 %v601, 16
      %v683 = vrot.slane %v681, 4
      %v684 = vshll.u32 %v601, 16
      %v686 = vrot.slane %v684, 5
      %v687 = vor.u32 %v683, %v686
      %v688 = vrot.slane %v687, 4
      %v690 = vshll.u32 %v602, 16
      %v692 = vrot.slane %v690, 5
      %v693 = vsel %vm609, %v688, %v692
      %v695 = vshrl.u32 %v603, 16
      %v697 = vrot.slane %v695, 4
      %v698 = vshll.u32 %v603, 16
      %v700 = vrot.slane %v698, 5
      %v701 = vor.u32 %v697, %v700
      %v702 = vrot.slane %v701, 4
      %v704 = vshll.u32 %v604, 16
      %v706 = vrot.slane %v704, 5
      %v707 = vsel %vm609, %v702, %v706
      %v709 = vshrl.u32 %v605, 16
      %v711 = vrot.slane %v709, 4
      %v712 = vshll.u32 %v605, 16
      %v714 = vrot.slane %v712, 5
      %v715 = vor.u32 %v711, %v714
      %v716 = vrot.slane %v715, 4
      %v718 = vshll.u32 %v606, 16
      %v720 = vrot.slane %v718, 5
      %v721 = vsel %vm609, %v716, %v720
      %s722 = scalar_lea.vmem %s4, 10
      %v723 = vld [vmem:[%s722] sm:$0x3]
      %s724 = scalar_lea.vmem %s4, 14
      %v725 = vld [vmem:[%s724] sm:$0x3]
      %v734 = vunpack.c.l.b16 %v591
      %v735 = vunpack.c.l.b16 %v593
      %v736 = vunpack.c.l.b16 %v595
      %v737 = vunpack.c.l.b16 %v597
      %v738 = vunpack.c.l.b16 %v599
      %v739 = vunpack.c.l.b16 %v601
      %v740 = vunpack.c.l.b16 %v603
      %v741 = vunpack.c.l.b16 %v605
      %v742 = vpack.c.b16 %v735, %v734
      %v743 = vpack.c.b16 %v737, %v736
      %v744 = vpack.c.b16 %v739, %v738
      %v745 = vpack.c.b16 %v741, %v740
      %vm746 = vcmask 31744
      %v748 = vsel %vm746, %v742, 0
      %v751 = vsel %vm746, %v743, 0
      %v754 = vsel %vm746, %v744, 0
      %v757 = vsel %vm746, %v745, 0
      %vm759 = vcmask 1041408
      %v761 = vsel %vm759, %v725, 0
      %763 = vmatprep.subr.bf16.mxu0 0
      %764 = vmatpush1.bf16.msra.mxu0 0
      %765 = vmatprep.subr.bf16.mxu0 0
      %766 = vmatpush1.bf16.msra.mxu0 0
      %767 = vmatprep.subr.bf16.mxu0 0
      %768 = vmatpush1.bf16.msra.mxu0 0
      %769 = vmatprep.subr.bf16.mxu0 0
      %770 = vmatpush1.bf16.msra.mxu0 0
      %771 = vmatprep.subr.bf16.mxu0 0
      %772 = vmatpush1.bf16.msra.mxu0 0
      %773 = vmatprep.subr.bf16.mxu0 0
      %774 = vmatpush1.bf16.msra.mxu0 0
      %775 = vmatprep.subr.bf16.mxu0 0
      %776 = vmatpush1.bf16.msra.mxu0 0
      %777 = vmatprep.subr.bf16.mxu0 0
      %778 = vmatpush1.bf16.msra.mxu0 %v761
      %779 = vmatprep.subr.bf16.mxu0 0
      %780 = vmatpush2.bf16.msra.mxu0 0
      %781 = vmatprep.subr.bf16.mxu0 0
      %782 = vmatpush2.bf16.msra.mxu0 0
      %783 = vmatprep.subr.bf16.mxu0 0
      %784 = vmatpush2.bf16.msra.mxu0 0
      %785 = vmatprep.subr.bf16.mxu0 0
      %786 = vmatpush2.bf16.msra.mxu0 0
      %787 = vmatprep.subr.bf16.mxu0 0
      %788 = vmatpush2.bf16.msra.mxu0 0
      %789 = vmatprep.subr.bf16.mxu0 0
      %790 = vmatpush2.bf16.msra.mxu0 0
      %791 = vmatprep.subr.bf16.mxu0 0
      %792 = vmatpush2.bf16.msra.mxu0 0
      %793 = vmatprep.subr.bf16.mxu0 0
      %794 = vmatpush2.bf16.msra.mxu0 0
      %795 = vmatprep.mubr.bf16.mxu0 0
      %796 = vmatmul.mubr.bf16.gmra.mxu0 %v748
      %v797 = vpop.f32.mrf.mxu0
      %v798 = vadd.f32 0.0, %v797
      %v799 = vpop.f32.mrf.mxu0
      %v800 = vpop.f32.mrf.mxu0
      %v801 = vadd.f32 0.0, %v800
      %v802 = vpop.f32.mrf.mxu0
      %803 = vmatprep.mubr.bf16.mxu0 0
      %804 = vmatmul.mubr.bf16.gmra.mxu0 %v751
      %v805 = vpop.f32.mrf.mxu0
      %v806 = vadd.f32 0.0, %v805
      %v807 = vpop.f32.mrf.mxu0
      %v808 = vpop.f32.mrf.mxu0
      %v809 = vadd.f32 0.0, %v808
      %v810 = vpop.f32.mrf.mxu0
      %811 = vmatprep.mubr.bf16.mxu0 0
      %812 = vmatmul.mubr.bf16.gmra.mxu0 %v754
      %v813 = vpop.f32.mrf.mxu0
      %v814 = vadd.f32 0.0, %v813
      %v815 = vpop.f32.mrf.mxu0
      %v816 = vpop.f32.mrf.mxu0
      %v817 = vadd.f32 0.0, %v816
      %v818 = vpop.f32.mrf.mxu0
      %819 = vmatprep.mubr.bf16.mxu0 0
      %820 = vmatmul.mubr.bf16.gmra.mxu0 %v757
      %v821 = vpop.f32.mrf.mxu0
      %v822 = vadd.f32 0.0, %v821
      %v823 = vpop.f32.mrf.mxu0
      %v824 = vpop.f32.mrf.mxu0
      %v825 = vadd.f32 0.0, %v824
      %v826 = vpop.f32.mrf.mxu0
      %827 = vdwg.mxu0
      %v828 = vunpack.c.l.b16 %v623
      %v829 = vunpack.c.l.b16 %v637
      %v830 = vunpack.c.l.b16 %v651
      %v831 = vunpack.c.l.b16 %v665
      %v832 = vunpack.c.l.b16 %v679
      %v833 = vunpack.c.l.b16 %v693
      %v834 = vunpack.c.l.b16 %v707
      %v835 = vunpack.c.l.b16 %v721
      %v836 = vpack.c.b16 %v829, %v828
      %v837 = vpack.c.b16 %v831, %v830
      %v838 = vpack.c.b16 %v833, %v832
      %v839 = vpack.c.b16 %v835, %v834
      %v841 = vsel %vm746, %v836, 0
      %v844 = vsel %vm746, %v837, 0
      %v847 = vsel %vm746, %v838, 0
      %v850 = vsel %vm746, %v839, 0
      %v853 = vsel %vm759, %v723, 0
      %855 = vmatprep.subr.bf16.mxu0 0
      %856 = vmatpush1.bf16.msra.mxu0 0
      %857 = vmatprep.subr.bf16.mxu0 0
      %858 = vmatpush1.bf16.msra.mxu0 0
      %859 = vmatprep.subr.bf16.mxu0 0
      %860 = vmatpush1.bf16.msra.mxu0 0
      %861 = vmatprep.subr.bf16.mxu0 0
      %862 = vmatpush1.bf16.msra.mxu0 0
      %863 = vmatprep.subr.bf16.mxu0 0
      %864 = vmatpush1.bf16.msra.mxu0 0
      %865 = vmatprep.subr.bf16.mxu0 0
      %866 = vmatpush1.bf16.msra.mxu0 0
      %867 = vmatprep.subr.bf16.mxu0 0
      %868 = vmatpush1.bf16.msra.mxu0 0
      %869 = vmatprep.subr.bf16.mxu0 0
      %870 = vmatpush1.bf16.msra.mxu0 %v853
      %871 = vmatprep.subr.bf16.mxu0 0
      %872 = vmatpush2.bf16.msra.mxu0 0
      %873 = vmatprep.subr.bf16.mxu0 0
      %874 = vmatpush2.bf16.msra.mxu0 0
      %875 = vmatprep.subr.bf16.mxu0 0
      %876 = vmatpush2.bf16.msra.mxu0 0
      %877 = vmatprep.subr.bf16.mxu0 0
      %878 = vmatpush2.bf16.msra.mxu0 0
      %879 = vmatprep.subr.bf16.mxu0 0
      %880 = vmatpush2.bf16.msra.mxu0 0
      %881 = vmatprep.subr.bf16.mxu0 0
      %882 = vmatpush2.bf16.msra.mxu0 0
      %883 = vmatprep.subr.bf16.mxu0 0
      %884 = vmatpush2.bf16.msra.mxu0 0
      %885 = vmatprep.subr.bf16.mxu0 0
      %886 = vmatpush2.bf16.msra.mxu0 0
      %887 = vmatprep.mubr.bf16.mxu0 0
      %888 = vmatmul.mubr.bf16.gmra.mxu0 %v841
      %v889 = vpop.f32.mrf.mxu0
      %v890 = vadd.f32 %v798, %v889
      %v891 = vpop.f32.mrf.mxu0
      %v892 = vpop.f32.mrf.mxu0
      %v893 = vadd.f32 %v801, %v892
      %v894 = vpop.f32.mrf.mxu0
      %895 = vmatprep.mubr.bf16.mxu0 0
      %896 = vmatmul.mubr.bf16.gmra.mxu0 %v844
      %v897 = vpop.f32.mrf.mxu0
      %v898 = vadd.f32 %v806, %v897
      %v899 = vpop.f32.mrf.mxu0
      %v900 = vpop.f32.mrf.mxu0
      %v901 = vadd.f32 %v809, %v900
      %v902 = vpop.f32.mrf.mxu0
      %903 = vmatprep.mubr.bf16.mxu0 0
      %904 = vmatmul.mubr.bf16.gmra.mxu0 %v847
      %v905 = vpop.f32.mrf.mxu0
      %v906 = vadd.f32 %v814, %v905
      %v907 = vpop.f32.mrf.mxu0
      %v908 = vpop.f32.mrf.mxu0
      %v909 = vadd.f32 %v817, %v908
      %v910 = vpop.f32.mrf.mxu0
      %911 = vmatprep.mubr.bf16.mxu0 0
      %912 = vmatmul.mubr.bf16.gmra.mxu0 %v850
      %v913 = vpop.f32.mrf.mxu0
      %v914 = vadd.f32 %v822, %v913
      %v915 = vpop.f32.mrf.mxu0
      %v916 = vpop.f32.mrf.mxu0
      %v917 = vadd.f32 %v825, %v916
      %v918 = vpop.f32.mrf.mxu0
      %919 = vdwg.mxu0
      %v920 = vld [vmem:[#allocation2] sm:$0xf]
      %v921 = vld [vmem:[#allocation2 + $0x4] sm:$0x1]
      %v922 = vld [vmem:[#allocation2 + $0x8] sm:$0xf]
      %v923 = vld [vmem:[#allocation2 + $0xc] sm:$0x1]
      %v924 = vld [vmem:[#allocation2 + $0x10] sm:$0xf]
      %v925 = vld [vmem:[#allocation2 + $0x14] sm:$0x1]
      %v926 = vld [vmem:[#allocation2 + $0x18] sm:$0xf]
      %v927 = vld [vmem:[#allocation2 + $0x1c] sm:$0x1]
      %v928 = vld [vmem:[#allocation2 + $0x20] sm:$0xf]
      %v929 = vld [vmem:[#allocation2 + $0x24] sm:$0x1]
      %v930 = vld [vmem:[#allocation2 + $0x28] sm:$0xf]
      %v931 = vld [vmem:[#allocation2 + $0x2c] sm:$0x1]
      %v932 = vld [vmem:[#allocation2 + $0x30] sm:$0xf]
      %v933 = vld [vmem:[#allocation2 + $0x34] sm:$0x1]
      %v934 = vld [vmem:[#allocation2 + $0x38] sm:$0xf]
      %v935 = vld [vmem:[#allocation2 + $0x3c] sm:$0x1]
      %v937 = vshrl.u32 %v920, 16
      %v939 = vrot.slane %v937, 4
      %v940 = vshll.u32 %v920, 16
      %v942 = vrot.slane %v940, 5
      %v943 = vor.u32 %v939, %v942
      %v944 = vrot.slane %v943, 4
      %v946 = vshll.u32 %v921, 16
      %v948 = vrot.slane %v946, 5
      %v949 = vsel %vm609, %v944, %v948
      %v951 = vshrl.u32 %v922, 16
      %v953 = vrot.slane %v951, 4
      %v954 = vshll.u32 %v922, 16
      %v956 = vrot.slane %v954, 5
      %v957 = vor.u32 %v953, %v956
      %v958 = vrot.slane %v957, 4
      %v960 = vshll.u32 %v923, 16
      %v962 = vrot.slane %v960, 5
      %v963 = vsel %vm609, %v958, %v962
      %v965 = vshrl.u32 %v924, 16
      %v967 = vrot.slane %v965, 4
      %v968 = vshll.u32 %v924, 16
      %v970 = vrot.slane %v968, 5
      %v971 = vor.u32 %v967, %v970
      %v972 = vrot.slane %v971, 4
      %v974 = vshll.u32 %v925, 16
      %v976 = vrot.slane %v974, 5
      %v977 = vsel %vm609, %v972, %v976
      %v979 = vshrl.u32 %v926, 16
      %v981 = vrot.slane %v979, 4
      %v982 = vshll.u32 %v926, 16
      %v984 = vrot.slane %v982, 5
      %v985 = vor.u32 %v981, %v984
      %v986 = vrot.slane %v985, 4
      %v988 = vshll.u32 %v927, 16
      %v990 = vrot.slane %v988, 5
      %v991 = vsel %vm609, %v986, %v990
      %v993 = vshrl.u32 %v928, 16
      %v995 = vrot.slane %v993, 4
      %v996 = vshll.u32 %v928, 16
      %v998 = vrot.slane %v996, 5
      %v999 = vor.u32 %v995, %v998
      %v1000 = vrot.slane %v999, 4
      %v1002 = vshll.u32 %v929, 16
      %v1004 = vrot.slane %v1002, 5
      %v1005 = vsel %vm609, %v1000, %v1004
      %v1007 = vshrl.u32 %v930, 16
      %v1009 = vrot.slane %v1007, 4
      %v1010 = vshll.u32 %v930, 16
      %v1012 = vrot.slane %v1010, 5
      %v1013 = vor.u32 %v1009, %v1012
      %v1014 = vrot.slane %v1013, 4
      %v1016 = vshll.u32 %v931, 16
      %v1018 = vrot.slane %v1016, 5
      %v1019 = vsel %vm609, %v1014, %v1018
      %v1021 = vshrl.u32 %v932, 16
      %v1023 = vrot.slane %v1021, 4
      %v1024 = vshll.u32 %v932, 16
      %v1026 = vrot.slane %v1024, 5
      %v1027 = vor.u32 %v1023, %v1026
      %v1028 = vrot.slane %v1027, 4
      %v1030 = vshll.u32 %v933, 16
      %v1032 = vrot.slane %v1030, 5
      %v1033 = vsel %vm609, %v1028, %v1032
      %v1035 = vshrl.u32 %v934, 16
      %v1037 = vrot.slane %v1035, 4
      %v1038 = vshll.u32 %v934, 16
      %v1040 = vrot.slane %v1038, 5
      %v1041 = vor.u32 %v1037, %v1040
      %v1042 = vrot.slane %v1041, 4
      %v1044 = vshll.u32 %v935, 16
      %v1046 = vrot.slane %v1044, 5
      %v1047 = vsel %vm609, %v1042, %v1046
      %s1048 = scalar_lea.vmem %s4, 26
      %v1049 = vld [vmem:[%s1048] sm:$0x3]
      %v1050 = vunpack.c.l.b16 %v949
      %v1051 = vunpack.c.l.b16 %v963
      %v1052 = vunpack.c.l.b16 %v977
      %v1053 = vunpack.c.l.b16 %v991
      %v1054 = vunpack.c.l.b16 %v1005
      %v1055 = vunpack.c.l.b16 %v1019
      %v1056 = vunpack.c.l.b16 %v1033
      %v1057 = vunpack.c.l.b16 %v1047
      %v1058 = vpack.c.b16 %v1051, %v1050
      %v1059 = vpack.c.b16 %v1053, %v1052
      %v1060 = vpack.c.b16 %v1055, %v1054
      %v1061 = vpack.c.b16 %v1057, %v1056
      %v1063 = vsel %vm746, %v1058, 0
      %v1066 = vsel %vm746, %v1059, 0
      %v1069 = vsel %vm746, %v1060, 0
      %v1072 = vsel %vm746, %v1061, 0
      %v1075 = vsel %vm759, %v1049, 0
      %1077 = vmatprep.subr.bf16.mxu0 0
      %1078 = vmatpush1.bf16.msra.mxu0 0
      %1079 = vmatprep.subr.bf16.mxu0 0
      %1080 = vmatpush1.bf16.msra.mxu0 0
      %1081 = vmatprep.subr.bf16.mxu0 0
      %1082 = vmatpush1.bf16.msra.mxu0 0
      %1083 = vmatprep.subr.bf16.mxu0 0
      %1084 = vmatpush1.bf16.msra.mxu0 0
      %1085 = vmatprep.subr.bf16.mxu0 0
      %1086 = vmatpush1.bf16.msra.mxu0 0
      %1087 = vmatprep.subr.bf16.mxu0 0
      %1088 = vmatpush1.bf16.msra.mxu0 0
      %1089 = vmatprep.subr.bf16.mxu0 0
      %1090 = vmatpush1.bf16.msra.mxu0 0
      %1091 = vmatprep.subr.bf16.mxu0 0
      %1092 = vmatpush1.bf16.msra.mxu0 %v1075
      %1093 = vmatprep.subr.bf16.mxu0 0
      %1094 = vmatpush2.bf16.msra.mxu0 0
      %1095 = vmatprep.subr.bf16.mxu0 0
      %1096 = vmatpush2.bf16.msra.mxu0 0
      %1097 = vmatprep.subr.bf16.mxu0 0
      %1098 = vmatpush2.bf16.msra.mxu0 0
      %1099 = vmatprep.subr.bf16.mxu0 0
      %1100 = vmatpush2.bf16.msra.mxu0 0
      %1101 = vmatprep.subr.bf16.mxu0 0
      %1102 = vmatpush2.bf16.msra.mxu0 0
      %1103 = vmatprep.subr.bf16.mxu0 0
      %1104 = vmatpush2.bf16.msra.mxu0 0
      %1105 = vmatprep.subr.bf16.mxu0 0
      %1106 = vmatpush2.bf16.msra.mxu0 0
      %1107 = vmatprep.subr.bf16.mxu0 0
      %1108 = vmatpush2.bf16.msra.mxu0 0
      %1109 = vmatprep.mubr.bf16.mxu0 0
      %1110 = vmatmul.mubr.bf16.gmra.mxu0 %v1063
      %v1111 = vpop.f32.mrf.mxu0
      %v1112 = vadd.f32 0.0, %v1111
      %v1113 = vpop.f32.mrf.mxu0
      %v1114 = vpop.f32.mrf.mxu0
      %v1115 = vadd.f32 0.0, %v1114
      %v1116 = vpop.f32.mrf.mxu0
      %1117 = vmatprep.mubr.bf16.mxu0 0
      %1118 = vmatmul.mubr.bf16.gmra.mxu0 %v1066
      %v1119 = vpop.f32.mrf.mxu0
      %v1120 = vadd.f32 0.0, %v1119
      %v1121 = vpop.f32.mrf.mxu0
      %v1122 = vpop.f32.mrf.mxu0
      %v1123 = vadd.f32 0.0, %v1122
      %v1124 = vpop.f32.mrf.mxu0
      %1125 = vmatprep.mubr.bf16.mxu0 0
      %1126 = vmatmul.mubr.bf16.gmra.mxu0 %v1069
      %v1127 = vpop.f32.mrf.mxu0
      %v1128 = vadd.f32 0.0, %v1127
      %v1129 = vpop.f32.mrf.mxu0
      %v1130 = vpop.f32.mrf.mxu0
      %v1131 = vadd.f32 0.0, %v1130
      %v1132 = vpop.f32.mrf.mxu0
      %1133 = vmatprep.mubr.bf16.mxu0 0
      %1134 = vmatmul.mubr.bf16.gmra.mxu0 %v1072
      %v1135 = vpop.f32.mrf.mxu0
      %v1136 = vadd.f32 0.0, %v1135
      %v1137 = vpop.f32.mrf.mxu0
      %v1138 = vpop.f32.mrf.mxu0
      %v1139 = vadd.f32 0.0, %v1138
      %v1140 = vpop.f32.mrf.mxu0
      %1141 = vdwg.mxu0
      %v1142 = vadd.f32 %v890, %v1112
      %v1143 = vadd.f32 %v893, %v1115
      %v1144 = vadd.f32 %v898, %v1120
      %v1145 = vadd.f32 %v901, %v1123
      %v1146 = vadd.f32 %v906, %v1128
      %v1147 = vadd.f32 %v909, %v1131
      %v1148 = vadd.f32 %v914, %v1136
      %v1149 = vadd.f32 %v917, %v1139
      %v1150 = vld [vmem:[#allocation2] sm:$0xf]
      %v1151 = vld [vmem:[#allocation2 + $0x8] sm:$0xf]
      %v1152 = vld [vmem:[#allocation2 + $0x10] sm:$0xf]
      %v1153 = vld [vmem:[#allocation2 + $0x18] sm:$0xf]
      %v1154 = vld [vmem:[#allocation2 + $0x20] sm:$0xf]
      %v1155 = vld [vmem:[#allocation2 + $0x28] sm:$0xf]
      %v1156 = vld [vmem:[#allocation2 + $0x30] sm:$0xf]
      %v1157 = vld [vmem:[#allocation2 + $0x38] sm:$0xf]
      %s1158 = scalar_lea.vmem %s4, 30
      %v1159 = vld [vmem:[%s1158] sm:$0x3]
      %v1168 = vunpack.c.l.b16 %v1150
      %v1169 = vunpack.c.l.b16 %v1151
      %v1170 = vunpack.c.l.b16 %v1152
      %v1171 = vunpack.c.l.b16 %v1153
      %v1172 = vunpack.c.l.b16 %v1154
      %v1173 = vunpack.c.l.b16 %v1155
      %v1174 = vunpack.c.l.b16 %v1156
      %v1175 = vunpack.c.l.b16 %v1157
      %v1176 = vpack.c.b16 %v1169, %v1168
      %v1177 = vpack.c.b16 %v1171, %v1170
      %v1178 = vpack.c.b16 %v1173, %v1172
      %v1179 = vpack.c.b16 %v1175, %v1174
      %v1181 = vsel %vm746, %v1176, 0
      %v1184 = vsel %vm746, %v1177, 0
      %v1187 = vsel %vm746, %v1178, 0
      %v1190 = vsel %vm746, %v1179, 0
      %v1193 = vsel %vm759, %v1159, 0
      %1195 = vmatprep.subr.bf16.mxu0 0
      %1196 = vmatpush1.bf16.msra.mxu0 0
      %1197 = vmatprep.subr.bf16.mxu0 0
      %1198 = vmatpush1.bf16.msra.mxu0 0
      %1199 = vmatprep.subr.bf16.mxu0 0
      %1200 = vmatpush1.bf16.msra.mxu0 0
      %1201 = vmatprep.subr.bf16.mxu0 0
      %1202 = vmatpush1.bf16.msra.mxu0 0
      %1203 = vmatprep.subr.bf16.mxu0 0
      %1204 = vmatpush1.bf16.msra.mxu0 0
      %1205 = vmatprep.subr.bf16.mxu0 0
      %1206 = vmatpush1.bf16.msra.mxu0 0
      %1207 = vmatprep.subr.bf16.mxu0 0
      %1208 = vmatpush1.bf16.msra.mxu0 0
      %1209 = vmatprep.subr.bf16.mxu0 0
      %1210 = vmatpush1.bf16.msra.mxu0 %v1193
      %1211 = vmatprep.subr.bf16.mxu0 0
      %1212 = vmatpush2.bf16.msra.mxu0 0
      %1213 = vmatprep.subr.bf16.mxu0 0
      %1214 = vmatpush2.bf16.msra.mxu0 0
      %1215 = vmatprep.subr.bf16.mxu0 0
      %1216 = vmatpush2.bf16.msra.mxu0 0
      %1217 = vmatprep.subr.bf16.mxu0 0
      %1218 = vmatpush2.bf16.msra.mxu0 0
      %1219 = vmatprep.subr.bf16.mxu0 0
      %1220 = vmatpush2.bf16.msra.mxu0 0
      %1221 = vmatprep.subr.bf16.mxu0 0
      %1222 = vmatpush2.bf16.msra.mxu0 0
      %1223 = vmatprep.subr.bf16.mxu0 0
      %1224 = vmatpush2.bf16.msra.mxu0 0
      %1225 = vmatprep.subr.bf16.mxu0 0
      %1226 = vmatpush2.bf16.msra.mxu0 0
      %1227 = vmatprep.mubr.bf16.mxu0 0
      %1228 = vmatmul.mubr.bf16.gmra.mxu0 %v1181
      %v1229 = vpop.f32.mrf.mxu0
      %v1230 = vadd.f32 0.0, %v1229
      %v1231 = vpop.f32.mrf.mxu0
      %v1232 = vpop.f32.mrf.mxu0
      %v1233 = vadd.f32 0.0, %v1232
      %v1234 = vpop.f32.mrf.mxu0
      %1235 = vmatprep.mubr.bf16.mxu0 0
      %1236 = vmatmul.mubr.bf16.gmra.mxu0 %v1184
      %v1237 = vpop.f32.mrf.mxu0
      %v1238 = vadd.f32 0.0, %v1237
      %v1239 = vpop.f32.mrf.mxu0
      %v1240 = vpop.f32.mrf.mxu0
      %v1241 = vadd.f32 0.0, %v1240
      %v1242 = vpop.f32.mrf.mxu0
      %1243 = vmatprep.mubr.bf16.mxu0 0
      %1244 = vmatmul.mubr.bf16.gmra.mxu0 %v1187
      %v1245 = vpop.f32.mrf.mxu0
      %v1246 = vadd.f32 0.0, %v1245
      %v1247 = vpop.f32.mrf.mxu0
      %v1248 = vpop.f32.mrf.mxu0
      %v1249 = vadd.f32 0.0, %v1248
      %v1250 = vpop.f32.mrf.mxu0
      %1251 = vmatprep.mubr.bf16.mxu0 0
      %1252 = vmatmul.mubr.bf16.gmra.mxu0 %v1190
      %v1253 = vpop.f32.mrf.mxu0
      %v1254 = vadd.f32 0.0, %v1253
      %v1255 = vpop.f32.mrf.mxu0
      %v1256 = vpop.f32.mrf.mxu0
      %v1257 = vadd.f32 0.0, %v1256
      %v1258 = vpop.f32.mrf.mxu0
      %1259 = vdwg.mxu0
      %v1260 = vadd.f32 %v1142, %v1230
      %v1261 = vadd.f32 %v1143, %v1233
      %v1262 = vadd.f32 %v1144, %v1238
      %v1263 = vadd.f32 %v1145, %v1241
      %v1264 = vadd.f32 %v1146, %v1246
      %v1265 = vadd.f32 %v1147, %v1249
      %v1266 = vadd.f32 %v1148, %v1254
      %v1267 = vadd.f32 %v1149, %v1257
      %v1268 = vsel %vm746, %v1260, 0.0
      %v1269 = vsel %vm746, %v1261, 0.0
      %v1270 = vadd.f32 %v1268, %v1269
      %v1271 = vsel %vm746, %v1262, 0.0
      %v1272 = vadd.f32 %v1270, %v1271
      %v1273 = vsel %vm746, %v1263, 0.0
      %v1274 = vadd.f32 %v1272, %v1273
      %v1275 = vsel %vm746, %v1264, 0.0
      %v1276 = vadd.f32 %v1274, %v1275
      %v1277 = vsel %vm746, %v1265, 0.0
      %v1278 = vadd.f32 %v1276, %v1277
      %v1279 = vsel %vm746, %v1266, 0.0
      %v1280 = vadd.f32 %v1278, %v1279
      %v1281 = vsel %vm746, %v1267, 0.0
      %v1282 = vadd.f32 %v1280, %v1281
      %v1283 = vrot.slane %v1282, 4
      %v1284 = vadd.f32 %v1282, %v1283
      %v1285 = vrot.slane %v1284, 2
      %v1286 = vadd.f32 %v1284, %v1285
      %v1287 = vrot.slane %v1286, 1
      %v1288 = vadd.f32 %v1286, %v1287
      %v1289 = vadd.f32 %v1288, 0.0
      %v1290 = vmul.f32 %v1260, %v1260
      %v1291 = vmul.f32 %v1261, %v1261
      %v1292 = vmul.f32 %v1262, %v1262
      %v1293 = vmul.f32 %v1263, %v1263
      %v1294 = vmul.f32 %v1264, %v1264
      %v1295 = vmul.f32 %v1265, %v1265
      %v1296 = vmul.f32 %v1266, %v1266
      %v1297 = vmul.f32 %v1267, %v1267
      %v1298 = vsel %vm746, %v1290, 0.0
      %v1299 = vsel %vm746, %v1291, 0.0
      %v1300 = vadd.f32 %v1298, %v1299
      %v1301 = vsel %vm746, %v1292, 0.0
      %v1302 = vadd.f32 %v1300, %v1301
      %v1303 = vsel %vm746, %v1293, 0.0
      %v1304 = vadd.f32 %v1302, %v1303
      %v1305 = vsel %vm746, %v1294, 0.0
      %v1306 = vadd.f32 %v1304, %v1305
      %v1307 = vsel %vm746, %v1295, 0.0
      %v1308 = vadd.f32 %v1306, %v1307
      %v1309 = vsel %vm746, %v1296, 0.0
      %v1310 = vadd.f32 %v1308, %v1309
      %v1311 = vsel %vm746, %v1297, 0.0
      %v1312 = vadd.f32 %v1310, %v1311
      %v1313 = vrot.slane %v1312, 4
      %v1314 = vadd.f32 %v1312, %v1313
      %v1315 = vrot.slane %v1314, 2
      %v1316 = vadd.f32 %v1314, %v1315
      %v1317 = vrot.slane %v1316, 1
      %v1318 = vadd.f32 %v1316, %v1317
      %v1319 = vadd.f32 %v1318, 0.0
      %v1320 = vpack.c.bf16 %v1261, %v1260
      %v1321 = vpack.c.bf16 %v1263, %v1262
      %v1322 = vpack.c.bf16 %v1265, %v1264
      %v1323 = vpack.c.bf16 %v1267, %v1266
      %v1324 = vld [vmem:[%s375] sm:$0xe]
      %v1325 = vld [vmem:[%s375 + $0x8] sm:$0xe]
      %v1326 = vld [vmem:[%s375 + $0x10] sm:$0xe]
      %v1327 = vld [vmem:[%s375 + $0x18] sm:$0xe]
      %v1328 = vld [vmem:[%s375 + $0x20] sm:$0xe]
      %v1329 = vld [vmem:[%s375 + $0x28] sm:$0xe]
      %v1330 = vld [vmem:[%s375 + $0x30] sm:$0xe]
      %v1331 = vld [vmem:[%s375 + $0x38] sm:$0xe]
      %vm1348 = vcmask 1042432
      %vm1349 = vcmask 1046532
      %vm1350 = vmor %vm1348, %vm1349
      %v1351 = vrot.slane %v1324, 5
      %v1352 = vrot.slane %v1351, 4
      %v1353 = vrot.slane %v592, 5
      %v1354 = vsel %vm1350, %v1352, %v1353
      %v1355 = vrot.slane %v1325, 5
      %v1356 = vrot.slane %v1355, 4
      %v1357 = vrot.slane %v594, 5
      %v1358 = vsel %vm1350, %v1356, %v1357
      %v1359 = vrot.slane %v1326, 5
      %v1360 = vrot.slane %v1359, 4
      %v1361 = vrot.slane %v596, 5
      %v1362 = vsel %vm1350, %v1360, %v1361
      %v1363 = vrot.slane %v1327, 5
      %v1364 = vrot.slane %v1363, 4
      %v1365 = vrot.slane %v598, 5
      %v1366 = vsel %vm1350, %v1364, %v1365
      %v1367 = vrot.slane %v1328, 5
      %v1368 = vrot.slane %v1367, 4
      %v1369 = vrot.slane %v600, 5
      %v1370 = vsel %vm1350, %v1368, %v1369
      %v1371 = vrot.slane %v1329, 5
      %v1372 = vrot.slane %v1371, 4
      %v1373 = vrot.slane %v602, 5
      %v1374 = vsel %vm1350, %v1372, %v1373
      %v1375 = vrot.slane %v1330, 5
      %v1376 = vrot.slane %v1375, 4
      %v1377 = vrot.slane %v604, 5
      %v1378 = vsel %vm1350, %v1376, %v1377
      %v1379 = vrot.slane %v1331, 5
      %v1380 = vrot.slane %v1379, 4
      %v1381 = vrot.slane %v606, 5
      %v1382 = vsel %vm1350, %v1380, %v1381
      %s1383 = scalar_lea.vmem %s4, 8
      %v1384 = vld [vmem:[%s1383] sm:$0x3]
      %s1385 = scalar_lea.vmem %s4, 12
      %v1386 = vld [vmem:[%s1385] sm:$0x3]
      %v1388 = vsel %vm759, %v1386, 0
      %1390 = vmatprep.subr.bf16.mxu0 0
      %1391 = vmatpush1.bf16.msra.mxu0 0
      %1392 = vmatprep.subr.bf16.mxu0 0
      %1393 = vmatpush1.bf16.msra.mxu0 0
      %1394 = vmatprep.subr.bf16.mxu0 0
      %1395 = vmatpush1.bf16.msra.mxu0 0
      %1396 = vmatprep.subr.bf16.mxu0 0
      %1397 = vmatpush1.bf16.msra.mxu0 0
      %1398 = vmatprep.subr.bf16.mxu0 0
      %1399 = vmatpush1.bf16.msra.mxu0 0
      %1400 = vmatprep.subr.bf16.mxu0 0
      %1401 = vmatpush1.bf16.msra.mxu0 0
      %1402 = vmatprep.subr.bf16.mxu0 0
      %1403 = vmatpush1.bf16.msra.mxu0 0
      %1404 = vmatprep.subr.bf16.mxu0 0
      %1405 = vmatpush1.bf16.msra.mxu0 %v1388
      %1406 = vmatprep.subr.bf16.mxu0 0
      %1407 = vmatpush2.bf16.msra.mxu0 0
      %1408 = vmatprep.subr.bf16.mxu0 0
      %1409 = vmatpush2.bf16.msra.mxu0 0
      %1410 = vmatprep.subr.bf16.mxu0 0
      %1411 = vmatpush2.bf16.msra.mxu0 0
      %1412 = vmatprep.subr.bf16.mxu0 0
      %1413 = vmatpush2.bf16.msra.mxu0 0
      %1414 = vmatprep.subr.bf16.mxu0 0
      %1415 = vmatpush2.bf16.msra.mxu0 0
      %1416 = vmatprep.subr.bf16.mxu0 0
      %1417 = vmatpush2.bf16.msra.mxu0 0
      %1418 = vmatprep.subr.bf16.mxu0 0
      %1419 = vmatpush2.bf16.msra.mxu0 0
      %1420 = vmatprep.subr.bf16.mxu0 0
      %1421 = vmatpush2.bf16.msra.mxu0 0
      %1422 = vmatprep.mubr.bf16.mxu0 0
      %1423 = vmatmul.mubr.bf16.gmra.mxu0 %v841
      %v1424 = vpop.f32.mrf.mxu0
      %v1425 = vadd.f32 0.0, %v1424
      %v1426 = vpop.f32.mrf.mxu0
      %v1427 = vpop.f32.mrf.mxu0
      %v1428 = vadd.f32 0.0, %v1427
      %v1429 = vpop.f32.mrf.mxu0
      %1430 = vmatprep.mubr.bf16.mxu0 0
      %1431 = vmatmul.mubr.bf16.gmra.mxu0 %v844
      %v1432 = vpop.f32.mrf.mxu0
      %v1433 = vadd.f32 0.0, %v1432
      %v1434 = vpop.f32.mrf.mxu0
      %v1435 = vpop.f32.mrf.mxu0
      %v1436 = vadd.f32 0.0, %v1435
      %v1437 = vpop.f32.mrf.mxu0
      %1438 = vmatprep.mubr.bf16.mxu0 0
      %1439 = vmatmul.mubr.bf16.gmra.mxu0 %v847
      %v1440 = vpop.f32.mrf.mxu0
      %v1441 = vadd.f32 0.0, %v1440
      %v1442 = vpop.f32.mrf.mxu0
      %v1443 = vpop.f32.mrf.mxu0
      %v1444 = vadd.f32 0.0, %v1443
      %v1445 = vpop.f32.mrf.mxu0
      %1446 = vmatprep.mubr.bf16.mxu0 0
      %1447 = vmatmul.mubr.bf16.gmra.mxu0 %v850
      %v1448 = vpop.f32.mrf.mxu0
      %v1449 = vadd.f32 0.0, %v1448
      %v1450 = vpop.f32.mrf.mxu0
      %v1451 = vpop.f32.mrf.mxu0
      %v1452 = vadd.f32 0.0, %v1451
      %v1453 = vpop.f32.mrf.mxu0
      %1454 = vdwg.mxu0
      %v1455 = vunpack.c.l.b16 %v1354
      %v1456 = vunpack.c.l.b16 %v1358
      %v1457 = vunpack.c.l.b16 %v1362
      %v1458 = vunpack.c.l.b16 %v1366
      %v1459 = vunpack.c.l.b16 %v1370
      %v1460 = vunpack.c.l.b16 %v1374
      %v1461 = vunpack.c.l.b16 %v1378
      %v1462 = vunpack.c.l.b16 %v1382
      %v1463 = vpack.c.b16 %v1456, %v1455
      %v1464 = vpack.c.b16 %v1458, %v1457
      %v1465 = vpack.c.b16 %v1460, %v1459
      %v1466 = vpack.c.b16 %v1462, %v1461
      %v1468 = vsel %vm746, %v1463, 0
      %v1471 = vsel %vm746, %v1464, 0
      %v1474 = vsel %vm746, %v1465, 0
      %v1477 = vsel %vm746, %v1466, 0
      %v1480 = vsel %vm759, %v1384, 0
      %1482 = vmatprep.subr.bf16.mxu0 0
      %1483 = vmatpush1.bf16.msra.mxu0 0
      %1484 = vmatprep.subr.bf16.mxu0 0
      %1485 = vmatpush1.bf16.msra.mxu0 0
      %1486 = vmatprep.subr.bf16.mxu0 0
      %1487 = vmatpush1.bf16.msra.mxu0 0
      %1488 = vmatprep.subr.bf16.mxu0 0
      %1489 = vmatpush1.bf16.msra.mxu0 0
      %1490 = vmatprep.subr.bf16.mxu0 0
      %1491 = vmatpush1.bf16.msra.mxu0 0
      %1492 = vmatprep.subr.bf16.mxu0 0
      %1493 = vmatpush1.bf16.msra.mxu0 0
      %1494 = vmatprep.subr.bf16.mxu0 0
      %1495 = vmatpush1.bf16.msra.mxu0 0
      %1496 = vmatprep.subr.bf16.mxu0 0
      %1497 = vmatpush1.bf16.msra.mxu0 %v1480
      %1498 = vmatprep.subr.bf16.mxu0 0
      %1499 = vmatpush2.bf16.msra.mxu0 0
      %1500 = vmatprep.subr.bf16.mxu0 0
      %1501 = vmatpush2.bf16.msra.mxu0 0
      %1502 = vmatprep.subr.bf16.mxu0 0
      %1503 = vmatpush2.bf16.msra.mxu0 0
      %1504 = vmatprep.subr.bf16.mxu0 0
      %1505 = vmatpush2.bf16.msra.mxu0 0
      %1506 = vmatprep.subr.bf16.mxu0 0
      %1507 = vmatpush2.bf16.msra.mxu0 0
      %1508 = vmatprep.subr.bf16.mxu0 0
      %1509 = vmatpush2.bf16.msra.mxu0 0
      %1510 = vmatprep.subr.bf16.mxu0 0
      %1511 = vmatpush2.bf16.msra.mxu0 0
      %1512 = vmatprep.subr.bf16.mxu0 0
      %1513 = vmatpush2.bf16.msra.mxu0 0
      %1514 = vmatprep.mubr.bf16.mxu0 0
      %1515 = vmatmul.mubr.bf16.gmra.mxu0 %v1468
      %v1516 = vpop.f32.mrf.mxu0
      %v1517 = vadd.f32 %v1425, %v1516
      %v1518 = vpop.f32.mrf.mxu0
      %v1519 = vpop.f32.mrf.mxu0
      %v1520 = vadd.f32 %v1428, %v1519
      %v1521 = vpop.f32.mrf.mxu0
      %1522 = vmatprep.mubr.bf16.mxu0 0
      %1523 = vmatmul.mubr.bf16.gmra.mxu0 %v1471
      %v1524 = vpop.f32.mrf.mxu0
      %v1525 = vadd.f32 %v1433, %v1524
      %v1526 = vpop.f32.mrf.mxu0
      %v1527 = vpop.f32.mrf.mxu0
      %v1528 = vadd.f32 %v1436, %v1527
      %v1529 = vpop.f32.mrf.mxu0
      %1530 = vmatprep.mubr.bf16.mxu0 0
      %1531 = vmatmul.mubr.bf16.gmra.mxu0 %v1474
      %v1532 = vpop.f32.mrf.mxu0
      %v1533 = vadd.f32 %v1441, %v1532
      %v1534 = vpop.f32.mrf.mxu0
      %v1535 = vpop.f32.mrf.mxu0
      %v1536 = vadd.f32 %v1444, %v1535
      %v1537 = vpop.f32.mrf.mxu0
      %1538 = vmatprep.mubr.bf16.mxu0 0
      %1539 = vmatmul.mubr.bf16.gmra.mxu0 %v1477
      %v1540 = vpop.f32.mrf.mxu0
      %v1541 = vadd.f32 %v1449, %v1540
      %v1542 = vpop.f32.mrf.mxu0
      %v1543 = vpop.f32.mrf.mxu0
      %v1544 = vadd.f32 %v1452, %v1543
      %v1545 = vpop.f32.mrf.mxu0
      %1546 = vdwg.mxu0
      %v1547 = vld [vmem:[#allocation2] sm:$0xe]
      %v1548 = vld [vmem:[#allocation2 + $0x8] sm:$0xe]
      %v1549 = vld [vmem:[#allocation2 + $0x10] sm:$0xe]
      %v1550 = vld [vmem:[#allocation2 + $0x18] sm:$0xe]
      %v1551 = vld [vmem:[#allocation2 + $0x20] sm:$0xe]
      %v1552 = vld [vmem:[#allocation2 + $0x28] sm:$0xe]
      %v1553 = vld [vmem:[#allocation2 + $0x30] sm:$0xe]
      %v1554 = vld [vmem:[#allocation2 + $0x38] sm:$0xe]
      %v1571 = vrot.slane %v1547, 5
      %v1572 = vrot.slane %v1571, 4
      %v1573 = vrot.slane %v921, 5
      %v1574 = vsel %vm1350, %v1572, %v1573
      %v1575 = vrot.slane %v1548, 5
      %v1576 = vrot.slane %v1575, 4
      %v1577 = vrot.slane %v923, 5
      %v1578 = vsel %vm1350, %v1576, %v1577
      %v1579 = vrot.slane %v1549, 5
      %v1580 = vrot.slane %v1579, 4
      %v1581 = vrot.slane %v925, 5
      %v1582 = vsel %vm1350, %v1580, %v1581
      %v1583 = vrot.slane %v1550, 5
      %v1584 = vrot.slane %v1583, 4
      %v1585 = vrot.slane %v927, 5
      %v1586 = vsel %vm1350, %v1584, %v1585
      %v1587 = vrot.slane %v1551, 5
      %v1588 = vrot.slane %v1587, 4
      %v1589 = vrot.slane %v929, 5
      %v1590 = vsel %vm1350, %v1588, %v1589
      %v1591 = vrot.slane %v1552, 5
      %v1592 = vrot.slane %v1591, 4
      %v1593 = vrot.slane %v931, 5
      %v1594 = vsel %vm1350, %v1592, %v1593
      %v1595 = vrot.slane %v1553, 5
      %v1596 = vrot.slane %v1595, 4
      %v1597 = vrot.slane %v933, 5
      %v1598 = vsel %vm1350, %v1596, %v1597
      %v1599 = vrot.slane %v1554, 5
      %v1600 = vrot.slane %v1599, 4
      %v1601 = vrot.slane %v935, 5
      %v1602 = vsel %vm1350, %v1600, %v1601
      %s1603 = scalar_lea.vmem %s4, 24
      %v1604 = vld [vmem:[%s1603] sm:$0x3]
      %v1605 = vunpack.c.l.b16 %v1574
      %v1606 = vunpack.c.l.b16 %v1578
      %v1607 = vunpack.c.l.b16 %v1582
      %v1608 = vunpack.c.l.b16 %v1586
      %v1609 = vunpack.c.l.b16 %v1590
      %v1610 = vunpack.c.l.b16 %v1594
      %v1611 = vunpack.c.l.b16 %v1598
      %v1612 = vunpack.c.l.b16 %v1602
      %v1613 = vpack.c.b16 %v1606, %v1605
      %v1614 = vpack.c.b16 %v1608, %v1607
      %v1615 = vpack.c.b16 %v1610, %v1609
      %v1616 = vpack.c.b16 %v1612, %v1611
      %v1618 = vsel %vm746, %v1613, 0
      %v1621 = vsel %vm746, %v1614, 0
      %v1624 = vsel %vm746, %v1615, 0
      %v1627 = vsel %vm746, %v1616, 0
      %v1630 = vsel %vm759, %v1604, 0
      %1632 = vmatprep.subr.bf16.mxu0 0
      %1633 = vmatpush1.bf16.msra.mxu0 0
      %1634 = vmatprep.subr.bf16.mxu0 0
      %1635 = vmatpush1.bf16.msra.mxu0 0
      %1636 = vmatprep.subr.bf16.mxu0 0
      %1637 = vmatpush1.bf16.msra.mxu0 0
      %1638 = vmatprep.subr.bf16.mxu0 0
      %1639 = vmatpush1.bf16.msra.mxu0 0
      %1640 = vmatprep.subr.bf16.mxu0 0
      %1641 = vmatpush1.bf16.msra.mxu0 0
      %1642 = vmatprep.subr.bf16.mxu0 0
      %1643 = vmatpush1.bf16.msra.mxu0 0
      %1644 = vmatprep.subr.bf16.mxu0 0
      %1645 = vmatpush1.bf16.msra.mxu0 0
      %1646 = vmatprep.subr.bf16.mxu0 0
      %1647 = vmatpush1.bf16.msra.mxu0 %v1630
      %1648 = vmatprep.subr.bf16.mxu0 0
      %1649 = vmatpush2.bf16.msra.mxu0 0
      %1650 = vmatprep.subr.bf16.mxu0 0
      %1651 = vmatpush2.bf16.msra.mxu0 0
      %1652 = vmatprep.subr.bf16.mxu0 0
      %1653 = vmatpush2.bf16.msra.mxu0 0
      %1654 = vmatprep.subr.bf16.mxu0 0
      %1655 = vmatpush2.bf16.msra.mxu0 0
      %1656 = vmatprep.subr.bf16.mxu0 0
      %1657 = vmatpush2.bf16.msra.mxu0 0
      %1658 = vmatprep.subr.bf16.mxu0 0
      %1659 = vmatpush2.bf16.msra.mxu0 0
      %1660 = vmatprep.subr.bf16.mxu0 0
      %1661 = vmatpush2.bf16.msra.mxu0 0
      %1662 = vmatprep.subr.bf16.mxu0 0
      %1663 = vmatpush2.bf16.msra.mxu0 0
      %1664 = vmatprep.mubr.bf16.mxu0 0
      %1665 = vmatmul.mubr.bf16.gmra.mxu0 %v1618
      %v1666 = vpop.f32.mrf.mxu0
      %v1667 = vadd.f32 0.0, %v1666
      %v1668 = vpop.f32.mrf.mxu0
      %v1669 = vpop.f32.mrf.mxu0
      %v1670 = vadd.f32 0.0, %v1669
      %v1671 = vpop.f32.mrf.mxu0
      %1672 = vmatprep.mubr.bf16.mxu0 0
      %1673 = vmatmul.mubr.bf16.gmra.mxu0 %v1621
      %v1674 = vpop.f32.mrf.mxu0
      %v1675 = vadd.f32 0.0, %v1674
      %v1676 = vpop.f32.mrf.mxu0
      %v1677 = vpop.f32.mrf.mxu0
      %v1678 = vadd.f32 0.0, %v1677
      %v1679 = vpop.f32.mrf.mxu0
      %1680 = vmatprep.mubr.bf16.mxu0 0
      %1681 = vmatmul.mubr.bf16.gmra.mxu0 %v1624
      %v1682 = vpop.f32.mrf.mxu0
      %v1683 = vadd.f32 0.0, %v1682
      %v1684 = vpop.f32.mrf.mxu0
      %v1685 = vpop.f32.mrf.mxu0
      %v1686 = vadd.f32 0.0, %v1685
      %v1687 = vpop.f32.mrf.mxu0
      %1688 = vmatprep.mubr.bf16.mxu0 0
      %1689 = vmatmul.mubr.bf16.gmra.mxu0 %v1627
      %v1690 = vpop.f32.mrf.mxu0
      %v1691 = vadd.f32 0.0, %v1690
      %v1692 = vpop.f32.mrf.mxu0
      %v1693 = vpop.f32.mrf.mxu0
      %v1694 = vadd.f32 0.0, %v1693
      %v1695 = vpop.f32.mrf.mxu0
      %1696 = vdwg.mxu0
      %v1697 = vadd.f32 %v1517, %v1667
      %v1698 = vadd.f32 %v1520, %v1670
      %v1699 = vadd.f32 %v1525, %v1675
      %v1700 = vadd.f32 %v1528, %v1678
      %v1701 = vadd.f32 %v1533, %v1683
      %v1702 = vadd.f32 %v1536, %v1686
      %v1703 = vadd.f32 %v1541, %v1691
      %v1704 = vadd.f32 %v1544, %v1694
      %s1705 = scalar_lea.vmem %s4, 28
      %v1706 = vld [vmem:[%s1705] sm:$0x3]
      %v1708 = vsel %vm759, %v1706, 0
      %1710 = vmatprep.subr.bf16.mxu0 0
      %1711 = vmatpush1.bf16.msra.mxu0 0
      %1712 = vmatprep.subr.bf16.mxu0 0
      %1713 = vmatpush1.bf16.msra.mxu0 0
      %1714 = vmatprep.subr.bf16.mxu0 0
      %1715 = vmatpush1.bf16.msra.mxu0 0
      %1716 = vmatprep.subr.bf16.mxu0 0
      %1717 = vmatpush1.bf16.msra.mxu0 0
      %1718 = vmatprep.subr.bf16.mxu0 0
      %1719 = vmatpush1.bf16.msra.mxu0 0
      %1720 = vmatprep.subr.bf16.mxu0 0
      %1721 = vmatpush1.bf16.msra.mxu0 0
      %1722 = vmatprep.subr.bf16.mxu0 0
      %1723 = vmatpush1.bf16.msra.mxu0 0
      %1724 = vmatprep.subr.bf16.mxu0 0
      %1725 = vmatpush1.bf16.msra.mxu0 %v1708
      %1726 = vmatprep.subr.bf16.mxu0 0
      %1727 = vmatpush2.bf16.msra.mxu0 0
      %1728 = vmatprep.subr.bf16.mxu0 0
      %1729 = vmatpush2.bf16.msra.mxu0 0
      %1730 = vmatprep.subr.bf16.mxu0 0
      %1731 = vmatpush2.bf16.msra.mxu0 0
      %1732 = vmatprep.subr.bf16.mxu0 0
      %1733 = vmatpush2.bf16.msra.mxu0 0
      %1734 = vmatprep.subr.bf16.mxu0 0
      %1735 = vmatpush2.bf16.msra.mxu0 0
      %1736 = vmatprep.subr.bf16.mxu0 0
      %1737 = vmatpush2.bf16.msra.mxu0 0
      %1738 = vmatprep.subr.bf16.mxu0 0
      %1739 = vmatpush2.bf16.msra.mxu0 0
      %1740 = vmatprep.subr.bf16.mxu0 0
      %1741 = vmatpush2.bf16.msra.mxu0 0
      %1742 = vmatprep.mubr.bf16.mxu0 0
      %1743 = vmatmul.mubr.bf16.gmra.mxu0 %v1063
      %v1744 = vpop.f32.mrf.mxu0
      %v1745 = vadd.f32 0.0, %v1744
      %v1746 = vpop.f32.mrf.mxu0
      %v1747 = vpop.f32.mrf.mxu0
      %v1748 = vadd.f32 0.0, %v1747
      %v1749 = vpop.f32.mrf.mxu0
      %1750 = vmatprep.mubr.bf16.mxu0 0
      %1751 = vmatmul.mubr.bf16.gmra.mxu0 %v1066
      %v1752 = vpop.f32.mrf.mxu0
      %v1753 = vadd.f32 0.0, %v1752
      %v1754 = vpop.f32.mrf.mxu0
      %v1755 = vpop.f32.mrf.mxu0
      %v1756 = vadd.f32 0.0, %v1755
      %v1757 = vpop.f32.mrf.mxu0
      %1758 = vmatprep.mubr.bf16.mxu0 0
      %1759 = vmatmul.mubr.bf16.gmra.mxu0 %v1069
      %v1760 = vpop.f32.mrf.mxu0
      %v1761 = vadd.f32 0.0, %v1760
      %v1762 = vpop.f32.mrf.mxu0
      %v1763 = vpop.f32.mrf.mxu0
      %v1764 = vadd.f32 0.0, %v1763
      %v1765 = vpop.f32.mrf.mxu0
      %1766 = vmatprep.mubr.bf16.mxu0 0
      %1767 = vmatmul.mubr.bf16.gmra.mxu0 %v1072
      %v1768 = vpop.f32.mrf.mxu0
      %v1769 = vadd.f32 0.0, %v1768
      %v1770 = vpop.f32.mrf.mxu0
      %v1771 = vpop.f32.mrf.mxu0
      %v1772 = vadd.f32 0.0, %v1771
      %v1773 = vpop.f32.mrf.mxu0
      %1774 = vdwg.mxu0
      %v1775 = vadd.f32 %v1697, %v1745
      %v1776 = vadd.f32 %v1698, %v1748
      %v1777 = vadd.f32 %v1699, %v1753
      %v1778 = vadd.f32 %v1700, %v1756
      %v1779 = vadd.f32 %v1701, %v1761
      %v1780 = vadd.f32 %v1702, %v1764
      %v1781 = vadd.f32 %v1703, %v1769
      %v1782 = vadd.f32 %v1704, %v1772
      %v1783 = vsel %vm746, %v1775, 0.0
      %v1784 = vsel %vm746, %v1776, 0.0
      %v1785 = vadd.f32 %v1783, %v1784
      %v1786 = vsel %vm746, %v1777, 0.0
      %v1787 = vadd.f32 %v1785, %v1786
      %v1788 = vsel %vm746, %v1778, 0.0
      %v1789 = vadd.f32 %v1787, %v1788
      %v1790 = vsel %vm746, %v1779, 0.0
      %v1791 = vadd.f32 %v1789, %v1790
      %v1792 = vsel %vm746, %v1780, 0.0
      %v1793 = vadd.f32 %v1791, %v1792
      %v1794 = vsel %vm746, %v1781, 0.0
      %v1795 = vadd.f32 %v1793, %v1794
      %v1796 = vsel %vm746, %v1782, 0.0
      %v1797 = vadd.f32 %v1795, %v1796
      %v1798 = vrot.slane %v1797, 4
      %v1799 = vadd.f32 %v1797, %v1798
      %v1800 = vrot.slane %v1799, 2
      %v1801 = vadd.f32 %v1799, %v1800
      %v1802 = vrot.slane %v1801, 1
      %v1803 = vadd.f32 %v1801, %v1802
      %v1804 = vadd.f32 %v1289, %v1803
      %v1805 = vmul.f32 %v1775, %v1775
      %v1806 = vmul.f32 %v1776, %v1776
      %v1807 = vmul.f32 %v1777, %v1777
      %v1808 = vmul.f32 %v1778, %v1778
      %v1809 = vmul.f32 %v1779, %v1779
      %v1810 = vmul.f32 %v1780, %v1780
      %v1811 = vmul.f32 %v1781, %v1781
      %v1812 = vmul.f32 %v1782, %v1782
      %v1813 = vsel %vm746, %v1805, 0.0
      %v1814 = vsel %vm746, %v1806, 0.0
      %v1815 = vadd.f32 %v1813, %v1814
      %v1816 = vsel %vm746, %v1807, 0.0
      %v1817 = vadd.f32 %v1815, %v1816
      %v1818 = vsel %vm746, %v1808, 0.0
      %v1819 = vadd.f32 %v1817, %v1818
      %v1820 = vsel %vm746, %v1809, 0.0
      %v1821 = vadd.f32 %v1819, %v1820
      %v1822 = vsel %vm746, %v1810, 0.0
      %v1823 = vadd.f32 %v1821, %v1822
      %v1824 = vsel %vm746, %v1811, 0.0
      %v1825 = vadd.f32 %v1823, %v1824
      %v1826 = vsel %vm746, %v1812, 0.0
      %v1827 = vadd.f32 %v1825, %v1826
      %v1828 = vrot.slane %v1827, 4
      %v1829 = vadd.f32 %v1827, %v1828
      %v1830 = vrot.slane %v1829, 2
      %v1831 = vadd.f32 %v1829, %v1830
      %v1832 = vrot.slane %v1831, 1
      %v1833 = vadd.f32 %v1831, %v1832
      %v1834 = vadd.f32 %v1319, %v1833
      %v1835 = vpack.c.bf16 %v1776, %v1775
      %v1836 = vpack.c.bf16 %v1778, %v1777
      %v1837 = vpack.c.bf16 %v1780, %v1779
      %v1838 = vpack.c.bf16 %v1782, %v1781
      %1843 = vrot.lane.b32.xlu0 %v1835, 4
      %v1844 = vpop.permute.xlu0 %1843
      %1845 = vrot.lane.b32.xlu0 %v1836, 4
      %v1846 = vpop.permute.xlu0 %1845
      %1847 = vrot.lane.b32.xlu0 %v1837, 4
      %v1848 = vpop.permute.xlu0 %1847
      %1849 = vrot.lane.b32.xlu0 %v1838, 4
      %v1850 = vpop.permute.xlu0 %1849
      %v1853 = vsel %vm746, %v1320, %v1844
      %v1856 = vsel %vm746, %v1321, %v1846
      %v1859 = vsel %vm746, %v1322, %v1848
      %v1862 = vsel %vm746, %v1323, %v1850
      %v1867 = vunpack.c.l.b16 %v1853
      %v1868 = vunpack.c.h.b16 %v1853
      %v1869 = vunpack.c.l.b16 %v1856
      %v1870 = vunpack.c.h.b16 %v1856
      %v1871 = vunpack.c.l.b16 %v1859
      %v1872 = vunpack.c.h.b16 %v1859
      %v1873 = vunpack.c.l.b16 %v1862
      %v1874 = vunpack.c.h.b16 %v1862
      %v1875 = vpack.c.b16 %v1867, %v1867
      %v1876 = vpack.c.b16 %v1868, %v1868
      %v1877 = vpack.c.b16 %v1869, %v1869
      %v1878 = vpack.c.b16 %v1870, %v1870
      %v1879 = vpack.c.b16 %v1871, %v1871
      %v1880 = vpack.c.b16 %v1872, %v1872
      %v1881 = vpack.c.b16 %v1873, %v1873
      %v1882 = vpack.c.b16 %v1874, %v1874
      %vm1891 = vcmask 60416
      %1892 = vst.msk [vmem:[%s258] sm:$0xf] %vm1891, %v1875
      %1893 = vst.msk [vmem:[%s258 + $0x8] sm:$0xf] %vm1891, %v1876
      %1894 = vst.msk [vmem:[%s258 + $0x10] sm:$0xf] %vm1891, %v1877
      %1895 = vst.msk [vmem:[%s258 + $0x18] sm:$0xf] %vm1891, %v1878
      %1896 = vst.msk [vmem:[%s258 + $0x20] sm:$0xf] %vm1891, %v1879
      %1897 = vst.msk [vmem:[%s258 + $0x28] sm:$0xf] %vm1891, %v1880
      %1898 = vst.msk [vmem:[%s258 + $0x30] sm:$0xf] %vm1891, %v1881
      %1899 = vst.msk [vmem:[%s258 + $0x38] sm:$0xf] %vm1891, %v1882
      %s1900 = scalar_lea.vmem [#allocation2], 16
      %v1901 = vld [vmem:[%s1900] sm:$0xf]
      %v1902 = vld [vmem:[%s1900 + $0x4] sm:$0x1]
      %v1903 = vld [vmem:[%s1900 + $0x8] sm:$0xf]
      %v1904 = vld [vmem:[%s1900 + $0xc] sm:$0x1]
      %v1905 = vld [vmem:[%s1900 + $0x10] sm:$0xf]
      %v1906 = vld [vmem:[%s1900 + $0x14] sm:$0x1]
      %v1907 = vld [vmem:[%s1900 + $0x18] sm:$0xf]
      %v1908 = vld [vmem:[%s1900 + $0x1c] sm:$0x1]
      %v1909 = vld [vmem:[%s1900 + $0x20] sm:$0xf]
      %v1910 = vld [vmem:[%s1900 + $0x24] sm:$0x1]
      %v1911 = vld [vmem:[%s1900 + $0x28] sm:$0xf]
      %v1912 = vld [vmem:[%s1900 + $0x2c] sm:$0x1]
      %v1913 = vld [vmem:[%s1900 + $0x30] sm:$0xf]
      %v1914 = vld [vmem:[%s1900 + $0x34] sm:$0x1]
      %v1915 = vld [vmem:[%s1900 + $0x38] sm:$0xf]
      %v1916 = vld [vmem:[%s1900 + $0x3c] sm:$0x1]
      %v1918 = vshrl.u32 %v1901, 16
      %v1920 = vrot.slane %v1918, 4
      %v1921 = vshll.u32 %v1901, 16
      %v1923 = vrot.slane %v1921, 5
      %v1924 = vor.u32 %v1920, %v1923
      %v1925 = vrot.slane %v1924, 4
      %v1927 = vshll.u32 %v1902, 16
      %v1929 = vrot.slane %v1927, 5
      %v1930 = vsel %vm609, %v1925, %v1929
      %v1932 = vshrl.u32 %v1903, 16
      %v1934 = vrot.slane %v1932, 4
      %v1935 = vshll.u32 %v1903, 16
      %v1937 = vrot.slane %v1935, 5
      %v1938 = vor.u32 %v1934, %v1937
      %v1939 = vrot.slane %v1938, 4
      %v1941 = vshll.u32 %v1904, 16
      %v1943 = vrot.slane %v1941, 5
      %v1944 = vsel %vm609, %v1939, %v1943
      %v1946 = vshrl.u32 %v1905, 16
      %v1948 = vrot.slane %v1946, 4
      %v1949 = vshll.u32 %v1905, 16
      %v1951 = vrot.slane %v1949, 5
      %v1952 = vor.u32 %v1948, %v1951
      %v1953 = vrot.slane %v1952, 4
      %v1955 = vshll.u32 %v1906, 16
      %v1957 = vrot.slane %v1955, 5
      %v1958 = vsel %vm609, %v1953, %v1957
      %v1960 = vshrl.u32 %v1907, 16
      %v1962 = vrot.slane %v1960, 4
      %v1963 = vshll.u32 %v1907, 16
      %v1965 = vrot.slane %v1963, 5
      %v1966 = vor.u32 %v1962, %v1965
      %v1967 = vrot.slane %v1966, 4
      %v1969 = vshll.u32 %v1908, 16
      %v1971 = vrot.slane %v1969, 5
      %v1972 = vsel %vm609, %v1967, %v1971
      %v1974 = vshrl.u32 %v1909, 16
      %v1976 = vrot.slane %v1974, 4
      %v1977 = vshll.u32 %v1909, 16
      %v1979 = vrot.slane %v1977, 5
      %v1980 = vor.u32 %v1976, %v1979
      %v1981 = vrot.slane %v1980, 4
      %v1983 = vshll.u32 %v1910, 16
      %v1985 = vrot.slane %v1983, 5
      %v1986 = vsel %vm609, %v1981, %v1985
      %v1988 = vshrl.u32 %v1911, 16
      %v1990 = vrot.slane %v1988, 4
      %v1991 = vshll.u32 %v1911, 16
      %v1993 = vrot.slane %v1991, 5
      %v1994 = vor.u32 %v1990, %v1993
      %v1995 = vrot.slane %v1994, 4
      %v1997 = vshll.u32 %v1912, 16
      %v1999 = vrot.slane %v1997, 5
      %v2000 = vsel %vm609, %v1995, %v1999
      %v2002 = vshrl.u32 %v1913, 16
      %v2004 = vrot.slane %v2002, 4
      %v2005 = vshll.u32 %v1913, 16
      %v2007 = vrot.slane %v2005, 5
      %v2008 = vor.u32 %v2004, %v2007
      %v2009 = vrot.slane %v2008, 4
      %v2011 = vshll.u32 %v1914, 16
      %v2013 = vrot.slane %v2011, 5
      %v2014 = vsel %vm609, %v2009, %v2013
      %v2016 = vshrl.u32 %v1915, 16
      %v2018 = vrot.slane %v2016, 4
      %v2019 = vshll.u32 %v1915, 16
      %v2021 = vrot.slane %v2019, 5
      %v2022 = vor.u32 %v2018, %v2021
      %v2023 = vrot.slane %v2022, 4
      %v2025 = vshll.u32 %v1916, 16
      %v2027 = vrot.slane %v2025, 5
      %v2028 = vsel %vm609, %v2023, %v2027
      %s2029 = scalar_lea.vmem %s4, 2
      %v2030 = vld [vmem:[%s2029] sm:$0x3]
      %s2031 = scalar_lea.vmem %s4, 6
      %v2032 = vld [vmem:[%s2031] sm:$0x3]
      %v2041 = vunpack.c.l.b16 %v1901
      %v2042 = vunpack.c.l.b16 %v1903
      %v2043 = vunpack.c.l.b16 %v1905
      %v2044 = vunpack.c.l.b16 %v1907
      %v2045 = vunpack.c.l.b16 %v1909
      %v2046 = vunpack.c.l.b16 %v1911
      %v2047 = vunpack.c.l.b16 %v1913
      %v2048 = vunpack.c.l.b16 %v1915
      %v2049 = vpack.c.b16 %v2042, %v2041
      %v2050 = vpack.c.b16 %v2044, %v2043
      %v2051 = vpack.c.b16 %v2046, %v2045
      %v2052 = vpack.c.b16 %v2048, %v2047
      %v2054 = vsel %vm746, %v2049, 0
      %v2057 = vsel %vm746, %v2050, 0
      %v2060 = vsel %vm746, %v2051, 0
      %v2063 = vsel %vm746, %v2052, 0
      %v2066 = vsel %vm759, %v2032, 0
      %2068 = vmatprep.subr.bf16.mxu0 0
      %2069 = vmatpush1.bf16.msra.mxu0 0
      %2070 = vmatprep.subr.bf16.mxu0 0
      %2071 = vmatpush1.bf16.msra.mxu0 0
      %2072 = vmatprep.subr.bf16.mxu0 0
      %2073 = vmatpush1.bf16.msra.mxu0 0
      %2074 = vmatprep.subr.bf16.mxu0 0
      %2075 = vmatpush1.bf16.msra.mxu0 0
      %2076 = vmatprep.subr.bf16.mxu0 0
      %2077 = vmatpush1.bf16.msra.mxu0 0
      %2078 = vmatprep.subr.bf16.mxu0 0
      %2079 = vmatpush1.bf16.msra.mxu0 0
      %2080 = vmatprep.subr.bf16.mxu0 0
      %2081 = vmatpush1.bf16.msra.mxu0 0
      %2082 = vmatprep.subr.bf16.mxu0 0
      %2083 = vmatpush1.bf16.msra.mxu0 %v2066
      %2084 = vmatprep.subr.bf16.mxu0 0
      %2085 = vmatpush2.bf16.msra.mxu0 0
      %2086 = vmatprep.subr.bf16.mxu0 0
      %2087 = vmatpush2.bf16.msra.mxu0 0
      %2088 = vmatprep.subr.bf16.mxu0 0
      %2089 = vmatpush2.bf16.msra.mxu0 0
      %2090 = vmatprep.subr.bf16.mxu0 0
      %2091 = vmatpush2.bf16.msra.mxu0 0
      %2092 = vmatprep.subr.bf16.mxu0 0
      %2093 = vmatpush2.bf16.msra.mxu0 0
      %2094 = vmatprep.subr.bf16.mxu0 0
      %2095 = vmatpush2.bf16.msra.mxu0 0
      %2096 = vmatprep.subr.bf16.mxu0 0
      %2097 = vmatpush2.bf16.msra.mxu0 0
      %2098 = vmatprep.subr.bf16.mxu0 0
      %2099 = vmatpush2.bf16.msra.mxu0 0
      %2100 = vmatprep.mubr.bf16.mxu0 0
      %2101 = vmatmul.mubr.bf16.gmra.mxu0 %v2054
      %v2102 = vpop.f32.mrf.mxu0
      %v2103 = vadd.f32 0.0, %v2102
      %v2104 = vpop.f32.mrf.mxu0
      %v2105 = vpop.f32.mrf.mxu0
      %v2106 = vadd.f32 0.0, %v2105
      %v2107 = vpop.f32.mrf.mxu0
      %2108 = vmatprep.mubr.bf16.mxu0 0
      %2109 = vmatmul.mubr.bf16.gmra.mxu0 %v2057
      %v2110 = vpop.f32.mrf.mxu0
      %v2111 = vadd.f32 0.0, %v2110
      %v2112 = vpop.f32.mrf.mxu0
      %v2113 = vpop.f32.mrf.mxu0
      %v2114 = vadd.f32 0.0, %v2113
      %v2115 = vpop.f32.mrf.mxu0
      %2116 = vmatprep.mubr.bf16.mxu0 0
      %2117 = vmatmul.mubr.bf16.gmra.mxu0 %v2060
      %v2118 = vpop.f32.mrf.mxu0
      %v2119 = vadd.f32 0.0, %v2118
      %v2120 = vpop.f32.mrf.mxu0
      %v2121 = vpop.f32.mrf.mxu0
      %v2122 = vadd.f32 0.0, %v2121
      %v2123 = vpop.f32.mrf.mxu0
      %2124 = vmatprep.mubr.bf16.mxu0 0
      %2125 = vmatmul.mubr.bf16.gmra.mxu0 %v2063
      %v2126 = vpop.f32.mrf.mxu0
      %v2127 = vadd.f32 0.0, %v2126
      %v2128 = vpop.f32.mrf.mxu0
      %v2129 = vpop.f32.mrf.mxu0
      %v2130 = vadd.f32 0.0, %v2129
      %v2131 = vpop.f32.mrf.mxu0
      %2132 = vdwg.mxu0
      %v2133 = vunpack.c.l.b16 %v1930
      %v2134 = vunpack.c.l.b16 %v1944
      %v2135 = vunpack.c.l.b16 %v1958
      %v2136 = vunpack.c.l.b16 %v1972
      %v2137 = vunpack.c.l.b16 %v1986
      %v2138 = vunpack.c.l.b16 %v2000
      %v2139 = vunpack.c.l.b16 %v2014
      %v2140 = vunpack.c.l.b16 %v2028
      %v2141 = vpack.c.b16 %v2134, %v2133
      %v2142 = vpack.c.b16 %v2136, %v2135
      %v2143 = vpack.c.b16 %v2138, %v2137
      %v2144 = vpack.c.b16 %v2140, %v2139
      %v2146 = vsel %vm746, %v2141, 0
      %v2149 = vsel %vm746, %v2142, 0
      %v2152 = vsel %vm746, %v2143, 0
      %v2155 = vsel %vm746, %v2144, 0
      %v2158 = vsel %vm759, %v2030, 0
      %2160 = vmatprep.subr.bf16.mxu0 0
      %2161 = vmatpush1.bf16.msra.mxu0 0
      %2162 = vmatprep.subr.bf16.mxu0 0
      %2163 = vmatpush1.bf16.msra.mxu0 0
      %2164 = vmatprep.subr.bf16.mxu0 0
      %2165 = vmatpush1.bf16.msra.mxu0 0
      %2166 = vmatprep.subr.bf16.mxu0 0
      %2167 = vmatpush1.bf16.msra.mxu0 0
      %2168 = vmatprep.subr.bf16.mxu0 0
      %2169 = vmatpush1.bf16.msra.mxu0 0
      %2170 = vmatprep.subr.bf16.mxu0 0
      %2171 = vmatpush1.bf16.msra.mxu0 0
      %2172 = vmatprep.subr.bf16.mxu0 0
      %2173 = vmatpush1.bf16.msra.mxu0 0
      %2174 = vmatprep.subr.bf16.mxu0 0
      %2175 = vmatpush1.bf16.msra.mxu0 %v2158
      %2176 = vmatprep.subr.bf16.mxu0 0
      %2177 = vmatpush2.bf16.msra.mxu0 0
      %2178 = vmatprep.subr.bf16.mxu0 0
      %2179 = vmatpush2.bf16.msra.mxu0 0
      %2180 = vmatprep.subr.bf16.mxu0 0
      %2181 = vmatpush2.bf16.msra.mxu0 0
      %2182 = vmatprep.subr.bf16.mxu0 0
      %2183 = vmatpush2.bf16.msra.mxu0 0
      %2184 = vmatprep.subr.bf16.mxu0 0
      %2185 = vmatpush2.bf16.msra.mxu0 0
      %2186 = vmatprep.subr.bf16.mxu0 0
      %2187 = vmatpush2.bf16.msra.mxu0 0
      %2188 = vmatprep.subr.bf16.mxu0 0
      %2189 = vmatpush2.bf16.msra.mxu0 0
      %2190 = vmatprep.subr.bf16.mxu0 0
      %2191 = vmatpush2.bf16.msra.mxu0 0
      %2192 = vmatprep.mubr.bf16.mxu0 0
      %2193 = vmatmul.mubr.bf16.gmra.mxu0 %v2146
      %v2194 = vpop.f32.mrf.mxu0
      %v2195 = vadd.f32 %v2103, %v2194
      %v2196 = vpop.f32.mrf.mxu0
      %v2197 = vpop.f32.mrf.mxu0
      %v2198 = vadd.f32 %v2106, %v2197
      %v2199 = vpop.f32.mrf.mxu0
      %2200 = vmatprep.mubr.bf16.mxu0 0
      %2201 = vmatmul.mubr.bf16.gmra.mxu0 %v2149
      %v2202 = vpop.f32.mrf.mxu0
      %v2203 = vadd.f32 %v2111, %v2202
      %v2204 = vpop.f32.mrf.mxu0
      %v2205 = vpop.f32.mrf.mxu0
      %v2206 = vadd.f32 %v2114, %v2205
      %v2207 = vpop.f32.mrf.mxu0
      %2208 = vmatprep.mubr.bf16.mxu0 0
      %2209 = vmatmul.mubr.bf16.gmra.mxu0 %v2152
      %v2210 = vpop.f32.mrf.mxu0
      %v2211 = vadd.f32 %v2119, %v2210
      %v2212 = vpop.f32.mrf.mxu0
      %v2213 = vpop.f32.mrf.mxu0
      %v2214 = vadd.f32 %v2122, %v2213
      %v2215 = vpop.f32.mrf.mxu0
      %2216 = vmatprep.mubr.bf16.mxu0 0
      %2217 = vmatmul.mubr.bf16.gmra.mxu0 %v2155
      %v2218 = vpop.f32.mrf.mxu0
      %v2219 = vadd.f32 %v2127, %v2218
      %v2220 = vpop.f32.mrf.mxu0
      %v2221 = vpop.f32.mrf.mxu0
      %v2222 = vadd.f32 %v2130, %v2221
      %v2223 = vpop.f32.mrf.mxu0
      %2224 = vdwg.mxu0
      %v2225 = vld [vmem:[%s375] sm:$0xf]
      %v2226 = vld [vmem:[%s375 + $0x4] sm:$0x1]
      %v2227 = vld [vmem:[%s375 + $0x8] sm:$0xf]
      %v2228 = vld [vmem:[%s375 + $0xc] sm:$0x1]
      %v2229 = vld [vmem:[%s375 + $0x10] sm:$0xf]
      %v2230 = vld [vmem:[%s375 + $0x14] sm:$0x1]
      %v2231 = vld [vmem:[%s375 + $0x18] sm:$0xf]
      %v2232 = vld [vmem:[%s375 + $0x1c] sm:$0x1]
      %v2233 = vld [vmem:[%s375 + $0x20] sm:$0xf]
      %v2234 = vld [vmem:[%s375 + $0x24] sm:$0x1]
      %v2235 = vld [vmem:[%s375 + $0x28] sm:$0xf]
      %v2236 = vld [vmem:[%s375 + $0x2c] sm:$0x1]
      %v2237 = vld [vmem:[%s375 + $0x30] sm:$0xf]
      %v2238 = vld [vmem:[%s375 + $0x34] sm:$0x1]
      %v2239 = vld [vmem:[%s375 + $0x38] sm:$0xf]
      %v2240 = vld [vmem:[%s375 + $0x3c] sm:$0x1]
      %v2242 = vshrl.u32 %v2225, 16
      %v2244 = vrot.slane %v2242, 4
      %v2245 = vshll.u32 %v2225, 16
      %v2247 = vrot.slane %v2245, 5
      %v2248 = vor.u32 %v2244, %v2247
      %v2249 = vrot.slane %v2248, 4
      %v2251 = vshll.u32 %v2226, 16
      %v2253 = vrot.slane %v2251, 5
      %v2254 = vsel %vm609, %v2249, %v2253
      %v2256 = vshrl.u32 %v2227, 16
      %v2258 = vrot.slane %v2256, 4
      %v2259 = vshll.u32 %v2227, 16
      %v2261 = vrot.slane %v2259, 5
      %v2262 = vor.u32 %v2258, %v2261
      %v2263 = vrot.slane %v2262, 4
      %v2265 = vshll.u32 %v2228, 16
      %v2267 = vrot.slane %v2265, 5
      %v2268 = vsel %vm609, %v2263, %v2267
      %v2270 = vshrl.u32 %v2229, 16
      %v2272 = vrot.slane %v2270, 4
      %v2273 = vshll.u32 %v2229, 16
      %v2275 = vrot.slane %v2273, 5
      %v2276 = vor.u32 %v2272, %v2275
      %v2277 = vrot.slane %v2276, 4
      %v2279 = vshll.u32 %v2230, 16
      %v2281 = vrot.slane %v2279, 5
      %v2282 = vsel %vm609, %v2277, %v2281
      %v2284 = vshrl.u32 %v2231, 16
      %v2286 = vrot.slane %v2284, 4
      %v2287 = vshll.u32 %v2231, 16
      %v2289 = vrot.slane %v2287, 5
      %v2290 = vor.u32 %v2286, %v2289
      %v2291 = vrot.slane %v2290, 4
      %v2293 = vshll.u32 %v2232, 16
      %v2295 = vrot.slane %v2293, 5
      %v2296 = vsel %vm609, %v2291, %v2295
      %v2298 = vshrl.u32 %v2233, 16
      %v2300 = vrot.slane %v2298, 4
      %v2301 = vshll.u32 %v2233, 16
      %v2303 = vrot.slane %v2301, 5
      %v2304 = vor.u32 %v2300, %v2303
      %v2305 = vrot.slane %v2304, 4
      %v2307 = vshll.u32 %v2234, 16
      %v2309 = vrot.slane %v2307, 5
      %v2310 = vsel %vm609, %v2305, %v2309
      %v2312 = vshrl.u32 %v2235, 16
      %v2314 = vrot.slane %v2312, 4
      %v2315 = vshll.u32 %v2235, 16
      %v2317 = vrot.slane %v2315, 5
      %v2318 = vor.u32 %v2314, %v2317
      %v2319 = vrot.slane %v2318, 4
      %v2321 = vshll.u32 %v2236, 16
      %v2323 = vrot.slane %v2321, 5
      %v2324 = vsel %vm609, %v2319, %v2323
      %v2326 = vshrl.u32 %v2237, 16
      %v2328 = vrot.slane %v2326, 4
      %v2329 = vshll.u32 %v2237, 16
      %v2331 = vrot.slane %v2329, 5
      %v2332 = vor.u32 %v2328, %v2331
      %v2333 = vrot.slane %v2332, 4
      %v2335 = vshll.u32 %v2238, 16
      %v2337 = vrot.slane %v2335, 5
      %v2338 = vsel %vm609, %v2333, %v2337
      %v2340 = vshrl.u32 %v2239, 16
      %v2342 = vrot.slane %v2340, 4
      %v2343 = vshll.u32 %v2239, 16
      %v2345 = vrot.slane %v2343, 5
      %v2346 = vor.u32 %v2342, %v2345
      %v2347 = vrot.slane %v2346, 4
      %v2349 = vshll.u32 %v2240, 16
      %v2351 = vrot.slane %v2349, 5
      %v2352 = vsel %vm609, %v2347, %v2351
      %s2353 = scalar_lea.vmem %s4, 18
      %v2354 = vld [vmem:[%s2353] sm:$0x3]
      %v2355 = vunpack.c.l.b16 %v2254
      %v2356 = vunpack.c.l.b16 %v2268
      %v2357 = vunpack.c.l.b16 %v2282
      %v2358 = vunpack.c.l.b16 %v2296
      %v2359 = vunpack.c.l.b16 %v2310
      %v2360 = vunpack.c.l.b16 %v2324
      %v2361 = vunpack.c.l.b16 %v2338
      %v2362 = vunpack.c.l.b16 %v2352
      %v2363 = vpack.c.b16 %v2356, %v2355
      %v2364 = vpack.c.b16 %v2358, %v2357
      %v2365 = vpack.c.b16 %v2360, %v2359
      %v2366 = vpack.c.b16 %v2362, %v2361
      %v2368 = vsel %vm746, %v2363, 0
      %v2371 = vsel %vm746, %v2364, 0
      %v2374 = vsel %vm746, %v2365, 0
      %v2377 = vsel %vm746, %v2366, 0
      %v2380 = vsel %vm759, %v2354, 0
      %2382 = vmatprep.subr.bf16.mxu0 0
      %2383 = vmatpush1.bf16.msra.mxu0 0
      %2384 = vmatprep.subr.bf16.mxu0 0
      %2385 = vmatpush1.bf16.msra.mxu0 0
      %2386 = vmatprep.subr.bf16.mxu0 0
      %2387 = vmatpush1.bf16.msra.mxu0 0
      %2388 = vmatprep.subr.bf16.mxu0 0
      %2389 = vmatpush1.bf16.msra.mxu0 0
      %2390 = vmatprep.subr.bf16.mxu0 0
      %2391 = vmatpush1.bf16.msra.mxu0 0
      %2392 = vmatprep.subr.bf16.mxu0 0
      %2393 = vmatpush1.bf16.msra.mxu0 0
      %2394 = vmatprep.subr.bf16.mxu0 0
      %2395 = vmatpush1.bf16.msra.mxu0 0
      %2396 = vmatprep.subr.bf16.mxu0 0
      %2397 = vmatpush1.bf16.msra.mxu0 %v2380
      %2398 = vmatprep.subr.bf16.mxu0 0
      %2399 = vmatpush2.bf16.msra.mxu0 0
      %2400 = vmatprep.subr.bf16.mxu0 0
      %2401 = vmatpush2.bf16.msra.mxu0 0
      %2402 = vmatprep.subr.bf16.mxu0 0
      %2403 = vmatpush2.bf16.msra.mxu0 0
      %2404 = vmatprep.subr.bf16.mxu0 0
      %2405 = vmatpush2.bf16.msra.mxu0 0
      %2406 = vmatprep.subr.bf16.mxu0 0
      %2407 = vmatpush2.bf16.msra.mxu0 0
      %2408 = vmatprep.subr.bf16.mxu0 0
      %2409 = vmatpush2.bf16.msra.mxu0 0
      %2410 = vmatprep.subr.bf16.mxu0 0
      %2411 = vmatpush2.bf16.msra.mxu0 0
      %2412 = vmatprep.subr.bf16.mxu0 0
      %2413 = vmatpush2.bf16.msra.mxu0 0
      %2414 = vmatprep.mubr.bf16.mxu0 0
      %2415 = vmatmul.mubr.bf16.gmra.mxu0 %v2368
      %v2416 = vpop.f32.mrf.mxu0
      %v2417 = vadd.f32 0.0, %v2416
      %v2418 = vpop.f32.mrf.mxu0
      %v2419 = vpop.f32.mrf.mxu0
      %v2420 = vadd.f32 0.0, %v2419
      %v2421 = vpop.f32.mrf.mxu0
      %2422 = vmatprep.mubr.bf16.mxu0 0
      %2423 = vmatmul.mubr.bf16.gmra.mxu0 %v2371
      %v2424 = vpop.f32.mrf.mxu0
      %v2425 = vadd.f32 0.0, %v2424
      %v2426 = vpop.f32.mrf.mxu0
      %v2427 = vpop.f32.mrf.mxu0
      %v2428 = vadd.f32 0.0, %v2427
      %v2429 = vpop.f32.mrf.mxu0
      %2430 = vmatprep.mubr.bf16.mxu0 0
      %2431 = vmatmul.mubr.bf16.gmra.mxu0 %v2374
      %v2432 = vpop.f32.mrf.mxu0
      %v2433 = vadd.f32 0.0, %v2432
      %v2434 = vpop.f32.mrf.mxu0
      %v2435 = vpop.f32.mrf.mxu0
      %v2436 = vadd.f32 0.0, %v2435
      %v2437 = vpop.f32.mrf.mxu0
      %2438 = vmatprep.mubr.bf16.mxu0 0
      %2439 = vmatmul.mubr.bf16.gmra.mxu0 %v2377
      %v2440 = vpop.f32.mrf.mxu0
      %v2441 = vadd.f32 0.0, %v2440
      %v2442 = vpop.f32.mrf.mxu0
      %v2443 = vpop.f32.mrf.mxu0
      %v2444 = vadd.f32 0.0, %v2443
      %v2445 = vpop.f32.mrf.mxu0
      %2446 = vdwg.mxu0
      %v2447 = vadd.f32 %v2195, %v2417
      %v2448 = vadd.f32 %v2198, %v2420
      %v2449 = vadd.f32 %v2203, %v2425
      %v2450 = vadd.f32 %v2206, %v2428
      %v2451 = vadd.f32 %v2211, %v2433
      %v2452 = vadd.f32 %v2214, %v2436
      %v2453 = vadd.f32 %v2219, %v2441
      %v2454 = vadd.f32 %v2222, %v2444
      %v2455 = vld [vmem:[%s375] sm:$0xf]
      %v2456 = vld [vmem:[%s375 + $0x8] sm:$0xf]
      %v2457 = vld [vmem:[%s375 + $0x10] sm:$0xf]
      %v2458 = vld [vmem:[%s375 + $0x18] sm:$0xf]
      %v2459 = vld [vmem:[%s375 + $0x20] sm:$0xf]
      %v2460 = vld [vmem:[%s375 + $0x28] sm:$0xf]
      %v2461 = vld [vmem:[%s375 + $0x30] sm:$0xf]
      %v2462 = vld [vmem:[%s375 + $0x38] sm:$0xf]
      %s2463 = scalar_lea.vmem %s4, 22
      %v2464 = vld [vmem:[%s2463] sm:$0x3]
      %v2473 = vunpack.c.l.b16 %v2455
      %v2474 = vunpack.c.l.b16 %v2456
      %v2475 = vunpack.c.l.b16 %v2457
      %v2476 = vunpack.c.l.b16 %v2458
      %v2477 = vunpack.c.l.b16 %v2459
      %v2478 = vunpack.c.l.b16 %v2460
      %v2479 = vunpack.c.l.b16 %v2461
      %v2480 = vunpack.c.l.b16 %v2462
      %v2481 = vpack.c.b16 %v2474, %v2473
      %v2482 = vpack.c.b16 %v2476, %v2475
      %v2483 = vpack.c.b16 %v2478, %v2477
      %v2484 = vpack.c.b16 %v2480, %v2479
      %v2486 = vsel %vm746, %v2481, 0
      %v2489 = vsel %vm746, %v2482, 0
      %v2492 = vsel %vm746, %v2483, 0
      %v2495 = vsel %vm746, %v2484, 0
      %v2498 = vsel %vm759, %v2464, 0
      %2500 = vmatprep.subr.bf16.mxu0 0
      %2501 = vmatpush1.bf16.msra.mxu0 0
      %2502 = vmatprep.subr.bf16.mxu0 0
      %2503 = vmatpush1.bf16.msra.mxu0 0
      %2504 = vmatprep.subr.bf16.mxu0 0
      %2505 = vmatpush1.bf16.msra.mxu0 0
      %2506 = vmatprep.subr.bf16.mxu0 0
      %2507 = vmatpush1.bf16.msra.mxu0 0
      %2508 = vmatprep.subr.bf16.mxu0 0
      %2509 = vmatpush1.bf16.msra.mxu0 0
      %2510 = vmatprep.subr.bf16.mxu0 0
      %2511 = vmatpush1.bf16.msra.mxu0 0
      %2512 = vmatprep.subr.bf16.mxu0 0
      %2513 = vmatpush1.bf16.msra.mxu0 0
      %2514 = vmatprep.subr.bf16.mxu0 0
      %2515 = vmatpush1.bf16.msra.mxu0 %v2498
      %2516 = vmatprep.subr.bf16.mxu0 0
      %2517 = vmatpush2.bf16.msra.mxu0 0
      %2518 = vmatprep.subr.bf16.mxu0 0
      %2519 = vmatpush2.bf16.msra.mxu0 0
      %2520 = vmatprep.subr.bf16.mxu0 0
      %2521 = vmatpush2.bf16.msra.mxu0 0
      %2522 = vmatprep.subr.bf16.mxu0 0
      %2523 = vmatpush2.bf16.msra.mxu0 0
      %2524 = vmatprep.subr.bf16.mxu0 0
      %2525 = vmatpush2.bf16.msra.mxu0 0
      %2526 = vmatprep.subr.bf16.mxu0 0
      %2527 = vmatpush2.bf16.msra.mxu0 0
      %2528 = vmatprep.subr.bf16.mxu0 0
      %2529 = vmatpush2.bf16.msra.mxu0 0
      %2530 = vmatprep.subr.bf16.mxu0 0
      %2531 = vmatpush2.bf16.msra.mxu0 0
      %2532 = vmatprep.mubr.bf16.mxu0 0
      %2533 = vmatmul.mubr.bf16.gmra.mxu0 %v2486
      %v2534 = vpop.f32.mrf.mxu0
      %v2535 = vadd.f32 0.0, %v2534
      %v2536 = vpop.f32.mrf.mxu0
      %v2537 = vpop.f32.mrf.mxu0
      %v2538 = vadd.f32 0.0, %v2537
      %v2539 = vpop.f32.mrf.mxu0
      %2540 = vmatprep.mubr.bf16.mxu0 0
      %2541 = vmatmul.mubr.bf16.gmra.mxu0 %v2489
      %v2542 = vpop.f32.mrf.mxu0
      %v2543 = vadd.f32 0.0, %v2542
      %v2544 = vpop.f32.mrf.mxu0
      %v2545 = vpop.f32.mrf.mxu0
      %v2546 = vadd.f32 0.0, %v2545
      %v2547 = vpop.f32.mrf.mxu0
      %2548 = vmatprep.mubr.bf16.mxu0 0
      %2549 = vmatmul.mubr.bf16.gmra.mxu0 %v2492
      %v2550 = vpop.f32.mrf.mxu0
      %v2551 = vadd.f32 0.0, %v2550
      %v2552 = vpop.f32.mrf.mxu0
      %v2553 = vpop.f32.mrf.mxu0
      %v2554 = vadd.f32 0.0, %v2553
      %v2555 = vpop.f32.mrf.mxu0
      %2556 = vmatprep.mubr.bf16.mxu0 0
      %2557 = vmatmul.mubr.bf16.gmra.mxu0 %v2495
      %v2558 = vpop.f32.mrf.mxu0
      %v2559 = vadd.f32 0.0, %v2558
      %v2560 = vpop.f32.mrf.mxu0
      %v2561 = vpop.f32.mrf.mxu0
      %v2562 = vadd.f32 0.0, %v2561
      %v2563 = vpop.f32.mrf.mxu0
      %2564 = vdwg.mxu0
      %v2565 = vadd.f32 %v2447, %v2535
      %v2566 = vadd.f32 %v2448, %v2538
      %v2567 = vadd.f32 %v2449, %v2543
      %v2568 = vadd.f32 %v2450, %v2546
      %v2569 = vadd.f32 %v2451, %v2551
      %v2570 = vadd.f32 %v2452, %v2554
      %v2571 = vadd.f32 %v2453, %v2559
      %v2572 = vadd.f32 %v2454, %v2562
      %v2573 = vsel %vm746, %v2565, 0.0
      %v2574 = vsel %vm746, %v2566, 0.0
      %v2575 = vadd.f32 %v2573, %v2574
      %v2576 = vsel %vm746, %v2567, 0.0
      %v2577 = vadd.f32 %v2575, %v2576
      %v2578 = vsel %vm746, %v2568, 0.0
      %v2579 = vadd.f32 %v2577, %v2578
      %v2580 = vsel %vm746, %v2569, 0.0
      %v2581 = vadd.f32 %v2579, %v2580
      %v2582 = vsel %vm746, %v2570, 0.0
      %v2583 = vadd.f32 %v2581, %v2582
      %v2584 = vsel %vm746, %v2571, 0.0
      %v2585 = vadd.f32 %v2583, %v2584
      %v2586 = vsel %vm746, %v2572, 0.0
      %v2587 = vadd.f32 %v2585, %v2586
      %v2588 = vrot.slane %v2587, 4
      %v2589 = vadd.f32 %v2587, %v2588
      %v2590 = vrot.slane %v2589, 2
      %v2591 = vadd.f32 %v2589, %v2590
      %v2592 = vrot.slane %v2591, 1
      %v2593 = vadd.f32 %v2591, %v2592
      %v2594 = vadd.f32 %v1804, %v2593
      %v2595 = vmul.f32 %v2565, %v2565
      %v2596 = vmul.f32 %v2566, %v2566
      %v2597 = vmul.f32 %v2567, %v2567
      %v2598 = vmul.f32 %v2568, %v2568
      %v2599 = vmul.f32 %v2569, %v2569
      %v2600 = vmul.f32 %v2570, %v2570
      %v2601 = vmul.f32 %v2571, %v2571
      %v2602 = vmul.f32 %v2572, %v2572
      %v2603 = vsel %vm746, %v2595, 0.0
      %v2604 = vsel %vm746, %v2596, 0.0
      %v2605 = vadd.f32 %v2603, %v2604
      %v2606 = vsel %vm746, %v2597, 0.0
      %v2607 = vadd.f32 %v2605, %v2606
      %v2608 = vsel %vm746, %v2598, 0.0
      %v2609 = vadd.f32 %v2607, %v2608
      %v2610 = vsel %vm746, %v2599, 0.0
      %v2611 = vadd.f32 %v2609, %v2610
      %v2612 = vsel %vm746, %v2600, 0.0
      %v2613 = vadd.f32 %v2611, %v2612
      %v2614 = vsel %vm746, %v2601, 0.0
      %v2615 = vadd.f32 %v2613, %v2614
      %v2616 = vsel %vm746, %v2602, 0.0
      %v2617 = vadd.f32 %v2615, %v2616
      %v2618 = vrot.slane %v2617, 4
      %v2619 = vadd.f32 %v2617, %v2618
      %v2620 = vrot.slane %v2619, 2
      %v2621 = vadd.f32 %v2619, %v2620
      %v2622 = vrot.slane %v2621, 1
      %v2623 = vadd.f32 %v2621, %v2622
      %v2624 = vadd.f32 %v1834, %v2623
      %v2625 = vpack.c.bf16 %v2566, %v2565
      %v2626 = vpack.c.bf16 %v2568, %v2567
      %v2627 = vpack.c.bf16 %v2570, %v2569
      %v2628 = vpack.c.bf16 %v2572, %v2571
      %v2629 = vld [vmem:[%s1900] sm:$0xe]
      %v2630 = vld [vmem:[%s1900 + $0x8] sm:$0xe]
      %v2631 = vld [vmem:[%s1900 + $0x10] sm:$0xe]
      %v2632 = vld [vmem:[%s1900 + $0x18] sm:$0xe]
      %v2633 = vld [vmem:[%s1900 + $0x20] sm:$0xe]
      %v2634 = vld [vmem:[%s1900 + $0x28] sm:$0xe]
      %v2635 = vld [vmem:[%s1900 + $0x30] sm:$0xe]
      %v2636 = vld [vmem:[%s1900 + $0x38] sm:$0xe]
      %v2653 = vrot.slane %v2629, 5
      %v2654 = vrot.slane %v2653, 4
      %v2655 = vrot.slane %v1902, 5
      %v2656 = vsel %vm1350, %v2654, %v2655
      %v2657 = vrot.slane %v2630, 5
      %v2658 = vrot.slane %v2657, 4
      %v2659 = vrot.slane %v1904, 5
      %v2660 = vsel %vm1350, %v2658, %v2659
      %v2661 = vrot.slane %v2631, 5
      %v2662 = vrot.slane %v2661, 4
      %v2663 = vrot.slane %v1906, 5
      %v2664 = vsel %vm1350, %v2662, %v2663
      %v2665 = vrot.slane %v2632, 5
      %v2666 = vrot.slane %v2665, 4
      %v2667 = vrot.slane %v1908, 5
      %v2668 = vsel %vm1350, %v2666, %v2667
      %v2669 = vrot.slane %v2633, 5
      %v2670 = vrot.slane %v2669, 4
      %v2671 = vrot.slane %v1910, 5
      %v2672 = vsel %vm1350, %v2670, %v2671
      %v2673 = vrot.slane %v2634, 5
      %v2674 = vrot.slane %v2673, 4
      %v2675 = vrot.slane %v1912, 5
      %v2676 = vsel %vm1350, %v2674, %v2675
      %v2677 = vrot.slane %v2635, 5
      %v2678 = vrot.slane %v2677, 4
      %v2679 = vrot.slane %v1914, 5
      %v2680 = vsel %vm1350, %v2678, %v2679
      %v2681 = vrot.slane %v2636, 5
      %v2682 = vrot.slane %v2681, 4
      %v2683 = vrot.slane %v1916, 5
      %v2684 = vsel %vm1350, %v2682, %v2683
      %v2685 = vld [vmem:[%s4] sm:$0x3]
      %s2686 = scalar_lea.vmem %s4, 4
      %v2687 = vld [vmem:[%s2686] sm:$0x3]
      %v2689 = vsel %vm759, %v2687, 0
      %2691 = vmatprep.subr.bf16.mxu0 0
      %2692 = vmatpush1.bf16.msra.mxu0 0
      %2693 = vmatprep.subr.bf16.mxu0 0
      %2694 = vmatpush1.bf16.msra.mxu0 0
      %2695 = vmatprep.subr.bf16.mxu0 0
      %2696 = vmatpush1.bf16.msra.mxu0 0
      %2697 = vmatprep.subr.bf16.mxu0 0
      %2698 = vmatpush1.bf16.msra.mxu0 0
      %2699 = vmatprep.subr.bf16.mxu0 0
      %2700 = vmatpush1.bf16.msra.mxu0 0
      %2701 = vmatprep.subr.bf16.mxu0 0
      %2702 = vmatpush1.bf16.msra.mxu0 0
      %2703 = vmatprep.subr.bf16.mxu0 0
      %2704 = vmatpush1.bf16.msra.mxu0 0
      %2705 = vmatprep.subr.bf16.mxu0 0
      %2706 = vmatpush1.bf16.msra.mxu0 %v2689
      %2707 = vmatprep.subr.bf16.mxu0 0
      %2708 = vmatpush2.bf16.msra.mxu0 0
      %2709 = vmatprep.subr.bf16.mxu0 0
      %2710 = vmatpush2.bf16.msra.mxu0 0
      %2711 = vmatprep.subr.bf16.mxu0 0
      %2712 = vmatpush2.bf16.msra.mxu0 0
      %2713 = vmatprep.subr.bf16.mxu0 0
      %2714 = vmatpush2.bf16.msra.mxu0 0
      %2715 = vmatprep.subr.bf16.mxu0 0
      %2716 = vmatpush2.bf16.msra.mxu0 0
      %2717 = vmatprep.subr.bf16.mxu0 0
      %2718 = vmatpush2.bf16.msra.mxu0 0
      %2719 = vmatprep.subr.bf16.mxu0 0
      %2720 = vmatpush2.bf16.msra.mxu0 0
      %2721 = vmatprep.subr.bf16.mxu0 0
      %2722 = vmatpush2.bf16.msra.mxu0 0
      %2723 = vmatprep.mubr.bf16.mxu0 0
      %2724 = vmatmul.mubr.bf16.gmra.mxu0 %v2146
      %v2725 = vpop.f32.mrf.mxu0
      %v2726 = vadd.f32 0.0, %v2725
      %v2727 = vpop.f32.mrf.mxu0
      %v2728 = vpop.f32.mrf.mxu0
      %v2729 = vadd.f32 0.0, %v2728
      %v2730 = vpop.f32.mrf.mxu0
      %2731 = vmatprep.mubr.bf16.mxu0 0
      %2732 = vmatmul.mubr.bf16.gmra.mxu0 %v2149
      %v2733 = vpop.f32.mrf.mxu0
      %v2734 = vadd.f32 0.0, %v2733
      %v2735 = vpop.f32.mrf.mxu0
      %v2736 = vpop.f32.mrf.mxu0
      %v2737 = vadd.f32 0.0, %v2736
      %v2738 = vpop.f32.mrf.mxu0
      %2739 = vmatprep.mubr.bf16.mxu0 0
      %2740 = vmatmul.mubr.bf16.gmra.mxu0 %v2152
      %v2741 = vpop.f32.mrf.mxu0
      %v2742 = vadd.f32 0.0, %v2741
      %v2743 = vpop.f32.mrf.mxu0
      %v2744 = vpop.f32.mrf.mxu0
      %v2745 = vadd.f32 0.0, %v2744
      %v2746 = vpop.f32.mrf.mxu0
      %2747 = vmatprep.mubr.bf16.mxu0 0
      %2748 = vmatmul.mubr.bf16.gmra.mxu0 %v2155
      %v2749 = vpop.f32.mrf.mxu0
      %v2750 = vadd.f32 0.0, %v2749
      %v2751 = vpop.f32.mrf.mxu0
      %v2752 = vpop.f32.mrf.mxu0
      %v2753 = vadd.f32 0.0, %v2752
      %v2754 = vpop.f32.mrf.mxu0
      %2755 = vdwg.mxu0
      %v2756 = vunpack.c.l.b16 %v2656
      %v2757 = vunpack.c.l.b16 %v2660
      %v2758 = vunpack.c.l.b16 %v2664
      %v2759 = vunpack.c.l.b16 %v2668
      %v2760 = vunpack.c.l.b16 %v2672
      %v2761 = vunpack.c.l.b16 %v2676
      %v2762 = vunpack.c.l.b16 %v2680
      %v2763 = vunpack.c.l.b16 %v2684
      %v2764 = vpack.c.b16 %v2757, %v2756
      %v2765 = vpack.c.b16 %v2759, %v2758
      %v2766 = vpack.c.b16 %v2761, %v2760
      %v2767 = vpack.c.b16 %v2763, %v2762
      %v2769 = vsel %vm746, %v2764, 0
      %v2772 = vsel %vm746, %v2765, 0
      %v2775 = vsel %vm746, %v2766, 0
      %v2778 = vsel %vm746, %v2767, 0
      %v2781 = vsel %vm759, %v2685, 0
      %2783 = vmatprep.subr.bf16.mxu0 0
      %2784 = vmatpush1.bf16.msra.mxu0 0
      %2785 = vmatprep.subr.bf16.mxu0 0
      %2786 = vmatpush1.bf16.msra.mxu0 0
      %2787 = vmatprep.subr.bf16.mxu0 0
      %2788 = vmatpush1.bf16.msra.mxu0 0
      %2789 = vmatprep.subr.bf16.mxu0 0
      %2790 = vmatpush1.bf16.msra.mxu0 0
      %2791 = vmatprep.subr.bf16.mxu0 0
      %2792 = vmatpush1.bf16.msra.mxu0 0
      %2793 = vmatprep.subr.bf16.mxu0 0
      %2794 = vmatpush1.bf16.msra.mxu0 0
      %2795 = vmatprep.subr.bf16.mxu0 0
      %2796 = vmatpush1.bf16.msra.mxu0 0
      %2797 = vmatprep.subr.bf16.mxu0 0
      %2798 = vmatpush1.bf16.msra.mxu0 %v2781
      %2799 = vmatprep.subr.bf16.mxu0 0
      %2800 = vmatpush2.bf16.msra.mxu0 0
      %2801 = vmatprep.subr.bf16.mxu0 0
      %2802 = vmatpush2.bf16.msra.mxu0 0
      %2803 = vmatprep.subr.bf16.mxu0 0
      %2804 = vmatpush2.bf16.msra.mxu0 0
      %2805 = vmatprep.subr.bf16.mxu0 0
      %2806 = vmatpush2.bf16.msra.mxu0 0
      %2807 = vmatprep.subr.bf16.mxu0 0
      %2808 = vmatpush2.bf16.msra.mxu0 0
      %2809 = vmatprep.subr.bf16.mxu0 0
      %2810 = vmatpush2.bf16.msra.mxu0 0
      %2811 = vmatprep.subr.bf16.mxu0 0
      %2812 = vmatpush2.bf16.msra.mxu0 0
      %2813 = vmatprep.subr.bf16.mxu0 0
      %2814 = vmatpush2.bf16.msra.mxu0 0
      %2815 = vmatprep.mubr.bf16.mxu0 0
      %2816 = vmatmul.mubr.bf16.gmra.mxu0 %v2769
      %v2817 = vpop.f32.mrf.mxu0
      %v2818 = vadd.f32 %v2726, %v2817
      %v2819 = vpop.f32.mrf.mxu0
      %v2820 = vpop.f32.mrf.mxu0
      %v2821 = vadd.f32 %v2729, %v2820
      %v2822 = vpop.f32.mrf.mxu0
      %2823 = vmatprep.mubr.bf16.mxu0 0
      %2824 = vmatmul.mubr.bf16.gmra.mxu0 %v2772
      %v2825 = vpop.f32.mrf.mxu0
      %v2826 = vadd.f32 %v2734, %v2825
      %v2827 = vpop.f32.mrf.mxu0
      %v2828 = vpop.f32.mrf.mxu0
      %v2829 = vadd.f32 %v2737, %v2828
      %v2830 = vpop.f32.mrf.mxu0
      %2831 = vmatprep.mubr.bf16.mxu0 0
      %2832 = vmatmul.mubr.bf16.gmra.mxu0 %v2775
      %v2833 = vpop.f32.mrf.mxu0
      %v2834 = vadd.f32 %v2742, %v2833
      %v2835 = vpop.f32.mrf.mxu0
      %v2836 = vpop.f32.mrf.mxu0
      %v2837 = vadd.f32 %v2745, %v2836
      %v2838 = vpop.f32.mrf.mxu0
      %2839 = vmatprep.mubr.bf16.mxu0 0
      %2840 = vmatmul.mubr.bf16.gmra.mxu0 %v2778
      %v2841 = vpop.f32.mrf.mxu0
      %v2842 = vadd.f32 %v2750, %v2841
      %v2843 = vpop.f32.mrf.mxu0
      %v2844 = vpop.f32.mrf.mxu0
      %v2845 = vadd.f32 %v2753, %v2844
      %v2846 = vpop.f32.mrf.mxu0
      %2847 = vdwg.mxu0
      %v2848 = vld [vmem:[%s375] sm:$0xe]
      %v2849 = vld [vmem:[%s375 + $0x8] sm:$0xe]
      %v2850 = vld [vmem:[%s375 + $0x10] sm:$0xe]
      %v2851 = vld [vmem:[%s375 + $0x18] sm:$0xe]
      %v2852 = vld [vmem:[%s375 + $0x20] sm:$0xe]
      %v2853 = vld [vmem:[%s375 + $0x28] sm:$0xe]
      %v2854 = vld [vmem:[%s375 + $0x30] sm:$0xe]
      %v2855 = vld [vmem:[%s375 + $0x38] sm:$0xe]
      %v2872 = vrot.slane %v2848, 5
      %v2873 = vrot.slane %v2872, 4
      %v2874 = vrot.slane %v2226, 5
      %v2875 = vsel %vm1350, %v2873, %v2874
      %v2876 = vrot.slane %v2849, 5
      %v2877 = vrot.slane %v2876, 4
      %v2878 = vrot.slane %v2228, 5
      %v2879 = vsel %vm1350, %v2877, %v2878
      %v2880 = vrot.slane %v2850, 5
      %v2881 = vrot.slane %v2880, 4
      %v2882 = vrot.slane %v2230, 5
      %v2883 = vsel %vm1350, %v2881, %v2882
      %v2884 = vrot.slane %v2851, 5
      %v2885 = vrot.slane %v2884, 4
      %v2886 = vrot.slane %v2232, 5
      %v2887 = vsel %vm1350, %v2885, %v2886
      %v2888 = vrot.slane %v2852, 5
      %v2889 = vrot.slane %v2888, 4
      %v2890 = vrot.slane %v2234, 5
      %v2891 = vsel %vm1350, %v2889, %v2890
      %v2892 = vrot.slane %v2853, 5
      %v2893 = vrot.slane %v2892, 4
      %v2894 = vrot.slane %v2236, 5
      %v2895 = vsel %vm1350, %v2893, %v2894
      %v2896 = vrot.slane %v2854, 5
      %v2897 = vrot.slane %v2896, 4
      %v2898 = vrot.slane %v2238, 5
      %v2899 = vsel %vm1350, %v2897, %v2898
      %v2900 = vrot.slane %v2855, 5
      %v2901 = vrot.slane %v2900, 4
      %v2902 = vrot.slane %v2240, 5
      %v2903 = vsel %vm1350, %v2901, %v2902
      %s2904 = scalar_lea.vmem %s4, 16
      %v2905 = vld [vmem:[%s2904] sm:$0x3]
      %v2906 = vunpack.c.l.b16 %v2875
      %v2907 = vunpack.c.l.b16 %v2879
      %v2908 = vunpack.c.l.b16 %v2883
      %v2909 = vunpack.c.l.b16 %v2887
      %v2910 = vunpack.c.l.b16 %v2891
      %v2911 = vunpack.c.l.b16 %v2895
      %v2912 = vunpack.c.l.b16 %v2899
      %v2913 = vunpack.c.l.b16 %v2903
      %v2914 = vpack.c.b16 %v2907, %v2906
      %v2915 = vpack.c.b16 %v2909, %v2908
      %v2916 = vpack.c.b16 %v2911, %v2910
      %v2917 = vpack.c.b16 %v2913, %v2912
      %v2919 = vsel %vm746, %v2914, 0
      %v2922 = vsel %vm746, %v2915, 0
      %v2925 = vsel %vm746, %v2916, 0
      %v2928 = vsel %vm746, %v2917, 0
      %v2931 = vsel %vm759, %v2905, 0
      %2933 = vmatprep.subr.bf16.mxu0 0
      %2934 = vmatpush1.bf16.msra.mxu0 0
      %2935 = vmatprep.subr.bf16.mxu0 0
      %2936 = vmatpush1.bf16.msra.mxu0 0
      %2937 = vmatprep.subr.bf16.mxu0 0
      %2938 = vmatpush1.bf16.msra.mxu0 0
      %2939 = vmatprep.subr.bf16.mxu0 0
      %2940 = vmatpush1.bf16.msra.mxu0 0
      %2941 = vmatprep.subr.bf16.mxu0 0
      %2942 = vmatpush1.bf16.msra.mxu0 0
      %2943 = vmatprep.subr.bf16.mxu0 0
      %2944 = vmatpush1.bf16.msra.mxu0 0
      %2945 = vmatprep.subr.bf16.mxu0 0
      %2946 = vmatpush1.bf16.msra.mxu0 0
      %2947 = vmatprep.subr.bf16.mxu0 0
      %2948 = vmatpush1.bf16.msra.mxu0 %v2931
      %2949 = vmatprep.subr.bf16.mxu0 0
      %2950 = vmatpush2.bf16.msra.mxu0 0
      %2951 = vmatprep.subr.bf16.mxu0 0
      %2952 = vmatpush2.bf16.msra.mxu0 0
      %2953 = vmatprep.subr.bf16.mxu0 0
      %2954 = vmatpush2.bf16.msra.mxu0 0
      %2955 = vmatprep.subr.bf16.mxu0 0
      %2956 = vmatpush2.bf16.msra.mxu0 0
      %2957 = vmatprep.subr.bf16.mxu0 0
      %2958 = vmatpush2.bf16.msra.mxu0 0
      %2959 = vmatprep.subr.bf16.mxu0 0
      %2960 = vmatpush2.bf16.msra.mxu0 0
      %2961 = vmatprep.subr.bf16.mxu0 0
      %2962 = vmatpush2.bf16.msra.mxu0 0
      %2963 = vmatprep.subr.bf16.mxu0 0
      %2964 = vmatpush2.bf16.msra.mxu0 0
      %2965 = vmatprep.mubr.bf16.mxu0 0
      %2966 = vmatmul.mubr.bf16.gmra.mxu0 %v2919
      %v2967 = vpop.f32.mrf.mxu0
      %v2968 = vadd.f32 0.0, %v2967
      %v2969 = vpop.f32.mrf.mxu0
      %v2970 = vpop.f32.mrf.mxu0
      %v2971 = vadd.f32 0.0, %v2970
      %v2972 = vpop.f32.mrf.mxu0
      %2973 = vmatprep.mubr.bf16.mxu0 0
      %2974 = vmatmul.mubr.bf16.gmra.mxu0 %v2922
      %v2975 = vpop.f32.mrf.mxu0
      %v2976 = vadd.f32 0.0, %v2975
      %v2977 = vpop.f32.mrf.mxu0
      %v2978 = vpop.f32.mrf.mxu0
      %v2979 = vadd.f32 0.0, %v2978
      %v2980 = vpop.f32.mrf.mxu0
      %2981 = vmatprep.mubr.bf16.mxu0 0
      %2982 = vmatmul.mubr.bf16.gmra.mxu0 %v2925
      %v2983 = vpop.f32.mrf.mxu0
      %v2984 = vadd.f32 0.0, %v2983
      %v2985 = vpop.f32.mrf.mxu0
      %v2986 = vpop.f32.mrf.mxu0
      %v2987 = vadd.f32 0.0, %v2986
      %v2988 = vpop.f32.mrf.mxu0
      %2989 = vmatprep.mubr.bf16.mxu0 0
      %2990 = vmatmul.mubr.bf16.gmra.mxu0 %v2928
      %v2991 = vpop.f32.mrf.mxu0
      %v2992 = vadd.f32 0.0, %v2991
      %v2993 = vpop.f32.mrf.mxu0
      %v2994 = vpop.f32.mrf.mxu0
      %v2995 = vadd.f32 0.0, %v2994
      %v2996 = vpop.f32.mrf.mxu0
      %2997 = vdwg.mxu0
      %v2998 = vadd.f32 %v2818, %v2968
      %v2999 = vadd.f32 %v2821, %v2971
      %v3000 = vadd.f32 %v2826, %v2976
      %v3001 = vadd.f32 %v2829, %v2979
      %v3002 = vadd.f32 %v2834, %v2984
      %v3003 = vadd.f32 %v2837, %v2987
      %v3004 = vadd.f32 %v2842, %v2992
      %v3005 = vadd.f32 %v2845, %v2995
      %s3006 = scalar_lea.vmem %s4, 20
      %v3007 = vld [vmem:[%s3006] sm:$0x3]
      %v3009 = vsel %vm759, %v3007, 0
      %3011 = vmatprep.subr.bf16.mxu0 0
      %3012 = vmatpush1.bf16.msra.mxu0 0
      %3013 = vmatprep.subr.bf16.mxu0 0
      %3014 = vmatpush1.bf16.msra.mxu0 0
      %3015 = vmatprep.subr.bf16.mxu0 0
      %3016 = vmatpush1.bf16.msra.mxu0 0
      %3017 = vmatprep.subr.bf16.mxu0 0
      %3018 = vmatpush1.bf16.msra.mxu0 0
      %3019 = vmatprep.subr.bf16.mxu0 0
      %3020 = vmatpush1.bf16.msra.mxu0 0
      %3021 = vmatprep.subr.bf16.mxu0 0
      %3022 = vmatpush1.bf16.msra.mxu0 0
      %3023 = vmatprep.subr.bf16.mxu0 0
      %3024 = vmatpush1.bf16.msra.mxu0 0
      %3025 = vmatprep.subr.bf16.mxu0 0
      %3026 = vmatpush1.bf16.msra.mxu0 %v3009
      %3027 = vmatprep.subr.bf16.mxu0 0
      %3028 = vmatpush2.bf16.msra.mxu0 0
      %3029 = vmatprep.subr.bf16.mxu0 0
      %3030 = vmatpush2.bf16.msra.mxu0 0
      %3031 = vmatprep.subr.bf16.mxu0 0
      %3032 = vmatpush2.bf16.msra.mxu0 0
      %3033 = vmatprep.subr.bf16.mxu0 0
      %3034 = vmatpush2.bf16.msra.mxu0 0
      %3035 = vmatprep.subr.bf16.mxu0 0
      %3036 = vmatpush2.bf16.msra.mxu0 0
      %3037 = vmatprep.subr.bf16.mxu0 0
      %3038 = vmatpush2.bf16.msra.mxu0 0
      %3039 = vmatprep.subr.bf16.mxu0 0
      %3040 = vmatpush2.bf16.msra.mxu0 0
      %3041 = vmatprep.subr.bf16.mxu0 0
      %3042 = vmatpush2.bf16.msra.mxu0 0
      %3043 = vmatprep.mubr.bf16.mxu0 0
      %3044 = vmatmul.mubr.bf16.gmra.mxu0 %v2368
      %v3045 = vpop.f32.mrf.mxu0
      %v3046 = vadd.f32 0.0, %v3045
      %v3047 = vpop.f32.mrf.mxu0
      %v3048 = vpop.f32.mrf.mxu0
      %v3049 = vadd.f32 0.0, %v3048
      %v3050 = vpop.f32.mrf.mxu0
      %3051 = vmatprep.mubr.bf16.mxu0 0
      %3052 = vmatmul.mubr.bf16.gmra.mxu0 %v2371
      %v3053 = vpop.f32.mrf.mxu0
      %v3054 = vadd.f32 0.0, %v3053
      %v3055 = vpop.f32.mrf.mxu0
      %v3056 = vpop.f32.mrf.mxu0
      %v3057 = vadd.f32 0.0, %v3056
      %v3058 = vpop.f32.mrf.mxu0
      %3059 = vmatprep.mubr.bf16.mxu0 0
      %3060 = vmatmul.mubr.bf16.gmra.mxu0 %v2374
      %v3061 = vpop.f32.mrf.mxu0
      %v3062 = vadd.f32 0.0, %v3061
      %v3063 = vpop.f32.mrf.mxu0
      %v3064 = vpop.f32.mrf.mxu0
      %v3065 = vadd.f32 0.0, %v3064
      %v3066 = vpop.f32.mrf.mxu0
      %3067 = vmatprep.mubr.bf16.mxu0 0
      %3068 = vmatmul.mubr.bf16.gmra.mxu0 %v2377
      %v3069 = vpop.f32.mrf.mxu0
      %v3070 = vadd.f32 0.0, %v3069
      %v3071 = vpop.f32.mrf.mxu0
      %v3072 = vpop.f32.mrf.mxu0
      %v3073 = vadd.f32 0.0, %v3072
      %v3074 = vpop.f32.mrf.mxu0
      %3075 = vdwg.mxu0
      %v3076 = vadd.f32 %v2998, %v3046
      %v3077 = vadd.f32 %v2999, %v3049
      %v3078 = vadd.f32 %v3000, %v3054
      %v3079 = vadd.f32 %v3001, %v3057
      %v3080 = vadd.f32 %v3002, %v3062
      %v3081 = vadd.f32 %v3003, %v3065
      %v3082 = vadd.f32 %v3004, %v3070
      %v3083 = vadd.f32 %v3005, %v3073
      %v3084 = vsel %vm746, %v3076, 0.0
      %v3085 = vsel %vm746, %v3077, 0.0
      %v3086 = vadd.f32 %v3084, %v3085
      %v3087 = vsel %vm746, %v3078, 0.0
      %v3088 = vadd.f32 %v3086, %v3087
      %v3089 = vsel %vm746, %v3079, 0.0
      %v3090 = vadd.f32 %v3088, %v3089
      %v3091 = vsel %vm746, %v3080, 0.0
      %v3092 = vadd.f32 %v3090, %v3091
      %v3093 = vsel %vm746, %v3081, 0.0
      %v3094 = vadd.f32 %v3092, %v3093
      %v3095 = vsel %vm746, %v3082, 0.0
      %v3096 = vadd.f32 %v3094, %v3095
      %v3097 = vsel %vm746, %v3083, 0.0
      %v3098 = vadd.f32 %v3096, %v3097
      %v3099 = vrot.slane %v3098, 4
      %v3100 = vadd.f32 %v3098, %v3099
      %v3101 = vrot.slane %v3100, 2
      %v3102 = vadd.f32 %v3100, %v3101
      %v3103 = vrot.slane %v3102, 1
      %v3104 = vadd.f32 %v3102, %v3103
      %v3105 = vadd.f32 %v2594, %v3104
      %v3106 = vmul.f32 %v3076, %v3076
      %v3107 = vmul.f32 %v3077, %v3077
      %v3108 = vmul.f32 %v3078, %v3078
      %v3109 = vmul.f32 %v3079, %v3079
      %v3110 = vmul.f32 %v3080, %v3080
      %v3111 = vmul.f32 %v3081, %v3081
      %v3112 = vmul.f32 %v3082, %v3082
      %v3113 = vmul.f32 %v3083, %v3083
      %v3114 = vsel %vm746, %v3106, 0.0
      %v3115 = vsel %vm746, %v3107, 0.0
      %v3116 = vadd.f32 %v3114, %v3115
      %v3117 = vsel %vm746, %v3108, 0.0
      %v3118 = vadd.f32 %v3116, %v3117
      %v3119 = vsel %vm746, %v3109, 0.0
      %v3120 = vadd.f32 %v3118, %v3119
      %v3121 = vsel %vm746, %v3110, 0.0
      %v3122 = vadd.f32 %v3120, %v3121
      %v3123 = vsel %vm746, %v3111, 0.0
      %v3124 = vadd.f32 %v3122, %v3123
      %v3125 = vsel %vm746, %v3112, 0.0
      %v3126 = vadd.f32 %v3124, %v3125
      %v3127 = vsel %vm746, %v3113, 0.0
      %v3128 = vadd.f32 %v3126, %v3127
      %v3129 = vrot.slane %v3128, 4
      %v3130 = vadd.f32 %v3128, %v3129
      %v3131 = vrot.slane %v3130, 2
      %v3132 = vadd.f32 %v3130, %v3131
      %v3133 = vrot.slane %v3132, 1
      %v3134 = vadd.f32 %v3132, %v3133
      %v3135 = vadd.f32 %v2624, %v3134
      %v3136 = vpack.c.bf16 %v3077, %v3076
      %v3137 = vpack.c.bf16 %v3079, %v3078
      %v3138 = vpack.c.bf16 %v3081, %v3080
      %v3139 = vpack.c.bf16 %v3083, %v3082
      %3144 = vrot.lane.b32.xlu0 %v3136, 4
      %v3145 = vpop.permute.xlu0 %3144
      %3146 = vrot.lane.b32.xlu0 %v3137, 4
      %v3147 = vpop.permute.xlu0 %3146
      %3148 = vrot.lane.b32.xlu0 %v3138, 4
      %v3149 = vpop.permute.xlu0 %3148
      %3150 = vrot.lane.b32.xlu0 %v3139, 4
      %v3151 = vpop.permute.xlu0 %3150
      %v3154 = vsel %vm746, %v2625, %v3145
      %v3157 = vsel %vm746, %v2626, %v3147
      %v3160 = vsel %vm746, %v2627, %v3149
      %v3163 = vsel %vm746, %v2628, %v3151
      %v3168 = vunpack.c.l.b16 %v3154
      %v3169 = vunpack.c.h.b16 %v3154
      %v3170 = vunpack.c.l.b16 %v3157
      %v3171 = vunpack.c.h.b16 %v3157
      %v3172 = vunpack.c.l.b16 %v3160
      %v3173 = vunpack.c.h.b16 %v3160
      %v3174 = vunpack.c.l.b16 %v3163
      %v3175 = vunpack.c.h.b16 %v3163
      %v3176 = vpack.c.b16 %v3168, %v3168
      %v3177 = vpack.c.b16 %v3169, %v3169
      %v3178 = vpack.c.b16 %v3170, %v3170
      %v3179 = vpack.c.b16 %v3171, %v3171
      %v3180 = vpack.c.b16 %v3172, %v3172
      %v3181 = vpack.c.b16 %v3173, %v3173
      %v3182 = vpack.c.b16 %v3174, %v3174
      %v3183 = vpack.c.b16 %v3175, %v3175
      %s3192 = scalar_lea.vmem %s258, 4
      %3193 = vst.msk [vmem:[%s3192] sm:$0xf] %vm1891, %v3176
      %3194 = vst.msk [vmem:[%s3192 + $0x8] sm:$0xf] %vm1891, %v3177
      %3195 = vst.msk [vmem:[%s3192 + $0x10] sm:$0xf] %vm1891, %v3178
      %3196 = vst.msk [vmem:[%s3192 + $0x18] sm:$0xf] %vm1891, %v3179
      %3197 = vst.msk [vmem:[%s3192 + $0x20] sm:$0xf] %vm1891, %v3180
      %3198 = vst.msk [vmem:[%s3192 + $0x28] sm:$0xf] %vm1891, %v3181
      %3199 = vst.msk [vmem:[%s3192 + $0x30] sm:$0xf] %vm1891, %v3182
      %3200 = vst.msk [vmem:[%s3192 + $0x38] sm:$0xf] %vm1891, %v3183
      %vm3201 = vcmask 1040384
      %v3202 = vsel %vm3201, %v3105, %v3135
      %3203 = vst.msk [vmem:[%s262] sm:$0x3] %vm276, %v3202
      %p3204 = scmp.lt.s32.totalorder %s18, 1
      %s3205 = scalar_select %p3204, %s18, 1
      %s3206 = smul.addr %s3205, 16
      %s3207 = smul.addr %s3206, 4
      %s3208 = scalar_lea.vmem %s5, %s3207
      %p3209 = scmp.lt.s32.totalorder %s18, 1
      %s3210 = scalar_select %p3209, %s18, 1
      %s3211 = smul.addr %s3210, 2
      %s3212 = scalar_lea.vmem %s6, %s3211
      // Predicated region
      $region41: #{improved_ibn_a_decoder_block.5} parent=39 // pred_check
        %p3213 = pneg %p146
      $region42: #{improved_ibn_a_decoder_block.5} parent=39 // pred_check_branch
        %3215 = sbr.rel (%p3213) target = $region44
      $region43: #{improved_ibn_a_decoder_block.5} parent=39 // pred_region
        _
      $region44: #{improved_ibn_a_decoder_block.5} parent=39 // pred_fallthru
        _
      // Predicated region
      $region45: #{improved_ibn_a_decoder_block.5} parent=39 // pred_check
        %p3216 = pneg %p172
      $region46: #{improved_ibn_a_decoder_block.5} parent=39 // pred_check_branch
        %3218 = sbr.rel (%p3216) target = $region48
      $region47: #{improved_ibn_a_decoder_block.5} parent=39 // pred_region
        _
      $region48: #{improved_ibn_a_decoder_block.5} parent=39 // pred_fallthru
        _
    $region40: #{improved_ibn_a_decoder_block.5} parent=5 // pred_fallthru
      _
    %p3219 = scmp.le.s32.totalorder 2, %s13
    // Predicated region
    $region49: #{improved_ibn_a_decoder_block.5} parent=5 // pred_check
      %p3220 = pneg %p3219
    $region50: #{improved_ibn_a_decoder_block.5} parent=5 // pred_check_branch
      %3222 = sbr.rel (%p3220) target = $region52
    $region51: #{improved_ibn_a_decoder_block.5} parent=5 // pred_region
      %s3223 = ssub.s32 %s13, 2
      // Predicated region
      $region53: #{improved_ibn_a_decoder_block.5} parent=51 // pred_check
        %p3224 = pneg %p152
      $region54: #{improved_ibn_a_decoder_block.5} parent=51 // pred_check_branch
        %3226 = sbr.rel (%p3224) target = $region56
      $region55: #{improved_ibn_a_decoder_block.5} parent=51 // pred_region
        %p3227 = scmp.lt.s32.totalorder %s19, 1
        %s3228 = scalar_select %p3227, %s19, 1
        %s3229 = smul.addr %s3228, 16
        %s3230 = smul.addr %s3229, 4
        %s3231 = scalar_lea.vmem %s5, %s3230
      $region56: #{improved_ibn_a_decoder_block.5} parent=51 // pred_fallthru
        _
      // Predicated region
      $region57: #{improved_ibn_a_decoder_block.5} parent=51 // pred_check
        %p3232 = pneg %p178
      $region58: #{improved_ibn_a_decoder_block.5} parent=51 // pred_check_branch
        %3234 = sbr.rel (%p3232) target = $region60
      $region59: #{improved_ibn_a_decoder_block.5} parent=51 // pred_region
        %p3235 = scmp.lt.s32.totalorder %s19, 1
        %s3236 = scalar_select %p3235, %s19, 1
        %s3237 = smul.addr %s3236, 2
        %s3238 = scalar_lea.vmem %s6, %s3237
      $region60: #{improved_ibn_a_decoder_block.5} parent=51 // pred_fallthru
        _
    $region52: #{improved_ibn_a_decoder_block.5} parent=5 // pred_fallthru
      _
  $region6: #{improved_ibn_a_decoder_block.5} parent=0 // loop_footer
    %s17 = sadd.s32 1, %s13
  $region7: #{improved_ibn_a_decoder_block.5} parent=0 // loop_footer_branch
    %12 = sbr.rel target = $region3
  $region8: #{improved_ibn_a_decoder_block.5} parent=0 // loop_exit
    _

</llo_original>
